<compile_context>
chip_gen: v7x
topology: tpu7x:2x2x1
jax: 0.10.0
libtpu: 0.0.40
codegen_flags: <defaults>
</compile_context>

<pallas_src>
import functools

import jax
import jax.numpy as jnp
from jax.experimental import pallas as pl
from jax.experimental.pallas import tpu as pltpu

# ----------------------------------------------------------------------------
# Small synthetic config standing in for DINO ViT-L/14
#   (real model: resize 224, patch 14, dim 1024, 16 heads, 24 layers)
# ----------------------------------------------------------------------------
B = 2              # batch
C_IN = 3           # RGB
IMG_IN = 16        # input image spatial size
RESIZE = 28        # stands in for 224  # TODO(synk): real module resizes to 224
PATCH = 14         # ViT-L/14 patch size
N_PATCH = (RESIZE // PATCH) ** 2       # 4
D = 128            # stands in for feature_dim=1024
HEADS = 4
HEAD_DIM = D // HEADS                  # 32
DEPTH = 2          # stands in for 24 transformer blocks
MLP = 4 * D
SEQ = N_PATCH + 1  # CLS + patches = 5
S_PAD = 16         # sequence padded to a multiple of 16 (bf16 packing); masked
PATCH_K = PATCH * PATCH * C_IN         # 588
PATCH_K_PAD = 640                      # padded contraction dim (5 * 128)


# ----------------------------------------------------------------------------
# Patch embedding: conv(14x14, stride 14) == patchify + matmul.
#   grid=(B,): two parallel blocks (keeps both v7x TensorCores busy).
# ----------------------------------------------------------------------------
def _patch_embed_kernel(p_ref, w_ref, b_ref, o_ref):
    o_ref[...] = jnp.dot(p_ref[...].astype(jnp.bfloat16), w_ref[...],
                         preferred_element_type=jnp.float32) + b_ref[...]


def patch_embed(p, w, b):
    """p:(B, N_PATCH, K_PAD) f32, w:(K_PAD, D) bf16, b:(1, D) f32 -> (B, N_PATCH, D)."""
    bsz, npatch, kpad = p.shape
    d = w.shape[1]
    return pl.pallas_call(
        _patch_embed_kernel,
        out_shape=jax.ShapeDtypeStruct((bsz, npatch, d), jnp.float32),
        grid=(bsz,),
        in_specs=[
            pl.BlockSpec((None, npatch, kpad), lambda i: (i, 0, 0)),
            pl.BlockSpec((kpad, d), lambda i: (0, 0)),
            pl.BlockSpec((1, d), lambda i: (0, 0)),
        ],
        out_specs=pl.BlockSpec((None, npatch, d), lambda i: (i, 0, 0)),
        compiler_params=pltpu.CompilerParams(
            dimension_semantics=("parallel",),
            vmem_limit_bytes=32 * 1024 * 1024),
    )(p, w, b)


# ----------------------------------------------------------------------------
# Fused transformer block: one grid step per image.
#   LN1 -> QKV -> attention -> proj(+residual) -> LN2 -> FC1(+GELU) -> FC2(+residual)
# All intermediates stay in VMEM/vregs; weights are resident across grid steps
# (their index_map is constant, so Pallas does not re-DMA them).
# ----------------------------------------------------------------------------
def _block_kernel(x_ref, mask_ref,
                  ln1_g_ref, ln1_b_ref, qkv_w_ref, qkv_b_ref,
                  proj_w_ref, proj_b_ref,
                  ln2_g_ref, ln2_b_ref, fc1_w_ref, fc1_b_ref,
                  fc2_w_ref, fc2_b_ref,
                  o_ref, *, heads, head_dim, scale):
    f32 = jnp.float32
    bf16 = jnp.bfloat16
    d = heads * head_dim
    x = x_ref[...]                                            # (S_PAD, D) f32

    # ---- LN1 (once per row) fused into the QKV matmul ----
    mu = jnp.mean(x, axis=-1, keepdims=True)
    var = jnp.mean(jnp.square(x - mu), axis=-1, keepdims=True)
    xn = (x - mu) * jax.lax.rsqrt(var + 1e-6) * ln1_g_ref[...] + ln1_b_ref[...]
    qkv = jnp.dot(xn.astype(bf16), qkv_w_ref[...],
                  preferred_element_type=f32) + qkv_b_ref[...]   # (S_PAD, 3D) f32

    # ---- multi-head attention: bf16 MXU dots, no transposes, no concat ----
    mask = mask_ref[...]                                      # (1, S_PAD) additive
    acc = x + proj_b_ref[...]                                 # residual + proj bias
    for h in range(heads):                                    # static unroll
        # TODO(synk): head_dim=32 slices are not 128-lane aligned; at real scale
        # repack qkv_w columns per head to avoid the per-head lane shuffle.
        q = (qkv[:, h * head_dim:(h + 1) * head_dim] * scale).astype(bf16)
        k = qkv[:, d + h * head_dim: d + (h + 1) * head_dim].astype(bf16)
        v = qkv[:, 2 * d + h * head_dim: 2 * d + (h + 1) * head_dim].astype(bf16)
        s = jax.lax.dot_general(q, k, (((1,), (1,)), ((), ())),
                                preferred_element_type=f32)   # (S_PAD, S_PAD) f32
        s = s + mask                                          # mask padded keys
        s = s - jnp.max(s, axis=-1, keepdims=True)
        p = jnp.exp(s)
        p = p * pl.reciprocal(jnp.sum(p, axis=-1, keepdims=True), approx=True)
        out_h = jnp.dot(p.astype(bf16), v, preferred_element_type=f32)
        # Head output feeds straight into its slice of the proj matmul.
        acc = acc + jnp.dot(out_h.astype(bf16),
                            proj_w_ref[h * head_dim:(h + 1) * head_dim, :],
                            preferred_element_type=f32)
    x1 = acc                                                  # (S_PAD, D) f32

    # ---- LN2 fused into FC1(+GELU); residual fused into the FC2 epilogue ----
    mu2 = jnp.mean(x1, axis=-1, keepdims=True)
    var2 = jnp.mean(jnp.square(x1 - mu2), axis=-1, keepdims=True)
    xn2 = (x1 - mu2) * jax.lax.rsqrt(var2 + 1e-6) * ln2_g_ref[...] + ln2_b_ref[...]
    h1 = jnp.dot(xn2.astype(bf16), fc1_w_ref[...],
                 preferred_element_type=f32) + fc1_b_ref[...]
    # TODO(synk): torch nn.GELU default is exact erf; tanh approx used here.
    h1 = jax.nn.gelu(h1, approximate=True)
    o_ref[...] = x1 + jnp.dot(h1.astype(bf16), fc2_w_ref[...],
                              preferred_element_type=f32) + fc2_b_ref[...]


def transformer_block(x_seq, mask_bias, p):
    """x_seq: (B, S_PAD, D) f32 residual stream -> same shape."""
    b = x_seq.shape[0]
    kernel = functools.partial(_block_kernel, heads=HEADS, head_dim=HEAD_DIM,
                               scale=1.0 / float(HEAD_DIM) ** 0.5)
    rep0 = lambda i: (0, 0)   # shared / resident blocks (weights, biases, mask)
    return pl.pallas_call(
        kernel,
        out_shape=jax.ShapeDtypeStruct((b, S_PAD, D), jnp.float32),
        grid=(b,),
        in_specs=[
            pl.BlockSpec((None, S_PAD, D), lambda i: (i, 0, 0)),   # x
            pl.BlockSpec((1, S_PAD), rep0),                        # mask bias
            pl.BlockSpec((1, D), rep0),                            # ln1_g
            pl.BlockSpec((1, D), rep0),                            # ln1_b
            pl.BlockSpec((D, 3 * D), rep0),                        # qkv_w
            pl.BlockSpec((1, 3 * D), rep0),                        # qkv_b
            pl.BlockSpec((D, D), rep0),                            # proj_w
            pl.BlockSpec((1, D), rep0),                            # proj_b
            pl.BlockSpec((1, D), rep0),                            # ln2_g
            pl.BlockSpec((1, D), rep0),                            # ln2_b
            pl.BlockSpec((D, MLP), rep0),                          # fc1_w
            pl.BlockSpec((1, MLP), rep0),                          # fc1_b
            pl.BlockSpec((MLP, D), rep0),                          # fc2_w
            pl.BlockSpec((1, D), rep0),                            # fc2_b
        ],
        out_specs=pl.BlockSpec((None, S_PAD, D), lambda i: (i, 0, 0)),
        compiler_params=pltpu.CompilerParams(
            dimension_semantics=("parallel",),
            vmem_limit_bytes=32 * 1024 * 1024),
    )(x_seq, mask_bias,
      p["ln1_g"], p["ln1_b"], p["qkv_w"], p["qkv_b"],
      p["proj_w"], p["proj_b"],
      p["ln2_g"], p["ln2_b"], p["fc1_w"], p["fc1_b"],
      p["fc2_w"], p["fc2_b"])


# ----------------------------------------------------------------------------
# Model glue (reshapes / parameter plumbing stay in plain JAX)
# ----------------------------------------------------------------------------
def dino_forward(x, params):
    """x: (B, 3, H, W) float32 raw pixels in [0, 255] -> (B, D) CLS embeddings."""
    b, c, _, _ = x.shape

    # torchvision Resize(..., BICUBIC) stand-in.
    # TODO(synk): PIL antialiased bicubic is not bit-exact to jax.image.resize.
    xr = jax.image.resize(x, (b, c, RESIZE, RESIZE), method="bicubic")

    # ToTensor + Normalize folded into the patch-embed weights:
    #   ((x/255 - mean)/std) @ W + b  ==  x @ (scale*W) + (shift @ W + b)
    mean = jnp.array([0.485, 0.456, 0.406], jnp.float32)
    std = jnp.array([0.229, 0.224, 0.225], jnp.float32)
    scale_k = jnp.tile(1.0 / (255.0 * std), PATCH * PATCH)            # (588,)
    shift_k = jnp.tile(-mean / std, PATCH * PATCH)                    # (588,)
    pw = params["patch_w"].astype(jnp.float32)                        # (588, D)
    w_fold = (pw * scale_k[:, None]).astype(jnp.bfloat16)
    w_fold = jnp.pad(w_fold, ((0, PATCH_K_PAD - PATCH_K), (0, 0)))    # K -> 640
    b_fold = (params["patch_b"] + shift_k @ pw).reshape(1, D)

    # Patchify (channel-fastest K layout to match the normalization fold).
    nh = RESIZE // PATCH
    p = xr.transpose(0, 2, 3, 1)                                      # B, H, W, C
    p = p.reshape(b, nh, PATCH, nh, PATCH, c).transpose(0, 1, 3, 2, 4, 5)
    p = p.reshape(b, nh * nh, PATCH * PATCH * c)
    p = jnp.pad(p, ((0, 0), (0, 0), (0, PATCH_K_PAD - PATCH_K)))
    tok = patch_embed(p, w_fold, b_fold)                              # (b, N_PATCH, D)

    cls = jnp.broadcast_to(params["cls"], (b, 1, D))
    x_seq = jnp.concatenate([cls, tok], axis=1) + params["pos"]       # (b, SEQ, D)
    x_seq = jnp.pad(x_seq, ((0, 0), (0, S_PAD - SEQ), (0, 0)))        # seq -> 16

    # Additive attention bias: 0 for real keys, -1e30 for padded keys (f32 scores).
    mask_bias = jnp.where(jnp.arange(S_PAD) < SEQ, 0.0, -1e30)
    mask_bias = mask_bias.astype(jnp.float32).reshape(1, S_PAD)

    for blk in params["blocks"]:
        x_seq = transformer_block(x_seq, mask_bias, blk)

    # Final LayerNorm on the CLS rows only: plain jnp (row-wise op; a pallas_call
    # on a (B, D) = (2, 128) tensor is pure launch overhead).
    cls_tok = x_seq[:, 0, :]                                          # (b, D)
    mu = jnp.mean(cls_tok, axis=-1, keepdims=True)
    var = jnp.mean(jnp.square(cls_tok - mu), axis=-1, keepdims=True)
    return (cls_tok - mu) * jax.lax.rsqrt(var + 1e-6) * params["ln_g"] + params["ln_b"]


# ----------------------------------------------------------------------------
# Deterministic synthetic parameters (no .pth loading); weights stored bf16.
# ----------------------------------------------------------------------------
def init_params(key):
    keys = iter(jax.random.split(key, 4 + 4 * DEPTH))

    def nrm(shape, s=0.02, dtype=jnp.bfloat16):
        return (s * jax.random.normal(next(keys), shape)).astype(dtype)

    params = {
        "patch_w": nrm((PATCH_K, D)),
        "patch_b": jnp.zeros((D,), jnp.float32),
        "cls": nrm((1, 1, D), dtype=jnp.float32),
        "pos": nrm((1, SEQ, D), dtype=jnp.float32),
        "ln_g": jnp.ones((D,), jnp.float32),
        "ln_b": jnp.zeros((D,), jnp.float32),
        "blocks": [],
    }
    for _ in range(DEPTH):
        params["blocks"].append({
            "ln1_g": jnp.ones((1, D), jnp.float32),
            "ln1_b": jnp.zeros((1, D), jnp.float32),
            "qkv_w": nrm((D, 3 * D)),
            "qkv_b": jnp.zeros((1, 3 * D), jnp.float32),
            "proj_w": nrm((D, D)),
            "proj_b": jnp.zeros((1, D), jnp.float32),
            "ln2_g": jnp.ones((1, D), jnp.float32),
            "ln2_b": jnp.zeros((1, D), jnp.float32),
            "fc1_w": nrm((D, MLP)),
            "fc1_b": jnp.zeros((1, MLP), jnp.float32),
            "fc2_w": nrm((MLP, D)),
            "fc2_b": jnp.zeros((1, D), jnp.float32),
        })
    return params


if __name__ == "__main__":
    key = jax.random.PRNGKey(0)
    k_param, k_img = jax.random.split(key)

    params = init_params(k_param)
    # Synthetic uint8-valued RGB images (stored as float32), NCHW like PyTorch.
    x = jax.random.randint(k_img, (B, C_IN, IMG_IN, IMG_IN), 0, 256).astype(jnp.float32)

    fwd = jax.jit(dino_forward)
    emb = fwd(x, params)
    jax.block_until_ready(emb)

    assert emb.shape == (B, D) and emb.dtype == jnp.float32
    assert bool(jnp.all(jnp.isfinite(emb)))
    print("KERNEL_OK")
</pallas_src>

<mosaic_0001>
module attributes {stable_mosaic.version = 11 : i64} {
  func.func @_patch_embed_kernel(%arg0: i32, %arg1: memref<1x4x640xf32, #tpu.memory_space<vmem>>, %arg2: memref<640x128xbf16, #tpu.memory_space<vmem>>, %arg3: memref<1x128xf32, #tpu.memory_space<vmem>>, %arg4: memref<1x4x128xf32, #tpu.memory_space<vmem>>) attributes {dimension_semantics = [#tpu.dimension_semantics<parallel>], iteration_bounds = array<i64: 2>, scalar_prefetch = 0 : i64, scratch_operands = 0 : i64, tpu.core_type = #tpu.core_type<tc>, window_params = [{transform_indices = @transform_0, window_bounds = array<i64: 1, 4, 640>}, {pipeline_mode = #tpu.pipeline_mode<synchronous>, transform_indices = @transform_1, window_bounds = array<i64: 640, 128>}, {pipeline_mode = #tpu.pipeline_mode<synchronous>, transform_indices = @transform_2, window_bounds = array<i64: 1, 128>}, {transform_indices = @transform_3, window_bounds = array<i64: 1, 4, 128>}]} {
    %c0 = arith.constant 0 : index
    %c0_0 = arith.constant 0 : index
    %c0_1 = arith.constant 0 : index
    %0 = vector.load %arg1[%c0, %c0_0, %c0_1] : memref<1x4x640xf32, #tpu.memory_space<vmem>>, vector<1x4x640xf32>
    %1 = vector.shape_cast %0 : vector<1x4x640xf32> to vector<4x640xf32>
    %2 = arith.truncf %1 : vector<4x640xf32> to vector<4x640xbf16>
    %c0_2 = arith.constant 0 : index
    %c0_3 = arith.constant 0 : index
    %3 = vector.load %arg2[%c0_2, %c0_3] : memref<640x128xbf16, #tpu.memory_space<vmem>>, vector<640x128xbf16>
    %cst = arith.constant dense<0.000000e+00> : vector<4x128xf32>
    %4 = tpu.matmul %2, %3, %cst {dimension_numbers = #tpu.dot_dimension_numbers<[1], [0], [0], [1], [0, 0, 1, 1], [], []>} : vector<4x640xbf16>, vector<640x128xbf16>, vector<4x128xf32> -> vector<4x128xf32>
    %c0_4 = arith.constant 0 : index
    %c0_5 = arith.constant 0 : index
    %5 = vector.load %arg3[%c0_4, %c0_5] : memref<1x128xf32, #tpu.memory_space<vmem>>, vector<1x128xf32>
    %6 = vector.broadcast %5 : vector<1x128xf32> to vector<4x128xf32>
    %7 = arith.addf %4, %6 : vector<4x128xf32>
    %c0_6 = arith.constant 0 : index
    %c0_7 = arith.constant 0 : index
    %c0_8 = arith.constant 0 : index
    %8 = vector.load %arg4[%c0_6, %c0_7, %c0_8] : memref<1x4x128xf32, #tpu.memory_space<vmem>>, vector<1x4x128xf32>
    %9 = vector.shape_cast %8 : vector<1x4x128xf32> to vector<4x128xf32>
    %10 = vector.shape_cast %7 : vector<4x128xf32> to vector<1x4x128xf32>
    tpu.vector_store %arg4[%c0_6, %c0_7, %c0_8], %10 {strides = array<i32>} : memref<1x4x128xf32, #tpu.memory_space<vmem>>, vector<1x4x128xf32>,
    return
  }
  func.func @transform_0(%arg0: i32) -> (i32, i32, i32) {
    %c0_i32 = arith.constant 0 : i32
    %c0_i32_0 = arith.constant 0 : i32
    %c0_i32_1 = arith.constant 0 : i32
    return %arg0, %c0_i32, %c0_i32_0 : i32, i32, i32
  }
  func.func @transform_1(%arg0: i32) -> (i32, i32) {
    %c0_i32 = arith.constant 0 : i32
    %c0_i32_0 = arith.constant 0 : i32
    %c0_i32_1 = arith.constant 0 : i32
    return %c0_i32, %c0_i32_0 : i32, i32
  }
  func.func @transform_2(%arg0: i32) -> (i32, i32) {
    %c0_i32 = arith.constant 0 : i32
    %c0_i32_0 = arith.constant 0 : i32
    %c0_i32_1 = arith.constant 0 : i32
    return %c0_i32, %c0_i32_0 : i32, i32
  }
  func.func @transform_3(%arg0: i32) -> (i32, i32, i32) {
    %c0_i32 = arith.constant 0 : i32
    %c0_i32_0 = arith.constant 0 : i32
    %c0_i32_1 = arith.constant 0 : i32
    return %arg0, %c0_i32, %c0_i32_0 : i32, i32, i32
  }
}

module attributes {stable_mosaic.version = 11 : i64} {
  func.func @_block_kernel(%arg0: i32, %arg1: memref<1x16x128xf32, #tpu.memory_space<vmem>>, %arg2: memref<1x16xf32, #tpu.memory_space<vmem>>, %arg3: memref<1x128xf32, #tpu.memory_space<vmem>>, %arg4: memref<1x128xf32, #tpu.memory_space<vmem>>, %arg5: memref<128x384xbf16, #tpu.memory_space<vmem>>, %arg6: memref<1x384xf32, #tpu.memory_space<vmem>>, %arg7: memref<128x128xbf16, #tpu.memory_space<vmem>>, %arg8: memref<1x128xf32, #tpu.memory_space<vmem>>, %arg9: memref<1x128xf32, #tpu.memory_space<vmem>>, %arg10: memref<1x128xf32, #tpu.memory_space<vmem>>, %arg11: memref<128x512xbf16, #tpu.memory_space<vmem>>, %arg12: memref<1x512xf32, #tpu.memory_space<vmem>>, %arg13: memref<512x128xbf16, #tpu.memory_space<vmem>>, %arg14: memref<1x128xf32, #tpu.memory_space<vmem>>, %arg15: memref<1x16x128xf32, #tpu.memory_space<vmem>>) attributes {dimension_semantics = [#tpu.dimension_semantics<parallel>], iteration_bounds = array<i64: 2>, scalar_prefetch = 0 : i64, scratch_operands = 0 : i64, tpu.core_type = #tpu.core_type<tc>, window_params = [{transform_indices = @transform_0, window_bounds = array<i64: 1, 16, 128>}, {pipeline_mode = #tpu.pipeline_mode<synchronous>, transform_indices = @transform_1, window_bounds = array<i64: 1, 16>}, {pipeline_mode = #tpu.pipeline_mode<synchronous>, transform_indices = @transform_2, window_bounds = array<i64: 1, 128>}, {pipeline_mode = #tpu.pipeline_mode<synchronous>, transform_indices = @transform_3, window_bounds = array<i64: 1, 128>}, {pipeline_mode = #tpu.pipeline_mode<synchronous>, transform_indices = @transform_4, window_bounds = array<i64: 128, 384>}, {pipeline_mode = #tpu.pipeline_mode<synchronous>, transform_indices = @transform_5, window_bounds = array<i64: 1, 384>}, {pipeline_mode = #tpu.pipeline_mode<synchronous>, transform_indices = @transform_6, window_bounds = array<i64: 128, 128>}, {pipeline_mode = #tpu.pipeline_mode<synchronous>, transform_indices = @transform_7, window_bounds = array<i64: 1, 128>}, {pipeline_mode = #tpu.pipeline_mode<synchronous>, transform_indices = @transform_8, window_bounds = array<i64: 1, 128>}, {pipeline_mode = #tpu.pipeline_mode<synchronous>, transform_indices = @transform_9, window_bounds = array<i64: 1, 128>}, {pipeline_mode = #tpu.pipeline_mode<synchronous>, transform_indices = @transform_10, window_bounds = array<i64: 128, 512>}, {pipeline_mode = #tpu.pipeline_mode<synchronous>, transform_indices = @transform_11, window_bounds = array<i64: 1, 512>}, {pipeline_mode = #tpu.pipeline_mode<synchronous>, transform_indices = @transform_12, window_bounds = array<i64: 512, 128>}, {pipeline_mode = #tpu.pipeline_mode<synchronous>, transform_indices = @transform_13, window_bounds = array<i64: 1, 128>}, {transform_indices = @transform_14, window_bounds = array<i64: 1, 16, 128>}]} {
    %c0 = arith.constant 0 : index
    %c0_0 = arith.constant 0 : index
    %c0_1 = arith.constant 0 : index
    %0 = vector.load %arg1[%c0, %c0_0, %c0_1] : memref<1x16x128xf32, #tpu.memory_space<vmem>>, vector<1x16x128xf32>
    %1 = vector.shape_cast %0 : vector<1x16x128xf32> to vector<16x128xf32>
    %cst = arith.constant dense<0.000000e+00> : vector<16xf32>
    %2 = vector.multi_reduction <add>, %1, %cst [1] : vector<16x128xf32> to vector<16xf32>
    %3 = vector.shape_cast %2 : vector<16xf32> to vector<16x1xf32>
    %cst_2 = arith.constant 1.280000e+02 : f32
    %4 = vector.broadcast %cst_2 : f32 to vector<16x1xf32>
    %5 = arith.divf %3, %4 : vector<16x1xf32>
    %6 = vector.broadcast %5 : vector<16x1xf32> to vector<16x128xf32>
    %7 = arith.subf %1, %6 : vector<16x128xf32>
    %8 = arith.mulf %7, %7 : vector<16x128xf32>
    %cst_3 = arith.constant dense<0.000000e+00> : vector<16xf32>
    %9 = vector.multi_reduction <add>, %8, %cst_3 [1] : vector<16x128xf32> to vector<16xf32>
    %10 = vector.shape_cast %9 : vector<16xf32> to vector<16x1xf32>
    %cst_4 = arith.constant 1.280000e+02 : f32
    %11 = vector.broadcast %cst_4 : f32 to vector<16x1xf32>
    %12 = arith.divf %10, %11 : vector<16x1xf32>
    %13 = vector.broadcast %5 : vector<16x1xf32> to vector<16x128xf32>
    %14 = arith.subf %1, %13 : vector<16x128xf32>
    %cst_5 = arith.constant 9.99999997E-7 : f32
    %15 = vector.broadcast %cst_5 : f32 to vector<16x1xf32>
    %16 = arith.addf %12, %15 : vector<16x1xf32>
    %17 = math.rsqrt %16 : vector<16x1xf32>
    %18 = vector.broadcast %17 : vector<16x1xf32> to vector<16x128xf32>
    %19 = arith.mulf %14, %18 : vector<16x128xf32>
    %c0_6 = arith.constant 0 : index
    %c0_7 = arith.constant 0 : index
    %20 = vector.load %arg3[%c0_6, %c0_7] : memref<1x128xf32, #tpu.memory_space<vmem>>, vector<1x128xf32>
    %21 = vector.broadcast %20 : vector<1x128xf32> to vector<16x128xf32>
    %22 = arith.mulf %19, %21 : vector<16x128xf32>
    %c0_8 = arith.constant 0 : index
    %c0_9 = arith.constant 0 : index
    %23 = vector.load %arg4[%c0_8, %c0_9] : memref<1x128xf32, #tpu.memory_space<vmem>>, vector<1x128xf32>
    %24 = vector.broadcast %23 : vector<1x128xf32> to vector<16x128xf32>
    %25 = arith.addf %22, %24 : vector<16x128xf32>
    %26 = arith.truncf %25 : vector<16x128xf32> to vector<16x128xbf16>
    %c0_10 = arith.constant 0 : index
    %c0_11 = arith.constant 0 : index
    %27 = vector.load %arg5[%c0_10, %c0_11] : memref<128x384xbf16, #tpu.memory_space<vmem>>, vector<128x384xbf16>
    %cst_12 = arith.constant dense<0.000000e+00> : vector<16x384xf32>
    %28 = tpu.matmul %26, %27, %cst_12 {dimension_numbers = #tpu.dot_dimension_numbers<[1], [0], [0], [1], [0, 0, 1, 1], [], []>} : vector<16x128xbf16>, vector<128x384xbf16>, vector<16x384xf32> -> vector<16x384xf32>
    %c0_13 = arith.constant 0 : index
    %c0_14 = arith.constant 0 : index
    %29 = vector.load %arg6[%c0_13, %c0_14] : memref<1x384xf32, #tpu.memory_space<vmem>>, vector<1x384xf32>
    %30 = vector.broadcast %29 : vector<1x384xf32> to vector<16x384xf32>
    %31 = arith.addf %28, %30 : vector<16x384xf32>
    %c0_15 = arith.constant 0 : index
    %c0_16 = arith.constant 0 : index
    %32 = vector.load %arg2[%c0_15, %c0_16] : memref<1x16xf32, #tpu.memory_space<vmem>>, vector<1x16xf32>
    %c0_17 = arith.constant 0 : index
    %c0_18 = arith.constant 0 : index
    %33 = vector.load %arg8[%c0_17, %c0_18] : memref<1x128xf32, #tpu.memory_space<vmem>>, vector<1x128xf32>
    %34 = vector.broadcast %33 : vector<1x128xf32> to vector<16x128xf32>
    %35 = arith.addf %1, %34 : vector<16x128xf32>
    %36 = vector.extract_strided_slice %31 {offsets = [0, 0], sizes = [16, 32], strides = [1, 1]} : vector<16x384xf32> to vector<16x32xf32>
    %cst_19 = arith.constant 0.176776692 : f32
    %37 = vector.broadcast %cst_19 : f32 to vector<16x32xf32>
    %38 = arith.mulf %36, %37 : vector<16x32xf32>
    %39 = arith.truncf %38 : vector<16x32xf32> to vector<16x32xbf16>
    %40 = vector.extract_strided_slice %31 {offsets = [0, 128], sizes = [16, 32], strides = [1, 1]} : vector<16x384xf32> to vector<16x32xf32>
    %41 = arith.truncf %40 : vector<16x32xf32> to vector<16x32xbf16>
    %42 = vector.extract_strided_slice %31 {offsets = [0, 256], sizes = [16, 32], strides = [1, 1]} : vector<16x384xf32> to vector<16x32xf32>
    %43 = arith.truncf %42 : vector<16x32xf32> to vector<16x32xbf16>
    %cst_20 = arith.constant dense<0.000000e+00> : vector<16x16xf32>
    %44 = tpu.matmul %39, %41, %cst_20 {dimension_numbers = #tpu.dot_dimension_numbers<[1], [1], [0], [0], [0, 0, 1, 0], [], []>} : vector<16x32xbf16>, vector<16x32xbf16>, vector<16x16xf32> -> vector<16x16xf32>
    %45 = vector.broadcast %32 : vector<1x16xf32> to vector<16x16xf32>
    %46 = arith.addf %44, %45 : vector<16x16xf32>
    %cst_21 = arith.constant dense<0xFF800000> : vector<16xf32>
    %47 = vector.multi_reduction <maximumf>, %46, %cst_21 [1] : vector<16x16xf32> to vector<16xf32>
    %48 = vector.shape_cast %47 : vector<16xf32> to vector<16x1xf32>
    %49 = vector.broadcast %48 : vector<16x1xf32> to vector<16x16xf32>
    %50 = arith.subf %46, %49 : vector<16x16xf32>
    %51 = math.exp %50 : vector<16x16xf32>
    %cst_22 = arith.constant dense<0.000000e+00> : vector<16xf32>
    %52 = vector.multi_reduction <add>, %51, %cst_22 [1] : vector<16x16xf32> to vector<16xf32>
    %53 = vector.shape_cast %52 : vector<16xf32> to vector<16x1xf32>
    %54 = tpu.reciprocal %53 {approx = true} : vector<16x1xf32> -> vector<16x1xf32>
    %55 = vector.broadcast %54 : vector<16x1xf32> to vector<16x16xf32>
    %56 = arith.mulf %51, %55 : vector<16x16xf32>
    %57 = arith.truncf %56 : vector<16x16xf32> to vector<16x16xbf16>
    %cst_23 = arith.constant dense<0.000000e+00> : vector<16x32xf32>
    %58 = tpu.matmul %57, %43, %cst_23 {dimension_numbers = #tpu.dot_dimension_numbers<[1], [0], [0], [1], [0, 0, 1, 1], [], []>} : vector<16x16xbf16>, vector<16x32xbf16>, vector<16x32xf32> -> vector<16x32xf32>
    %59 = arith.truncf %58 : vector<16x32xf32> to vector<16x32xbf16>
    %c0_24 = arith.constant 0 : index
    %c0_25 = arith.constant 0 : index
    %60 = vector.load %arg7[%c0_24, %c0_25] : memref<128x128xbf16, #tpu.memory_space<vmem>>, vector<32x128xbf16>
    %cst_26 = arith.constant dense<0.000000e+00> : vector<16x128xf32>
    %61 = tpu.matmul %59, %60, %cst_26 {dimension_numbers = #tpu.dot_dimension_numbers<[1], [0], [0], [1], [0, 0, 1, 1], [], []>} : vector<16x32xbf16>, vector<32x128xbf16>, vector<16x128xf32> -> vector<16x128xf32>
    %62 = arith.addf %35, %61 : vector<16x128xf32>
    %63 = vector.extract_strided_slice %31 {offsets = [0, 32], sizes = [16, 32], strides = [1, 1]} : vector<16x384xf32> to vector<16x32xf32>
    %cst_27 = arith.constant 0.176776692 : f32
    %64 = vector.broadcast %cst_27 : f32 to vector<16x32xf32>
    %65 = arith.mulf %63, %64 : vector<16x32xf32>
    %66 = arith.truncf %65 : vector<16x32xf32> to vector<16x32xbf16>
    %67 = vector.extract_strided_slice %31 {offsets = [0, 160], sizes = [16, 32], strides = [1, 1]} : vector<16x384xf32> to vector<16x32xf32>
    %68 = arith.truncf %67 : vector<16x32xf32> to vector<16x32xbf16>
    %69 = vector.extract_strided_slice %31 {offsets = [0, 288], sizes = [16, 32], strides = [1, 1]} : vector<16x384xf32> to vector<16x32xf32>
    %70 = arith.truncf %69 : vector<16x32xf32> to vector<16x32xbf16>
    %cst_28 = arith.constant dense<0.000000e+00> : vector<16x16xf32>
    %71 = tpu.matmul %66, %68, %cst_28 {dimension_numbers = #tpu.dot_dimension_numbers<[1], [1], [0], [0], [0, 0, 1, 0], [], []>} : vector<16x32xbf16>, vector<16x32xbf16>, vector<16x16xf32> -> vector<16x16xf32>
    %72 = vector.broadcast %32 : vector<1x16xf32> to vector<16x16xf32>
    %73 = arith.addf %71, %72 : vector<16x16xf32>
    %cst_29 = arith.constant dense<0xFF800000> : vector<16xf32>
    %74 = vector.multi_reduction <maximumf>, %73, %cst_29 [1] : vector<16x16xf32> to vector<16xf32>
    %75 = vector.shape_cast %74 : vector<16xf32> to vector<16x1xf32>
    %76 = vector.broadcast %75 : vector<16x1xf32> to vector<16x16xf32>
    %77 = arith.subf %73, %76 : vector<16x16xf32>
    %78 = math.exp %77 : vector<16x16xf32>
    %cst_30 = arith.constant dense<0.000000e+00> : vector<16xf32>
    %79 = vector.multi_reduction <add>, %78, %cst_30 [1] : vector<16x16xf32> to vector<16xf32>
    %80 = vector.shape_cast %79 : vector<16xf32> to vector<16x1xf32>
    %81 = tpu.reciprocal %80 {approx = true} : vector<16x1xf32> -> vector<16x1xf32>
    %82 = vector.broadcast %81 : vector<16x1xf32> to vector<16x16xf32>
    %83 = arith.mulf %78, %82 : vector<16x16xf32>
    %84 = arith.truncf %83 : vector<16x16xf32> to vector<16x16xbf16>
    %cst_31 = arith.constant dense<0.000000e+00> : vector<16x32xf32>
    %85 = tpu.matmul %84, %70, %cst_31 {dimension_numbers = #tpu.dot_dimension_numbers<[1], [0], [0], [1], [0, 0, 1, 1], [], []>} : vector<16x16xbf16>, vector<16x32xbf16>, vector<16x32xf32> -> vector<16x32xf32>
    %86 = arith.truncf %85 : vector<16x32xf32> to vector<16x32xbf16>
    %c32 = arith.constant 32 : index
    %c0_32 = arith.constant 0 : index
    %87 = vector.load %arg7[%c32, %c0_32] : memref<128x128xbf16, #tpu.memory_space<vmem>>, vector<32x128xbf16>
    %cst_33 = arith.constant dense<0.000000e+00> : vector<16x128xf32>
    %88 = tpu.matmul %86, %87, %cst_33 {dimension_numbers = #tpu.dot_dimension_numbers<[1], [0], [0], [1], [0, 0, 1, 1], [], []>} : vector<16x32xbf16>, vector<32x128xbf16>, vector<16x128xf32> -> vector<16x128xf32>
    %89 = arith.addf %62, %88 : vector<16x128xf32>
    %90 = vector.extract_strided_slice %31 {offsets = [0, 64], sizes = [16, 32], strides = [1, 1]} : vector<16x384xf32> to vector<16x32xf32>
    %cst_34 = arith.constant 0.176776692 : f32
    %91 = vector.broadcast %cst_34 : f32 to vector<16x32xf32>
    %92 = arith.mulf %90, %91 : vector<16x32xf32>
    %93 = arith.truncf %92 : vector<16x32xf32> to vector<16x32xbf16>
    %94 = vector.extract_strided_slice %31 {offsets = [0, 192], sizes = [16, 32], strides = [1, 1]} : vector<16x384xf32> to vector<16x32xf32>
    %95 = arith.truncf %94 : vector<16x32xf32> to vector<16x32xbf16>
    %96 = vector.extract_strided_slice %31 {offsets = [0, 320], sizes = [16, 32], strides = [1, 1]} : vector<16x384xf32> to vector<16x32xf32>
    %97 = arith.truncf %96 : vector<16x32xf32> to vector<16x32xbf16>
    %cst_35 = arith.constant dense<0.000000e+00> : vector<16x16xf32>
    %98 = tpu.matmul %93, %95, %cst_35 {dimension_numbers = #tpu.dot_dimension_numbers<[1], [1], [0], [0], [0, 0, 1, 0], [], []>} : vector<16x32xbf16>, vector<16x32xbf16>, vector<16x16xf32> -> vector<16x16xf32>
    %99 = vector.broadcast %32 : vector<1x16xf32> to vector<16x16xf32>
    %100 = arith.addf %98, %99 : vector<16x16xf32>
    %cst_36 = arith.constant dense<0xFF800000> : vector<16xf32>
    %101 = vector.multi_reduction <maximumf>, %100, %cst_36 [1] : vector<16x16xf32> to vector<16xf32>
    %102 = vector.shape_cast %101 : vector<16xf32> to vector<16x1xf32>
    %103 = vector.broadcast %102 : vector<16x1xf32> to vector<16x16xf32>
    %104 = arith.subf %100, %103 : vector<16x16xf32>
    %105 = math.exp %104 : vector<16x16xf32>
    %cst_37 = arith.constant dense<0.000000e+00> : vector<16xf32>
    %106 = vector.multi_reduction <add>, %105, %cst_37 [1] : vector<16x16xf32> to vector<16xf32>
    %107 = vector.shape_cast %106 : vector<16xf32> to vector<16x1xf32>
    %108 = tpu.reciprocal %107 {approx = true} : vector<16x1xf32> -> vector<16x1xf32>
    %109 = vector.broadcast %108 : vector<16x1xf32> to vector<16x16xf32>
    %110 = arith.mulf %105, %109 : vector<16x16xf32>
    %111 = arith.truncf %110 : vector<16x16xf32> to vector<16x16xbf16>
    %cst_38 = arith.constant dense<0.000000e+00> : vector<16x32xf32>
    %112 = tpu.matmul %111, %97, %cst_38 {dimension_numbers = #tpu.dot_dimension_numbers<[1], [0], [0], [1], [0, 0, 1, 1], [], []>} : vector<16x16xbf16>, vector<16x32xbf16>, vector<16x32xf32> -> vector<16x32xf32>
    %113 = arith.truncf %112 : vector<16x32xf32> to vector<16x32xbf16>
    %c64 = arith.constant 64 : index
    %c0_39 = arith.constant 0 : index
    %114 = vector.load %arg7[%c64, %c0_39] : memref<128x128xbf16, #tpu.memory_space<vmem>>, vector<32x128xbf16>
    %cst_40 = arith.constant dense<0.000000e+00> : vector<16x128xf32>
    %115 = tpu.matmul %113, %114, %cst_40 {dimension_numbers = #tpu.dot_dimension_numbers<[1], [0], [0], [1], [0, 0, 1, 1], [], []>} : vector<16x32xbf16>, vector<32x128xbf16>, vector<16x128xf32> -> vector<16x128xf32>
    %116 = arith.addf %89, %115 : vector<16x128xf32>
    %117 = vector.extract_strided_slice %31 {offsets = [0, 96], sizes = [16, 32], strides = [1, 1]} : vector<16x384xf32> to vector<16x32xf32>
    %cst_41 = arith.constant 0.176776692 : f32
    %118 = vector.broadcast %cst_41 : f32 to vector<16x32xf32>
    %119 = arith.mulf %117, %118 : vector<16x32xf32>
    %120 = arith.truncf %119 : vector<16x32xf32> to vector<16x32xbf16>
    %121 = vector.extract_strided_slice %31 {offsets = [0, 224], sizes = [16, 32], strides = [1, 1]} : vector<16x384xf32> to vector<16x32xf32>
    %122 = arith.truncf %121 : vector<16x32xf32> to vector<16x32xbf16>
    %123 = vector.extract_strided_slice %31 {offsets = [0, 352], sizes = [16, 32], strides = [1, 1]} : vector<16x384xf32> to vector<16x32xf32>
    %124 = arith.truncf %123 : vector<16x32xf32> to vector<16x32xbf16>
    %cst_42 = arith.constant dense<0.000000e+00> : vector<16x16xf32>
    %125 = tpu.matmul %120, %122, %cst_42 {dimension_numbers = #tpu.dot_dimension_numbers<[1], [1], [0], [0], [0, 0, 1, 0], [], []>} : vector<16x32xbf16>, vector<16x32xbf16>, vector<16x16xf32> -> vector<16x16xf32>
    %126 = vector.broadcast %32 : vector<1x16xf32> to vector<16x16xf32>
    %127 = arith.addf %125, %126 : vector<16x16xf32>
    %cst_43 = arith.constant dense<0xFF800000> : vector<16xf32>
    %128 = vector.multi_reduction <maximumf>, %127, %cst_43 [1] : vector<16x16xf32> to vector<16xf32>
    %129 = vector.shape_cast %128 : vector<16xf32> to vector<16x1xf32>
    %130 = vector.broadcast %129 : vector<16x1xf32> to vector<16x16xf32>
    %131 = arith.subf %127, %130 : vector<16x16xf32>
    %132 = math.exp %131 : vector<16x16xf32>
    %cst_44 = arith.constant dense<0.000000e+00> : vector<16xf32>
    %133 = vector.multi_reduction <add>, %132, %cst_44 [1] : vector<16x16xf32> to vector<16xf32>
    %134 = vector.shape_cast %133 : vector<16xf32> to vector<16x1xf32>
    %135 = tpu.reciprocal %134 {approx = true} : vector<16x1xf32> -> vector<16x1xf32>
    %136 = vector.broadcast %135 : vector<16x1xf32> to vector<16x16xf32>
    %137 = arith.mulf %132, %136 : vector<16x16xf32>
    %138 = arith.truncf %137 : vector<16x16xf32> to vector<16x16xbf16>
    %cst_45 = arith.constant dense<0.000000e+00> : vector<16x32xf32>
    %139 = tpu.matmul %138, %124, %cst_45 {dimension_numbers = #tpu.dot_dimension_numbers<[1], [0], [0], [1], [0, 0, 1, 1], [], []>} : vector<16x16xbf16>, vector<16x32xbf16>, vector<16x32xf32> -> vector<16x32xf32>
    %140 = arith.truncf %139 : vector<16x32xf32> to vector<16x32xbf16>
    %c96 = arith.constant 96 : index
    %c0_46 = arith.constant 0 : index
    %141 = vector.load %arg7[%c96, %c0_46] : memref<128x128xbf16, #tpu.memory_space<vmem>>, vector<32x128xbf16>
    %cst_47 = arith.constant dense<0.000000e+00> : vector<16x128xf32>
    %142 = tpu.matmul %140, %141, %cst_47 {dimension_numbers = #tpu.dot_dimension_numbers<[1], [0], [0], [1], [0, 0, 1, 1], [], []>} : vector<16x32xbf16>, vector<32x128xbf16>, vector<16x128xf32> -> vector<16x128xf32>
    %143 = arith.addf %116, %142 : vector<16x128xf32>
    %cst_48 = arith.constant dense<0.000000e+00> : vector<16xf32>
    %144 = vector.multi_reduction <add>, %143, %cst_48 [1] : vector<16x128xf32> to vector<16xf32>
    %145 = vector.shape_cast %144 : vector<16xf32> to vector<16x1xf32>
    %cst_49 = arith.constant 1.280000e+02 : f32
    %146 = vector.broadcast %cst_49 : f32 to vector<16x1xf32>
    %147 = arith.divf %145, %146 : vector<16x1xf32>
    %148 = vector.broadcast %147 : vector<16x1xf32> to vector<16x128xf32>
    %149 = arith.subf %143, %148 : vector<16x128xf32>
    %150 = arith.mulf %149, %149 : vector<16x128xf32>
    %cst_50 = arith.constant dense<0.000000e+00> : vector<16xf32>
    %151 = vector.multi_reduction <add>, %150, %cst_50 [1] : vector<16x128xf32> to vector<16xf32>
    %152 = vector.shape_cast %151 : vector<16xf32> to vector<16x1xf32>
    %cst_51 = arith.constant 1.280000e+02 : f32
    %153 = vector.broadcast %cst_51 : f32 to vector<16x1xf32>
    %154 = arith.divf %152, %153 : vector<16x1xf32>
    %155 = vector.broadcast %147 : vector<16x1xf32> to vector<16x128xf32>
    %156 = arith.subf %143, %155 : vector<16x128xf32>
    %cst_52 = arith.constant 9.99999997E-7 : f32
    %157 = vector.broadcast %cst_52 : f32 to vector<16x1xf32>
    %158 = arith.addf %154, %157 : vector<16x1xf32>
    %159 = math.rsqrt %158 : vector<16x1xf32>
    %160 = vector.broadcast %159 : vector<16x1xf32> to vector<16x128xf32>
    %161 = arith.mulf %156, %160 : vector<16x128xf32>
    %c0_53 = arith.constant 0 : index
    %c0_54 = arith.constant 0 : index
    %162 = vector.load %arg9[%c0_53, %c0_54] : memref<1x128xf32, #tpu.memory_space<vmem>>, vector<1x128xf32>
    %163 = vector.broadcast %162 : vector<1x128xf32> to vector<16x128xf32>
    %164 = arith.mulf %161, %163 : vector<16x128xf32>
    %c0_55 = arith.constant 0 : index
    %c0_56 = arith.constant 0 : index
    %165 = vector.load %arg10[%c0_55, %c0_56] : memref<1x128xf32, #tpu.memory_space<vmem>>, vector<1x128xf32>
    %166 = vector.broadcast %165 : vector<1x128xf32> to vector<16x128xf32>
    %167 = arith.addf %164, %166 : vector<16x128xf32>
    %168 = arith.truncf %167 : vector<16x128xf32> to vector<16x128xbf16>
    %c0_57 = arith.constant 0 : index
    %c0_58 = arith.constant 0 : index
    %169 = vector.load %arg11[%c0_57, %c0_58] : memref<128x512xbf16, #tpu.memory_space<vmem>>, vector<128x512xbf16>
    %cst_59 = arith.constant dense<0.000000e+00> : vector<16x512xf32>
    %170 = tpu.matmul %168, %169, %cst_59 {dimension_numbers = #tpu.dot_dimension_numbers<[1], [0], [0], [1], [0, 0, 1, 1], [], []>} : vector<16x128xbf16>, vector<128x512xbf16>, vector<16x512xf32> -> vector<16x512xf32>
    %c0_60 = arith.constant 0 : index
    %c0_61 = arith.constant 0 : index
    %171 = vector.load %arg12[%c0_60, %c0_61] : memref<1x512xf32, #tpu.memory_space<vmem>>, vector<1x512xf32>
    %172 = vector.broadcast %171 : vector<1x512xf32> to vector<16x512xf32>
    %173 = arith.addf %170, %172 : vector<16x512xf32>
    %174 = arith.mulf %173, %173 : vector<16x512xf32>
    %175 = arith.mulf %173, %174 : vector<16x512xf32>
    %cst_62 = arith.constant 4.471500e-02 : f32
    %176 = vector.broadcast %cst_62 : f32 to vector<16x512xf32>
    %177 = arith.mulf %176, %175 : vector<16x512xf32>
    %178 = arith.addf %173, %177 : vector<16x512xf32>
    %cst_63 = arith.constant 0.797884583 : f32
    %179 = vector.broadcast %cst_63 : f32 to vector<16x512xf32>
    %180 = arith.mulf %179, %178 : vector<16x512xf32>
    %181 = math.tanh %180 : vector<16x512xf32>
    %cst_64 = arith.constant 1.000000e+00 : f32
    %182 = vector.broadcast %cst_64 : f32 to vector<16x512xf32>
    %183 = arith.addf %182, %181 : vector<16x512xf32>
    %cst_65 = arith.constant 5.000000e-01 : f32
    %184 = vector.broadcast %cst_65 : f32 to vector<16x512xf32>
    %185 = arith.mulf %184, %183 : vector<16x512xf32>
    %186 = arith.mulf %173, %185 : vector<16x512xf32>
    %187 = arith.truncf %186 : vector<16x512xf32> to vector<16x512xbf16>
    %c0_66 = arith.constant 0 : index
    %c0_67 = arith.constant 0 : index
    %188 = vector.load %arg13[%c0_66, %c0_67] : memref<512x128xbf16, #tpu.memory_space<vmem>>, vector<512x128xbf16>
    %cst_68 = arith.constant dense<0.000000e+00> : vector<16x128xf32>
    %189 = tpu.matmul %187, %188, %cst_68 {dimension_numbers = #tpu.dot_dimension_numbers<[1], [0], [0], [1], [0, 0, 1, 1], [], []>} : vector<16x512xbf16>, vector<512x128xbf16>, vector<16x128xf32> -> vector<16x128xf32>
    %190 = arith.addf %143, %189 : vector<16x128xf32>
    %c0_69 = arith.constant 0 : index
    %c0_70 = arith.constant 0 : index
    %191 = vector.load %arg14[%c0_69, %c0_70] : memref<1x128xf32, #tpu.memory_space<vmem>>, vector<1x128xf32>
    %192 = vector.broadcast %191 : vector<1x128xf32> to vector<16x128xf32>
    %193 = arith.addf %190, %192 : vector<16x128xf32>
    %c0_71 = arith.constant 0 : index
    %c0_72 = arith.constant 0 : index
    %c0_73 = arith.constant 0 : index
    %194 = vector.load %arg15[%c0_71, %c0_72, %c0_73] : memref<1x16x128xf32, #tpu.memory_space<vmem>>, vector<1x16x128xf32>
    %195 = vector.shape_cast %194 : vector<1x16x128xf32> to vector<16x128xf32>
    %196 = vector.shape_cast %193 : vector<16x128xf32> to vector<1x16x128xf32>
    tpu.vector_store %arg15[%c0_71, %c0_72, %c0_73], %196 {strides = array<i32>} : memref<1x16x128xf32, #tpu.memory_space<vmem>>, vector<1x16x128xf32>,
    return
  }
  func.func @transform_0(%arg0: i32) -> (i32, i32, i32) {
    %c0_i32 = arith.constant 0 : i32
    %c0_i32_0 = arith.constant 0 : i32
    %c0_i32_1 = arith.constant 0 : i32
    return %arg0, %c0_i32, %c0_i32_0 : i32, i32, i32
  }
  func.func @transform_1(%arg0: i32) -> (i32, i32) {
    %c0_i32 = arith.constant 0 : i32
    %c0_i32_0 = arith.constant 0 : i32
    %c0_i32_1 = arith.constant 0 : i32
    return %c0_i32, %c0_i32_0 : i32, i32
  }
  func.func @transform_2(%arg0: i32) -> (i32, i32) {
    %c0_i32 = arith.constant 0 : i32
    %c0_i32_0 = arith.constant 0 : i32
    %c0_i32_1 = arith.constant 0 : i32
    return %c0_i32, %c0_i32_0 : i32, i32
  }
  func.func @transform_3(%arg0: i32) -> (i32, i32) {
    %c0_i32 = arith.constant 0 : i32
    %c0_i32_0 = arith.constant 0 : i32
    %c0_i32_1 = arith.constant 0 : i32
    return %c0_i32, %c0_i32_0 : i32, i32
  }
  func.func @transform_4(%arg0: i32) -> (i32, i32) {
    %c0_i32 = arith.constant 0 : i32
    %c0_i32_0 = arith.constant 0 : i32
    %c0_i32_1 = arith.constant 0 : i32
    return %c0_i32, %c0_i32_0 : i32, i32
  }
  func.func @transform_5(%arg0: i32) -> (i32, i32) {
    %c0_i32 = arith.constant 0 : i32
    %c0_i32_0 = arith.constant 0 : i32
    %c0_i32_1 = arith.constant 0 : i32
    return %c0_i32, %c0_i32_0 : i32, i32
  }
  func.func @transform_6(%arg0: i32) -> (i32, i32) {
    %c0_i32 = arith.constant 0 : i32
    %c0_i32_0 = arith.constant 0 : i32
    %c0_i32_1 = arith.constant 0 : i32
    return %c0_i32, %c0_i32_0 : i32, i32
  }
  func.func @transform_7(%arg0: i32) -> (i32, i32) {
    %c0_i32 = arith.constant 0 : i32
    %c0_i32_0 = arith.constant 0 : i32
    %c0_i32_1 = arith.constant 0 : i32
    return %c0_i32, %c0_i32_0 : i32, i32
  }
  func.func @transform_8(%arg0: i32) -> (i32, i32) {
    %c0_i32 = arith.constant 0 : i32
    %c0_i32_0 = arith.constant 0 : i32
    %c0_i32_1 = arith.constant 0 : i32
    return %c0_i32, %c0_i32_0 : i32, i32
  }
  func.func @transform_9(%arg0: i32) -> (i32, i32) {
    %c0_i32 = arith.constant 0 : i32
    %c0_i32_0 = arith.constant 0 : i32
    %c0_i32_1 = arith.constant 0 : i32
    return %c0_i32, %c0_i32_0 : i32, i32
  }
  func.func @transform_10(%arg0: i32) -> (i32, i32) {
    %c0_i32 = arith.constant 0 : i32
    %c0_i32_0 = arith.constant 0 : i32
    %c0_i32_1 = arith.constant 0 : i32
    return %c0_i32, %c0_i32_0 : i32, i32
  }
  func.func @transform_11(%arg0: i32) -> (i32, i32) {
    %c0_i32 = arith.constant 0 : i32
    %c0_i32_0 = arith.constant 0 : i32
    %c0_i32_1 = arith.constant 0 : i32
    return %c0_i32, %c0_i32_0 : i32, i32
  }
  func.func @transform_12(%arg0: i32) -> (i32, i32) {
    %c0_i32 = arith.constant 0 : i32
    %c0_i32_0 = arith.constant 0 : i32
    %c0_i32_1 = arith.constant 0 : i32
    return %c0_i32, %c0_i32_0 : i32, i32
  }
  func.func @transform_13(%arg0: i32) -> (i32, i32) {
    %c0_i32 = arith.constant 0 : i32
    %c0_i32_0 = arith.constant 0 : i32
    %c0_i32_1 = arith.constant 0 : i32
    return %c0_i32, %c0_i32_0 : i32, i32
  }
  func.func @transform_14(%arg0: i32) -> (i32, i32, i32) {
    %c0_i32 = arith.constant 0 : i32
    %c0_i32_0 = arith.constant 0 : i32
    %c0_i32_1 = arith.constant 0 : i32
    return %arg0, %c0_i32, %c0_i32_0 : i32, i32, i32
  }
}

</mosaic_0001>

<llo_original>
// kernel: tile.10
$region0: #{tile.10}
  #allocation0 [shape = 's32[1]{0}', space=sflag, size = 0x4, scoped, tag = 'scoped memory for tile.10']
  %s0 = inlined_call_operand.vmem [shape: f32[3], index: 0, kind: input, shape index: {}]
  %s1 = inlined_call_operand.vmem [shape: f32[196,3], index: 1, kind: output, shape index: {}]
  // Predicated region
  $region2: #{tile.10} parent=0 // pred_check
    _
  $region3: #{tile.10} parent=0 // pred_check_branch
    %3 = sbr.rel (0) target = $region5
  $region4: #{tile.10} parent=0 // pred_region
    _
  $region5: #{tile.10} parent=0 // pred_fallthru
    _
  %v4 = vld [vmem:[%s0] ss:$0 sm:$0xff]
  %5 = vst [vmem:[%s1] sm:$0xff] %v4
  %s6 = scalar_lea.vmem %s1, 8
  %7 = vst [vmem:[%s6] sm:$0xff] %v4
  %s8 = scalar_lea.vmem %s1, 16
  %9 = vst [vmem:[%s8] sm:$0xff] %v4
  %s10 = scalar_lea.vmem %s1, 24
  %11 = vst [vmem:[%s10] sm:$0xff] %v4
  %s12 = scalar_lea.vmem %s1, 32
  %13 = vst [vmem:[%s12] sm:$0xff] %v4
  %s14 = scalar_lea.vmem %s1, 40
  %15 = vst [vmem:[%s14] sm:$0xff] %v4
  %s16 = scalar_lea.vmem %s1, 48
  %17 = vst [vmem:[%s16] sm:$0xff] %v4
  %s18 = scalar_lea.vmem %s1, 56
  %19 = vst [vmem:[%s18] sm:$0xff] %v4
  %s20 = scalar_lea.vmem %s1, 64
  %21 = vst [vmem:[%s20] sm:$0xff] %v4
  %s22 = scalar_lea.vmem %s1, 72
  %23 = vst [vmem:[%s22] sm:$0xff] %v4
  %s24 = scalar_lea.vmem %s1, 80
  %25 = vst [vmem:[%s24] sm:$0xff] %v4
  %s26 = scalar_lea.vmem %s1, 88
  %27 = vst [vmem:[%s26] sm:$0xff] %v4
  %s28 = scalar_lea.vmem %s1, 96
  %29 = vst [vmem:[%s28] sm:$0xff] %v4
  %s30 = scalar_lea.vmem %s1, 104
  %31 = vst [vmem:[%s30] sm:$0xff] %v4
  %s32 = scalar_lea.vmem %s1, 112
  %33 = vst [vmem:[%s32] sm:$0xff] %v4
  %s34 = scalar_lea.vmem %s1, 120
  %35 = vst [vmem:[%s34] sm:$0xff] %v4
  %s36 = scalar_lea.vmem %s1, 128
  %37 = vst [vmem:[%s36] sm:$0xff] %v4
  %s38 = scalar_lea.vmem %s1, 136
  %39 = vst [vmem:[%s38] sm:$0xff] %v4
  %s40 = scalar_lea.vmem %s1, 144
  %41 = vst [vmem:[%s40] sm:$0xff] %v4
  %s42 = scalar_lea.vmem %s1, 152
  %43 = vst [vmem:[%s42] sm:$0xff] %v4
  %s44 = scalar_lea.vmem %s1, 160
  %45 = vst [vmem:[%s44] sm:$0xff] %v4
  %s46 = scalar_lea.vmem %s1, 168
  %47 = vst [vmem:[%s46] sm:$0xff] %v4
  %s48 = scalar_lea.vmem %s1, 176
  %49 = vst [vmem:[%s48] sm:$0xff] %v4
  %s50 = scalar_lea.vmem %s1, 184
  %51 = vst [vmem:[%s50] sm:$0xff] %v4
  %s52 = scalar_lea.vmem %s1, 192
  %53 = vst [vmem:[%s52] sm:$0xff] %v4

// kernel: mul.41
$region0: #{mul.41}
  %s0 = inlined_call_operand.vmem [shape: f32[196,3], index: 0, kind: input, shape index: {}]
  %s1 = inlined_call_operand.vmem [shape: f32[588], index: 1, kind: output, shape index: {}]
  %v2 = vld [vmem:[%s0] sm:$0x1]
  %s3 = scalar_lea.vmem %s0, 127
  %v4 = vld [vmem:[%s3] sm:$0x2]
  %vm5 = vcmask 1041409
  %v6 = vsel %vm5, %v4, %v2
  %vm7 = vcmask 23552
  %8 = vst.msk [vmem:[%s1] ss:$3 sm:$0x3] %vm7, %v6
  %s9 = scalar_lea.vmem %s0, 85
  %v10 = vld [vmem:[%s9] sm:$0x1]
  %s11 = scalar_lea.vmem %s0, 85
  %v12 = vld [vmem:[%s11] sm:$0x1]
  %vm13 = vcmask 7168
  %v14 = vsel %vm13, %v12, %v10
  %15 = vrot.lane.b32.xlu0 %v14, 127
  %v16 = vpop.permute.xlu0 %15
  %vm17 = vcmask 15360
  %s18 = scalar_lea.vmem %s1, 2
  %19 = vst.msk [vmem:[%s18] sm:$0x1] %vm17, %v16
  %vm20 = vcmask 1048568
  %s21 = scalar_lea.vmem %s1, 1
  %22 = vst.msk [vmem:[%s21] sm:$0x1] %vm20, %v16
  %s23 = scalar_lea.vmem %s0, 42
  %v24 = vld [vmem:[%s23] sm:$0x1]
  %s25 = scalar_lea.vmem %s0, 169
  %v26 = vld [vmem:[%s25] sm:$0x2]
  %vm27 = vcmask 1041409
  %v28 = vsel %vm27, %v26, %v24
  %s29 = scalar_lea.vmem %s0, 42
  %v30 = vld [vmem:[%s29] sm:$0x1]
  %s31 = scalar_lea.vmem %s0, 169
  %v32 = vld [vmem:[%s31] sm:$0x2]
  %vm33 = vcmask 1041409
  %v34 = vsel %vm33, %v32, %v30
  %vm35 = vcmask 15360
  %v36 = vsel %vm35, %v34, %v28
  %37 = vrot.lane.b32.xlu0 %v36, 126
  %v38 = vpop.permute.xlu0 %37
  %vm39 = vcmask 7168
  %s40 = scalar_lea.vmem %s1, 1
  %41 = vst.msk [vmem:[%s40] ss:$3 sm:$0x3] %vm39, %v38
  %vm42 = vcmask 1048560
  %43 = vst.msk [vmem:[%s1] ss:$3 sm:$0x3] %vm42, %v38
  %s44 = scalar_lea.vmem %s0, 127
  %v45 = vld [vmem:[%s44] sm:$0x1]
  %46 = vrot.lane.b32.xlu0 %v45, 125
  %v47 = vpop.permute.xlu0 %46
  %vm48 = vcmask 1048552
  %s49 = scalar_lea.vmem %s1, 2
  %50 = vst.msk [vmem:[%s49] sm:$0x1] %vm48, %v47
  %s51 = scalar_lea.vmem %s0, 84
  %v52 = vld [vmem:[%s51] sm:$0x1]
  %53 = vrot.lane.b32.xlu0 %v52, 124
  %v54 = vpop.permute.xlu0 %53
  %vm55 = vcmask 1040352
  %s56 = scalar_lea.vmem %s1, 1
  %57 = vst.msk [vmem:[%s56] sm:$0x1] %vm55, %v54
  %s58 = scalar_lea.vmem %s0, 41
  %v59 = vld [vmem:[%s58] sm:$0x1]
  %s60 = scalar_lea.vmem %s0, 168
  %v61 = vld [vmem:[%s60] sm:$0x2]
  %vm62 = vcmask 1041409
  %v63 = vsel %vm62, %v61, %v59
  %64 = vrot.lane.b32.xlu0 %v63, 123
  %v65 = vpop.permute.xlu0 %64
  %vm66 = vcmask 1032152
  %67 = vst.msk [vmem:[%s1] ss:$3 sm:$0x3] %vm66, %v65
  %s68 = scalar_lea.vmem %s0, 126
  %v69 = vld [vmem:[%s68] sm:$0x1]
  %70 = vrot.lane.b32.xlu0 %v69, 122
  %v71 = vpop.permute.xlu0 %70
  %vm72 = vcmask 1023952
  %s73 = scalar_lea.vmem %s1, 2
  %74 = vst.msk [vmem:[%s73] sm:$0x1] %vm72, %v71
  %s75 = scalar_lea.vmem %s0, 83
  %v76 = vld [vmem:[%s75] sm:$0x1]
  %77 = vrot.lane.b32.xlu0 %v76, 121
  %v78 = vpop.permute.xlu0 %77
  %vm79 = vcmask 1015752
  %s80 = scalar_lea.vmem %s1, 1
  %81 = vst.msk [vmem:[%s80] sm:$0x1] %vm79, %v78
  %s82 = scalar_lea.vmem %s0, 40
  %v83 = vld [vmem:[%s82] sm:$0x1]
  %s84 = scalar_lea.vmem %s0, 167
  %v85 = vld [vmem:[%s84] sm:$0x2]
  %vm86 = vcmask 1041409
  %v87 = vsel %vm86, %v85, %v83
  %88 = vrot.lane.b32.xlu0 %v87, 120
  %v89 = vpop.permute.xlu0 %88
  %vm90 = vcmask 1007552
  %91 = vst.msk [vmem:[%s1] ss:$3 sm:$0x3] %vm90, %v89
  %s92 = scalar_lea.vmem %s0, 125
  %v93 = vld [vmem:[%s92] sm:$0x1]
  %94 = vrot.lane.b32.xlu0 %v93, 119
  %v95 = vpop.permute.xlu0 %94
  %vm96 = vcmask 999352
  %s97 = scalar_lea.vmem %s1, 2
  %98 = vst.msk [vmem:[%s97] sm:$0x1] %vm96, %v95
  %s99 = scalar_lea.vmem %s0, 82
  %v100 = vld [vmem:[%s99] sm:$0x1]
  %101 = vrot.lane.b32.xlu0 %v100, 118
  %v102 = vpop.permute.xlu0 %101
  %vm103 = vcmask 991152
  %s104 = scalar_lea.vmem %s1, 1
  %105 = vst.msk [vmem:[%s104] sm:$0x1] %vm103, %v102
  %s106 = scalar_lea.vmem %s0, 39
  %v107 = vld [vmem:[%s106] sm:$0x1]
  %s108 = scalar_lea.vmem %s0, 166
  %v109 = vld [vmem:[%s108] sm:$0x2]
  %vm110 = vcmask 1041409
  %v111 = vsel %vm110, %v109, %v107
  %112 = vrot.lane.b32.xlu0 %v111, 117
  %v113 = vpop.permute.xlu0 %112
  %vm114 = vcmask 982952
  %115 = vst.msk [vmem:[%s1] ss:$3 sm:$0x3] %vm114, %v113
  %s116 = scalar_lea.vmem %s0, 124
  %v117 = vld [vmem:[%s116] sm:$0x1]
  %118 = vrot.lane.b32.xlu0 %v117, 116
  %v119 = vpop.permute.xlu0 %118
  %vm120 = vcmask 974752
  %s121 = scalar_lea.vmem %s1, 2
  %122 = vst.msk [vmem:[%s121] sm:$0x1] %vm120, %v119
  %s123 = scalar_lea.vmem %s0, 81
  %v124 = vld [vmem:[%s123] sm:$0x1]
  %125 = vrot.lane.b32.xlu0 %v124, 115
  %v126 = vpop.permute.xlu0 %125
  %vm127 = vcmask 966552
  %s128 = scalar_lea.vmem %s1, 1
  %129 = vst.msk [vmem:[%s128] sm:$0x1] %vm127, %v126
  %s130 = scalar_lea.vmem %s0, 38
  %v131 = vld [vmem:[%s130] sm:$0x1]
  %s132 = scalar_lea.vmem %s0, 165
  %v133 = vld [vmem:[%s132] sm:$0x2]
  %vm134 = vcmask 1041409
  %v135 = vsel %vm134, %v133, %v131
  %136 = vrot.lane.b32.xlu0 %v135, 114
  %v137 = vpop.permute.xlu0 %136
  %vm138 = vcmask 958352
  %139 = vst.msk [vmem:[%s1] ss:$3 sm:$0x3] %vm138, %v137
  %s140 = scalar_lea.vmem %s0, 123
  %v141 = vld [vmem:[%s140] sm:$0x1]
  %142 = vrot.lane.b32.xlu0 %v141, 113
  %v143 = vpop.permute.xlu0 %142
  %vm144 = vcmask 950152
  %s145 = scalar_lea.vmem %s1, 2
  %146 = vst.msk [vmem:[%s145] sm:$0x1] %vm144, %v143
  %s147 = scalar_lea.vmem %s0, 80
  %v148 = vld [vmem:[%s147] sm:$0x1]
  %149 = vrot.lane.b32.xlu0 %v148, 112
  %v150 = vpop.permute.xlu0 %149
  %vm151 = vcmask 941952
  %s152 = scalar_lea.vmem %s1, 1
  %153 = vst.msk [vmem:[%s152] sm:$0x1] %vm151, %v150
  %s154 = scalar_lea.vmem %s0, 37
  %v155 = vld [vmem:[%s154] sm:$0x1]
  %s156 = scalar_lea.vmem %s0, 164
  %v157 = vld [vmem:[%s156] sm:$0x2]
  %vm158 = vcmask 1041409
  %v159 = vsel %vm158, %v157, %v155
  %160 = vrot.lane.b32.xlu0 %v159, 111
  %v161 = vpop.permute.xlu0 %160
  %vm162 = vcmask 933752
  %163 = vst.msk [vmem:[%s1] ss:$3 sm:$0x3] %vm162, %v161
  %s164 = scalar_lea.vmem %s0, 122
  %v165 = vld [vmem:[%s164] sm:$0x1]
  %166 = vrot.lane.b32.xlu0 %v165, 110
  %v167 = vpop.permute.xlu0 %166
  %vm168 = vcmask 925552
  %s169 = scalar_lea.vmem %s1, 2
  %170 = vst.msk [vmem:[%s169] sm:$0x1] %vm168, %v167
  %s171 = scalar_lea.vmem %s0, 79
  %v172 = vld [vmem:[%s171] sm:$0x1]
  %173 = vrot.lane.b32.xlu0 %v172, 109
  %v174 = vpop.permute.xlu0 %173
  %vm175 = vcmask 917352
  %s176 = scalar_lea.vmem %s1, 1
  %177 = vst.msk [vmem:[%s176] sm:$0x1] %vm175, %v174
  %s178 = scalar_lea.vmem %s0, 36
  %v179 = vld [vmem:[%s178] sm:$0x1]
  %s180 = scalar_lea.vmem %s0, 163
  %v181 = vld [vmem:[%s180] sm:$0x2]
  %vm182 = vcmask 1041409
  %v183 = vsel %vm182, %v181, %v179
  %184 = vrot.lane.b32.xlu0 %v183, 108
  %v185 = vpop.permute.xlu0 %184
  %vm186 = vcmask 909152
  %187 = vst.msk [vmem:[%s1] ss:$3 sm:$0x3] %vm186, %v185
  %s188 = scalar_lea.vmem %s0, 121
  %v189 = vld [vmem:[%s188] sm:$0x1]
  %190 = vrot.lane.b32.xlu0 %v189, 107
  %v191 = vpop.permute.xlu0 %190
  %vm192 = vcmask 900952
  %s193 = scalar_lea.vmem %s1, 2
  %194 = vst.msk [vmem:[%s193] sm:$0x1] %vm192, %v191
  %s195 = scalar_lea.vmem %s0, 78
  %v196 = vld [vmem:[%s195] sm:$0x1]
  %197 = vrot.lane.b32.xlu0 %v196, 106
  %v198 = vpop.permute.xlu0 %197
  %vm199 = vcmask 892752
  %s200 = scalar_lea.vmem %s1, 1
  %201 = vst.msk [vmem:[%s200] sm:$0x1] %vm199, %v198
  %s202 = scalar_lea.vmem %s0, 35
  %v203 = vld [vmem:[%s202] sm:$0x1]
  %s204 = scalar_lea.vmem %s0, 162
  %v205 = vld [vmem:[%s204] sm:$0x2]
  %vm206 = vcmask 1041409
  %v207 = vsel %vm206, %v205, %v203
  %208 = vrot.lane.b32.xlu0 %v207, 105
  %v209 = vpop.permute.xlu0 %208
  %vm210 = vcmask 884552
  %211 = vst.msk [vmem:[%s1] ss:$3 sm:$0x3] %vm210, %v209
  %s212 = scalar_lea.vmem %s0, 120
  %v213 = vld [vmem:[%s212] sm:$0x1]
  %214 = vrot.lane.b32.xlu0 %v213, 104
  %v215 = vpop.permute.xlu0 %214
  %vm216 = vcmask 876352
  %s217 = scalar_lea.vmem %s1, 2
  %218 = vst.msk [vmem:[%s217] sm:$0x1] %vm216, %v215
  %s219 = scalar_lea.vmem %s0, 77
  %v220 = vld [vmem:[%s219] sm:$0x1]
  %221 = vrot.lane.b32.xlu0 %v220, 103
  %v222 = vpop.permute.xlu0 %221
  %vm223 = vcmask 868152
  %s224 = scalar_lea.vmem %s1, 1
  %225 = vst.msk [vmem:[%s224] sm:$0x1] %vm223, %v222
  %s226 = scalar_lea.vmem %s0, 34
  %v227 = vld [vmem:[%s226] sm:$0x1]
  %s228 = scalar_lea.vmem %s0, 161
  %v229 = vld [vmem:[%s228] sm:$0x2]
  %vm230 = vcmask 1041409
  %v231 = vsel %vm230, %v229, %v227
  %232 = vrot.lane.b32.xlu0 %v231, 102
  %v233 = vpop.permute.xlu0 %232
  %vm234 = vcmask 859952
  %235 = vst.msk [vmem:[%s1] ss:$3 sm:$0x3] %vm234, %v233
  %s236 = scalar_lea.vmem %s0, 119
  %v237 = vld [vmem:[%s236] sm:$0x1]
  %238 = vrot.lane.b32.xlu0 %v237, 101
  %v239 = vpop.permute.xlu0 %238
  %vm240 = vcmask 851752
  %s241 = scalar_lea.vmem %s1, 2
  %242 = vst.msk [vmem:[%s241] sm:$0x1] %vm240, %v239
  %s243 = scalar_lea.vmem %s0, 76
  %v244 = vld [vmem:[%s243] sm:$0x1]
  %245 = vrot.lane.b32.xlu0 %v244, 100
  %v246 = vpop.permute.xlu0 %245
  %vm247 = vcmask 843552
  %s248 = scalar_lea.vmem %s1, 1
  %249 = vst.msk [vmem:[%s248] sm:$0x1] %vm247, %v246
  %s250 = scalar_lea.vmem %s0, 33
  %v251 = vld [vmem:[%s250] sm:$0x1]
  %s252 = scalar_lea.vmem %s0, 160
  %v253 = vld [vmem:[%s252] sm:$0x2]
  %vm254 = vcmask 1041409
  %v255 = vsel %vm254, %v253, %v251
  %256 = vrot.lane.b32.xlu0 %v255, 99
  %v257 = vpop.permute.xlu0 %256
  %vm258 = vcmask 835352
  %259 = vst.msk [vmem:[%s1] ss:$3 sm:$0x3] %vm258, %v257
  %s260 = scalar_lea.vmem %s0, 118
  %v261 = vld [vmem:[%s260] sm:$0x1]
  %262 = vrot.lane.b32.xlu0 %v261, 98
  %v263 = vpop.permute.xlu0 %262
  %vm264 = vcmask 827152
  %s265 = scalar_lea.vmem %s1, 2
  %266 = vst.msk [vmem:[%s265] sm:$0x1] %vm264, %v263
  %s267 = scalar_lea.vmem %s0, 75
  %v268 = vld [vmem:[%s267] sm:$0x1]
  %269 = vrot.lane.b32.xlu0 %v268, 97
  %v270 = vpop.permute.xlu0 %269
  %vm271 = vcmask 818952
  %s272 = scalar_lea.vmem %s1, 1
  %273 = vst.msk [vmem:[%s272] sm:$0x1] %vm271, %v270
  %s274 = scalar_lea.vmem %s0, 32
  %v275 = vld [vmem:[%s274] sm:$0x1]
  %s276 = scalar_lea.vmem %s0, 159
  %v277 = vld [vmem:[%s276] sm:$0x2]
  %vm278 = vcmask 1041409
  %v279 = vsel %vm278, %v277, %v275
  %280 = vrot.lane.b32.xlu0 %v279, 96
  %v281 = vpop.permute.xlu0 %280
  %vm282 = vcmask 810752
  %283 = vst.msk [vmem:[%s1] ss:$3 sm:$0x3] %vm282, %v281
  %s284 = scalar_lea.vmem %s0, 117
  %v285 = vld [vmem:[%s284] sm:$0x1]
  %286 = vrot.lane.b32.xlu0 %v285, 95
  %v287 = vpop.permute.xlu0 %286
  %vm288 = vcmask 802552
  %s289 = scalar_lea.vmem %s1, 2
  %290 = vst.msk [vmem:[%s289] sm:$0x1] %vm288, %v287
  %s291 = scalar_lea.vmem %s0, 74
  %v292 = vld [vmem:[%s291] sm:$0x1]
  %293 = vrot.lane.b32.xlu0 %v292, 94
  %v294 = vpop.permute.xlu0 %293
  %vm295 = vcmask 794352
  %s296 = scalar_lea.vmem %s1, 1
  %297 = vst.msk [vmem:[%s296] sm:$0x1] %vm295, %v294
  %s298 = scalar_lea.vmem %s0, 31
  %v299 = vld [vmem:[%s298] sm:$0x1]
  %s300 = scalar_lea.vmem %s0, 158
  %v301 = vld [vmem:[%s300] sm:$0x2]
  %vm302 = vcmask 1041409
  %v303 = vsel %vm302, %v301, %v299
  %304 = vrot.lane.b32.xlu0 %v303, 93
  %v305 = vpop.permute.xlu0 %304
  %vm306 = vcmask 786152
  %307 = vst.msk [vmem:[%s1] ss:$3 sm:$0x3] %vm306, %v305
  %s308 = scalar_lea.vmem %s0, 116
  %v309 = vld [vmem:[%s308] sm:$0x1]
  %310 = vrot.lane.b32.xlu0 %v309, 92
  %v311 = vpop.permute.xlu0 %310
  %vm312 = vcmask 777952
  %s313 = scalar_lea.vmem %s1, 2
  %314 = vst.msk [vmem:[%s313] sm:$0x1] %vm312, %v311
  %s315 = scalar_lea.vmem %s0, 73
  %v316 = vld [vmem:[%s315] sm:$0x1]
  %317 = vrot.lane.b32.xlu0 %v316, 91
  %v318 = vpop.permute.xlu0 %317
  %vm319 = vcmask 769752
  %s320 = scalar_lea.vmem %s1, 1
  %321 = vst.msk [vmem:[%s320] sm:$0x1] %vm319, %v318
  %s322 = scalar_lea.vmem %s0, 30
  %v323 = vld [vmem:[%s322] sm:$0x1]
  %s324 = scalar_lea.vmem %s0, 157
  %v325 = vld [vmem:[%s324] sm:$0x2]
  %vm326 = vcmask 1041409
  %v327 = vsel %vm326, %v325, %v323
  %328 = vrot.lane.b32.xlu0 %v327, 90
  %v329 = vpop.permute.xlu0 %328
  %vm330 = vcmask 761552
  %331 = vst.msk [vmem:[%s1] ss:$3 sm:$0x3] %vm330, %v329
  %s332 = scalar_lea.vmem %s0, 115
  %v333 = vld [vmem:[%s332] sm:$0x1]
  %334 = vrot.lane.b32.xlu0 %v333, 89
  %v335 = vpop.permute.xlu0 %334
  %vm336 = vcmask 753352
  %s337 = scalar_lea.vmem %s1, 2
  %338 = vst.msk [vmem:[%s337] sm:$0x1] %vm336, %v335
  %s339 = scalar_lea.vmem %s0, 72
  %v340 = vld [vmem:[%s339] sm:$0x1]
  %341 = vrot.lane.b32.xlu0 %v340, 88
  %v342 = vpop.permute.xlu0 %341
  %vm343 = vcmask 745152
  %s344 = scalar_lea.vmem %s1, 1
  %345 = vst.msk [vmem:[%s344] sm:$0x1] %vm343, %v342
  %s346 = scalar_lea.vmem %s0, 29
  %v347 = vld [vmem:[%s346] sm:$0x1]
  %s348 = scalar_lea.vmem %s0, 156
  %v349 = vld [vmem:[%s348] sm:$0x2]
  %vm350 = vcmask 1041409
  %v351 = vsel %vm350, %v349, %v347
  %352 = vrot.lane.b32.xlu0 %v351, 87
  %v353 = vpop.permute.xlu0 %352
  %vm354 = vcmask 736952
  %355 = vst.msk [vmem:[%s1] ss:$3 sm:$0x3] %vm354, %v353
  %s356 = scalar_lea.vmem %s0, 114
  %v357 = vld [vmem:[%s356] sm:$0x1]
  %358 = vrot.lane.b32.xlu0 %v357, 86
  %v359 = vpop.permute.xlu0 %358
  %vm360 = vcmask 728752
  %s361 = scalar_lea.vmem %s1, 2
  %362 = vst.msk [vmem:[%s361] sm:$0x1] %vm360, %v359
  %s363 = scalar_lea.vmem %s0, 71
  %v364 = vld [vmem:[%s363] sm:$0x1]
  %365 = vrot.lane.b32.xlu0 %v364, 85
  %v366 = vpop.permute.xlu0 %365
  %vm367 = vcmask 720552
  %s368 = scalar_lea.vmem %s1, 1
  %369 = vst.msk [vmem:[%s368] sm:$0x1] %vm367, %v366
  %s370 = scalar_lea.vmem %s0, 28
  %v371 = vld [vmem:[%s370] sm:$0x1]
  %s372 = scalar_lea.vmem %s0, 155
  %v373 = vld [vmem:[%s372] sm:$0x2]
  %vm374 = vcmask 1041409
  %v375 = vsel %vm374, %v373, %v371
  %376 = vrot.lane.b32.xlu0 %v375, 84
  %v377 = vpop.permute.xlu0 %376
  %vm378 = vcmask 712352
  %379 = vst.msk [vmem:[%s1] ss:$3 sm:$0x3] %vm378, %v377
  %s380 = scalar_lea.vmem %s0, 113
  %v381 = vld [vmem:[%s380] sm:$0x1]
  %382 = vrot.lane.b32.xlu0 %v381, 83
  %v383 = vpop.permute.xlu0 %382
  %vm384 = vcmask 704152
  %s385 = scalar_lea.vmem %s1, 2
  %386 = vst.msk [vmem:[%s385] sm:$0x1] %vm384, %v383
  %s387 = scalar_lea.vmem %s0, 70
  %v388 = vld [vmem:[%s387] sm:$0x1]
  %389 = vrot.lane.b32.xlu0 %v388, 82
  %v390 = vpop.permute.xlu0 %389
  %vm391 = vcmask 695952
  %s392 = scalar_lea.vmem %s1, 1
  %393 = vst.msk [vmem:[%s392] sm:$0x1] %vm391, %v390
  %s394 = scalar_lea.vmem %s0, 27
  %v395 = vld [vmem:[%s394] sm:$0x1]
  %s396 = scalar_lea.vmem %s0, 154
  %v397 = vld [vmem:[%s396] sm:$0x2]
  %vm398 = vcmask 1041409
  %v399 = vsel %vm398, %v397, %v395
  %400 = vrot.lane.b32.xlu0 %v399, 81
  %v401 = vpop.permute.xlu0 %400
  %vm402 = vcmask 687752
  %403 = vst.msk [vmem:[%s1] ss:$3 sm:$0x3] %vm402, %v401
  %s404 = scalar_lea.vmem %s0, 112
  %v405 = vld [vmem:[%s404] sm:$0x1]
  %406 = vrot.lane.b32.xlu0 %v405, 80
  %v407 = vpop.permute.xlu0 %406
  %vm408 = vcmask 679552
  %s409 = scalar_lea.vmem %s1, 2
  %410 = vst.msk [vmem:[%s409] sm:$0x1] %vm408, %v407
  %s411 = scalar_lea.vmem %s0, 69
  %v412 = vld [vmem:[%s411] sm:$0x1]
  %413 = vrot.lane.b32.xlu0 %v412, 79
  %v414 = vpop.permute.xlu0 %413
  %vm415 = vcmask 671352
  %s416 = scalar_lea.vmem %s1, 1
  %417 = vst.msk [vmem:[%s416] sm:$0x1] %vm415, %v414
  %s418 = scalar_lea.vmem %s0, 26
  %v419 = vld [vmem:[%s418] sm:$0x1]
  %s420 = scalar_lea.vmem %s0, 153
  %v421 = vld [vmem:[%s420] sm:$0x2]
  %vm422 = vcmask 1041409
  %v423 = vsel %vm422, %v421, %v419
  %424 = vrot.lane.b32.xlu0 %v423, 78
  %v425 = vpop.permute.xlu0 %424
  %vm426 = vcmask 663152
  %427 = vst.msk [vmem:[%s1] ss:$3 sm:$0x3] %vm426, %v425
  %s428 = scalar_lea.vmem %s0, 111
  %v429 = vld [vmem:[%s428] sm:$0x1]
  %430 = vrot.lane.b32.xlu0 %v429, 77
  %v431 = vpop.permute.xlu0 %430
  %vm432 = vcmask 654952
  %s433 = scalar_lea.vmem %s1, 2
  %434 = vst.msk [vmem:[%s433] sm:$0x1] %vm432, %v431
  %s435 = scalar_lea.vmem %s0, 68
  %v436 = vld [vmem:[%s435] sm:$0x1]
  %437 = vrot.lane.b32.xlu0 %v436, 76
  %v438 = vpop.permute.xlu0 %437
  %vm439 = vcmask 646752
  %s440 = scalar_lea.vmem %s1, 1
  %441 = vst.msk [vmem:[%s440] sm:$0x1] %vm439, %v438
  %s442 = scalar_lea.vmem %s0, 25
  %v443 = vld [vmem:[%s442] sm:$0x1]
  %s444 = scalar_lea.vmem %s0, 152
  %v445 = vld [vmem:[%s444] sm:$0x2]
  %vm446 = vcmask 1041409
  %v447 = vsel %vm446, %v445, %v443
  %448 = vrot.lane.b32.xlu0 %v447, 75
  %v449 = vpop.permute.xlu0 %448
  %vm450 = vcmask 638552
  %451 = vst.msk [vmem:[%s1] ss:$3 sm:$0x3] %vm450, %v449
  %s452 = scalar_lea.vmem %s0, 110
  %v453 = vld [vmem:[%s452] sm:$0x1]
  %454 = vrot.lane.b32.xlu0 %v453, 74
  %v455 = vpop.permute.xlu0 %454
  %vm456 = vcmask 630352
  %s457 = scalar_lea.vmem %s1, 2
  %458 = vst.msk [vmem:[%s457] sm:$0x1] %vm456, %v455
  %s459 = scalar_lea.vmem %s0, 67
  %v460 = vld [vmem:[%s459] sm:$0x1]
  %s461 = scalar_lea.vmem %s0, 194
  %v462 = vld [vmem:[%s461] sm:$0x2]
  %vm463 = vcmask 1041409
  %v464 = vsel %vm463, %v462, %v460
  %465 = vrot.lane.b32.xlu0 %v464, 73
  %v466 = vpop.permute.xlu0 %465
  %vm467 = vcmask 622152
  %s468 = scalar_lea.vmem %s1, 1
  %469 = vst.msk [vmem:[%s468] ss:$3 sm:$0x3] %vm467, %v466
  %s470 = scalar_lea.vmem %s0, 24
  %v471 = vld [vmem:[%s470] sm:$0x1]
  %s472 = scalar_lea.vmem %s0, 151
  %v473 = vld [vmem:[%s472] sm:$0x2]
  %vm474 = vcmask 1041409
  %v475 = vsel %vm474, %v473, %v471
  %476 = vrot.lane.b32.xlu0 %v475, 72
  %v477 = vpop.permute.xlu0 %476
  %vm478 = vcmask 613952
  %479 = vst.msk [vmem:[%s1] ss:$3 sm:$0x3] %vm478, %v477
  %s480 = scalar_lea.vmem %s0, 109
  %v481 = vld [vmem:[%s480] sm:$0x1]
  %482 = vrot.lane.b32.xlu0 %v481, 71
  %v483 = vpop.permute.xlu0 %482
  %vm484 = vcmask 605752
  %s485 = scalar_lea.vmem %s1, 2
  %486 = vst.msk [vmem:[%s485] sm:$0x1] %vm484, %v483
  %s487 = scalar_lea.vmem %s0, 66
  %v488 = vld [vmem:[%s487] sm:$0x1]
  %s489 = scalar_lea.vmem %s0, 193
  %v490 = vld [vmem:[%s489] sm:$0x2]
  %vm491 = vcmask 1041409
  %v492 = vsel %vm491, %v490, %v488
  %493 = vrot.lane.b32.xlu0 %v492, 70
  %v494 = vpop.permute.xlu0 %493
  %vm495 = vcmask 597552
  %s496 = scalar_lea.vmem %s1, 1
  %497 = vst.msk [vmem:[%s496] ss:$3 sm:$0x3] %vm495, %v494
  %s498 = scalar_lea.vmem %s0, 23
  %v499 = vld [vmem:[%s498] sm:$0x1]
  %s500 = scalar_lea.vmem %s0, 150
  %v501 = vld [vmem:[%s500] sm:$0x2]
  %vm502 = vcmask 1041409
  %v503 = vsel %vm502, %v501, %v499
  %504 = vrot.lane.b32.xlu0 %v503, 69
  %v505 = vpop.permute.xlu0 %504
  %vm506 = vcmask 589352
  %507 = vst.msk [vmem:[%s1] ss:$3 sm:$0x3] %vm506, %v505
  %s508 = scalar_lea.vmem %s0, 108
  %v509 = vld [vmem:[%s508] sm:$0x1]
  %510 = vrot.lane.b32.xlu0 %v509, 68
  %v511 = vpop.permute.xlu0 %510
  %vm512 = vcmask 581152
  %s513 = scalar_lea.vmem %s1, 2
  %514 = vst.msk [vmem:[%s513] sm:$0x1] %vm512, %v511
  %s515 = scalar_lea.vmem %s0, 65
  %v516 = vld [vmem:[%s515] sm:$0x1]
  %s517 = scalar_lea.vmem %s0, 192
  %v518 = vld [vmem:[%s517] sm:$0x2]
  %vm519 = vcmask 1041409
  %v520 = vsel %vm519, %v518, %v516
  %521 = vrot.lane.b32.xlu0 %v520, 67
  %v522 = vpop.permute.xlu0 %521
  %vm523 = vcmask 572952
  %s524 = scalar_lea.vmem %s1, 1
  %525 = vst.msk [vmem:[%s524] ss:$3 sm:$0x3] %vm523, %v522
  %s526 = scalar_lea.vmem %s0, 22
  %v527 = vld [vmem:[%s526] sm:$0x1]
  %s528 = scalar_lea.vmem %s0, 149
  %v529 = vld [vmem:[%s528] sm:$0x2]
  %vm530 = vcmask 1041409
  %v531 = vsel %vm530, %v529, %v527
  %532 = vrot.lane.b32.xlu0 %v531, 66
  %v533 = vpop.permute.xlu0 %532
  %vm534 = vcmask 564752
  %535 = vst.msk [vmem:[%s1] ss:$3 sm:$0x3] %vm534, %v533
  %s536 = scalar_lea.vmem %s0, 107
  %v537 = vld [vmem:[%s536] sm:$0x1]
  %538 = vrot.lane.b32.xlu0 %v537, 65
  %v539 = vpop.permute.xlu0 %538
  %vm540 = vcmask 556552
  %s541 = scalar_lea.vmem %s1, 2
  %542 = vst.msk [vmem:[%s541] sm:$0x1] %vm540, %v539
  %s543 = scalar_lea.vmem %s0, 64
  %v544 = vld [vmem:[%s543] sm:$0x1]
  %s545 = scalar_lea.vmem %s0, 191
  %v546 = vld [vmem:[%s545] sm:$0x2]
  %vm547 = vcmask 1041409
  %v548 = vsel %vm547, %v546, %v544
  %549 = vrot.lane.b32.xlu0 %v548, 64
  %v550 = vpop.permute.xlu0 %549
  %vm551 = vcmask 548352
  %s552 = scalar_lea.vmem %s1, 1
  %553 = vst.msk [vmem:[%s552] ss:$3 sm:$0x3] %vm551, %v550
  %s554 = scalar_lea.vmem %s0, 21
  %v555 = vld [vmem:[%s554] sm:$0x1]
  %s556 = scalar_lea.vmem %s0, 148
  %v557 = vld [vmem:[%s556] sm:$0x2]
  %vm558 = vcmask 1041409
  %v559 = vsel %vm558, %v557, %v555
  %560 = vrot.lane.b32.xlu0 %v559, 63
  %v561 = vpop.permute.xlu0 %560
  %vm562 = vcmask 540152
  %563 = vst.msk [vmem:[%s1] ss:$3 sm:$0x3] %vm562, %v561
  %s564 = scalar_lea.vmem %s0, 106
  %v565 = vld [vmem:[%s564] sm:$0x1]
  %566 = vrot.lane.b32.xlu0 %v565, 62
  %v567 = vpop.permute.xlu0 %566
  %vm568 = vcmask 531952
  %s569 = scalar_lea.vmem %s1, 2
  %570 = vst.msk [vmem:[%s569] sm:$0x1] %vm568, %v567
  %s571 = scalar_lea.vmem %s0, 63
  %v572 = vld [vmem:[%s571] sm:$0x1]
  %s573 = scalar_lea.vmem %s0, 190
  %v574 = vld [vmem:[%s573] sm:$0x2]
  %vm575 = vcmask 1041409
  %v576 = vsel %vm575, %v574, %v572
  %577 = vrot.lane.b32.xlu0 %v576, 61
  %v578 = vpop.permute.xlu0 %577
  %vm579 = vcmask 523752
  %s580 = scalar_lea.vmem %s1, 1
  %581 = vst.msk [vmem:[%s580] ss:$3 sm:$0x3] %vm579, %v578
  %s582 = scalar_lea.vmem %s0, 20
  %v583 = vld [vmem:[%s582] sm:$0x1]
  %s584 = scalar_lea.vmem %s0, 147
  %v585 = vld [vmem:[%s584] sm:$0x2]
  %vm586 = vcmask 1041409
  %v587 = vsel %vm586, %v585, %v583
  %588 = vrot.lane.b32.xlu0 %v587, 60
  %v589 = vpop.permute.xlu0 %588
  %vm590 = vcmask 515552
  %591 = vst.msk [vmem:[%s1] ss:$3 sm:$0x3] %vm590, %v589
  %s592 = scalar_lea.vmem %s0, 105
  %v593 = vld [vmem:[%s592] sm:$0x1]
  %594 = vrot.lane.b32.xlu0 %v593, 59
  %v595 = vpop.permute.xlu0 %594
  %vm596 = vcmask 507352
  %s597 = scalar_lea.vmem %s1, 2
  %598 = vst.msk [vmem:[%s597] sm:$0x1] %vm596, %v595
  %s599 = scalar_lea.vmem %s0, 62
  %v600 = vld [vmem:[%s599] sm:$0x1]
  %s601 = scalar_lea.vmem %s0, 189
  %v602 = vld [vmem:[%s601] sm:$0x2]
  %vm603 = vcmask 1041409
  %v604 = vsel %vm603, %v602, %v600
  %605 = vrot.lane.b32.xlu0 %v604, 58
  %v606 = vpop.permute.xlu0 %605
  %vm607 = vcmask 499152
  %s608 = scalar_lea.vmem %s1, 1
  %609 = vst.msk [vmem:[%s608] ss:$3 sm:$0x3] %vm607, %v606
  %s610 = scalar_lea.vmem %s0, 19
  %v611 = vld [vmem:[%s610] sm:$0x1]
  %s612 = scalar_lea.vmem %s0, 146
  %v613 = vld [vmem:[%s612] sm:$0x2]
  %vm614 = vcmask 1041409
  %v615 = vsel %vm614, %v613, %v611
  %616 = vrot.lane.b32.xlu0 %v615, 57
  %v617 = vpop.permute.xlu0 %616
  %vm618 = vcmask 490952
  %619 = vst.msk [vmem:[%s1] ss:$3 sm:$0x3] %vm618, %v617
  %s620 = scalar_lea.vmem %s0, 104
  %v621 = vld [vmem:[%s620] sm:$0x1]
  %622 = vrot.lane.b32.xlu0 %v621, 56
  %v623 = vpop.permute.xlu0 %622
  %vm624 = vcmask 482752
  %s625 = scalar_lea.vmem %s1, 2
  %626 = vst.msk [vmem:[%s625] sm:$0x1] %vm624, %v623
  %s627 = scalar_lea.vmem %s0, 61
  %v628 = vld [vmem:[%s627] sm:$0x1]
  %s629 = scalar_lea.vmem %s0, 188
  %v630 = vld [vmem:[%s629] sm:$0x2]
  %vm631 = vcmask 1041409
  %v632 = vsel %vm631, %v630, %v628
  %633 = vrot.lane.b32.xlu0 %v632, 55
  %v634 = vpop.permute.xlu0 %633
  %vm635 = vcmask 474552
  %s636 = scalar_lea.vmem %s1, 1
  %637 = vst.msk [vmem:[%s636] ss:$3 sm:$0x3] %vm635, %v634
  %s638 = scalar_lea.vmem %s0, 18
  %v639 = vld [vmem:[%s638] sm:$0x1]
  %s640 = scalar_lea.vmem %s0, 145
  %v641 = vld [vmem:[%s640] sm:$0x2]
  %vm642 = vcmask 1041409
  %v643 = vsel %vm642, %v641, %v639
  %644 = vrot.lane.b32.xlu0 %v643, 54
  %v645 = vpop.permute.xlu0 %644
  %vm646 = vcmask 466352
  %647 = vst.msk [vmem:[%s1] ss:$3 sm:$0x3] %vm646, %v645
  %s648 = scalar_lea.vmem %s0, 103
  %v649 = vld [vmem:[%s648] sm:$0x1]
  %650 = vrot.lane.b32.xlu0 %v649, 53
  %v651 = vpop.permute.xlu0 %650
  %vm652 = vcmask 458152
  %s653 = scalar_lea.vmem %s1, 2
  %654 = vst.msk [vmem:[%s653] sm:$0x1] %vm652, %v651
  %s655 = scalar_lea.vmem %s0, 60
  %v656 = vld [vmem:[%s655] sm:$0x1]
  %s657 = scalar_lea.vmem %s0, 187
  %v658 = vld [vmem:[%s657] sm:$0x2]
  %vm659 = vcmask 1041409
  %v660 = vsel %vm659, %v658, %v656
  %661 = vrot.lane.b32.xlu0 %v660, 52
  %v662 = vpop.permute.xlu0 %661
  %vm663 = vcmask 449952
  %s664 = scalar_lea.vmem %s1, 1
  %665 = vst.msk [vmem:[%s664] ss:$3 sm:$0x3] %vm663, %v662
  %s666 = scalar_lea.vmem %s0, 17
  %v667 = vld [vmem:[%s666] sm:$0x1]
  %s668 = scalar_lea.vmem %s0, 144
  %v669 = vld [vmem:[%s668] sm:$0x2]
  %vm670 = vcmask 1041409
  %v671 = vsel %vm670, %v669, %v667
  %672 = vrot.lane.b32.xlu0 %v671, 51
  %v673 = vpop.permute.xlu0 %672
  %vm674 = vcmask 441752
  %675 = vst.msk [vmem:[%s1] ss:$3 sm:$0x3] %vm674, %v673
  %s676 = scalar_lea.vmem %s0, 102
  %v677 = vld [vmem:[%s676] sm:$0x1]
  %678 = vrot.lane.b32.xlu0 %v677, 50
  %v679 = vpop.permute.xlu0 %678
  %vm680 = vcmask 433552
  %s681 = scalar_lea.vmem %s1, 2
  %682 = vst.msk [vmem:[%s681] sm:$0x1] %vm680, %v679
  %s683 = scalar_lea.vmem %s0, 59
  %v684 = vld [vmem:[%s683] sm:$0x1]
  %s685 = scalar_lea.vmem %s0, 186
  %v686 = vld [vmem:[%s685] sm:$0x2]
  %vm687 = vcmask 1041409
  %v688 = vsel %vm687, %v686, %v684
  %689 = vrot.lane.b32.xlu0 %v688, 49
  %v690 = vpop.permute.xlu0 %689
  %vm691 = vcmask 425352
  %s692 = scalar_lea.vmem %s1, 1
  %693 = vst.msk [vmem:[%s692] ss:$3 sm:$0x3] %vm691, %v690
  %s694 = scalar_lea.vmem %s0, 16
  %v695 = vld [vmem:[%s694] sm:$0x1]
  %s696 = scalar_lea.vmem %s0, 143
  %v697 = vld [vmem:[%s696] sm:$0x2]
  %vm698 = vcmask 1041409
  %v699 = vsel %vm698, %v697, %v695
  %700 = vrot.lane.b32.xlu0 %v699, 48
  %v701 = vpop.permute.xlu0 %700
  %vm702 = vcmask 417152
  %703 = vst.msk [vmem:[%s1] ss:$3 sm:$0x3] %vm702, %v701
  %s704 = scalar_lea.vmem %s0, 101
  %v705 = vld [vmem:[%s704] sm:$0x1]
  %706 = vrot.lane.b32.xlu0 %v705, 47
  %v707 = vpop.permute.xlu0 %706
  %vm708 = vcmask 408952
  %s709 = scalar_lea.vmem %s1, 2
  %710 = vst.msk [vmem:[%s709] sm:$0x1] %vm708, %v707
  %s711 = scalar_lea.vmem %s0, 58
  %v712 = vld [vmem:[%s711] sm:$0x1]
  %s713 = scalar_lea.vmem %s0, 185
  %v714 = vld [vmem:[%s713] sm:$0x2]
  %vm715 = vcmask 1041409
  %v716 = vsel %vm715, %v714, %v712
  %717 = vrot.lane.b32.xlu0 %v716, 46
  %v718 = vpop.permute.xlu0 %717
  %vm719 = vcmask 400752
  %s720 = scalar_lea.vmem %s1, 1
  %721 = vst.msk [vmem:[%s720] ss:$3 sm:$0x3] %vm719, %v718
  %s722 = scalar_lea.vmem %s0, 15
  %v723 = vld [vmem:[%s722] sm:$0x1]
  %s724 = scalar_lea.vmem %s0, 142
  %v725 = vld [vmem:[%s724] sm:$0x2]
  %vm726 = vcmask 1041409
  %v727 = vsel %vm726, %v725, %v723
  %728 = vrot.lane.b32.xlu0 %v727, 45
  %v729 = vpop.permute.xlu0 %728
  %vm730 = vcmask 392552
  %731 = vst.msk [vmem:[%s1] ss:$3 sm:$0x3] %vm730, %v729
  %s732 = scalar_lea.vmem %s0, 100
  %v733 = vld [vmem:[%s732] sm:$0x1]
  %734 = vrot.lane.b32.xlu0 %v733, 44
  %v735 = vpop.permute.xlu0 %734
  %vm736 = vcmask 384352
  %s737 = scalar_lea.vmem %s1, 2
  %738 = vst.msk [vmem:[%s737] sm:$0x1] %vm736, %v735
  %s739 = scalar_lea.vmem %s0, 57
  %v740 = vld [vmem:[%s739] sm:$0x1]
  %s741 = scalar_lea.vmem %s0, 184
  %v742 = vld [vmem:[%s741] sm:$0x2]
  %vm743 = vcmask 1041409
  %v744 = vsel %vm743, %v742, %v740
  %745 = vrot.lane.b32.xlu0 %v744, 43
  %v746 = vpop.permute.xlu0 %745
  %vm747 = vcmask 376152
  %s748 = scalar_lea.vmem %s1, 1
  %749 = vst.msk [vmem:[%s748] ss:$3 sm:$0x3] %vm747, %v746
  %s750 = scalar_lea.vmem %s0, 14
  %v751 = vld [vmem:[%s750] sm:$0x1]
  %s752 = scalar_lea.vmem %s0, 141
  %v753 = vld [vmem:[%s752] sm:$0x2]
  %vm754 = vcmask 1041409
  %v755 = vsel %vm754, %v753, %v751
  %756 = vrot.lane.b32.xlu0 %v755, 42
  %v757 = vpop.permute.xlu0 %756
  %vm758 = vcmask 367952
  %759 = vst.msk [vmem:[%s1] ss:$3 sm:$0x3] %vm758, %v757
  %s760 = scalar_lea.vmem %s0, 99
  %v761 = vld [vmem:[%s760] sm:$0x1]
  %762 = vrot.lane.b32.xlu0 %v761, 41
  %v763 = vpop.permute.xlu0 %762
  %vm764 = vcmask 359752
  %s765 = scalar_lea.vmem %s1, 2
  %766 = vst.msk [vmem:[%s765] sm:$0x1] %vm764, %v763
  %s767 = scalar_lea.vmem %s0, 56
  %v768 = vld [vmem:[%s767] sm:$0x1]
  %s769 = scalar_lea.vmem %s0, 183
  %v770 = vld [vmem:[%s769] sm:$0x2]
  %vm771 = vcmask 1041409
  %v772 = vsel %vm771, %v770, %v768
  %773 = vrot.lane.b32.xlu0 %v772, 40
  %v774 = vpop.permute.xlu0 %773
  %vm775 = vcmask 351552
  %s776 = scalar_lea.vmem %s1, 1
  %777 = vst.msk [vmem:[%s776] ss:$3 sm:$0x3] %vm775, %v774
  %s778 = scalar_lea.vmem %s0, 13
  %v779 = vld [vmem:[%s778] sm:$0x1]
  %s780 = scalar_lea.vmem %s0, 140
  %v781 = vld [vmem:[%s780] sm:$0x2]
  %vm782 = vcmask 1041409
  %v783 = vsel %vm782, %v781, %v779
  %784 = vrot.lane.b32.xlu0 %v783, 39
  %v785 = vpop.permute.xlu0 %784
  %vm786 = vcmask 343352
  %787 = vst.msk [vmem:[%s1] ss:$3 sm:$0x3] %vm786, %v785
  %s788 = scalar_lea.vmem %s0, 98
  %v789 = vld [vmem:[%s788] sm:$0x1]
  %790 = vrot.lane.b32.xlu0 %v789, 38
  %v791 = vpop.permute.xlu0 %790
  %vm792 = vcmask 335152
  %s793 = scalar_lea.vmem %s1, 2
  %794 = vst.msk [vmem:[%s793] sm:$0x1] %vm792, %v791
  %s795 = scalar_lea.vmem %s0, 55
  %v796 = vld [vmem:[%s795] sm:$0x1]
  %s797 = scalar_lea.vmem %s0, 182
  %v798 = vld [vmem:[%s797] sm:$0x2]
  %vm799 = vcmask 1041409
  %v800 = vsel %vm799, %v798, %v796
  %801 = vrot.lane.b32.xlu0 %v800, 37
  %v802 = vpop.permute.xlu0 %801
  %vm803 = vcmask 326952
  %s804 = scalar_lea.vmem %s1, 1
  %805 = vst.msk [vmem:[%s804] ss:$3 sm:$0x3] %vm803, %v802
  %s806 = scalar_lea.vmem %s0, 12
  %v807 = vld [vmem:[%s806] sm:$0x1]
  %s808 = scalar_lea.vmem %s0, 139
  %v809 = vld [vmem:[%s808] sm:$0x2]
  %vm810 = vcmask 1041409
  %v811 = vsel %vm810, %v809, %v807
  %812 = vrot.lane.b32.xlu0 %v811, 36
  %v813 = vpop.permute.xlu0 %812
  %vm814 = vcmask 318752
  %815 = vst.msk [vmem:[%s1] ss:$3 sm:$0x3] %vm814, %v813
  %s816 = scalar_lea.vmem %s0, 97
  %v817 = vld [vmem:[%s816] sm:$0x1]
  %818 = vrot.lane.b32.xlu0 %v817, 35
  %v819 = vpop.permute.xlu0 %818
  %vm820 = vcmask 310552
  %s821 = scalar_lea.vmem %s1, 2
  %822 = vst.msk [vmem:[%s821] sm:$0x1] %vm820, %v819
  %s823 = scalar_lea.vmem %s0, 54
  %v824 = vld [vmem:[%s823] sm:$0x1]
  %s825 = scalar_lea.vmem %s0, 181
  %v826 = vld [vmem:[%s825] sm:$0x2]
  %vm827 = vcmask 1041409
  %v828 = vsel %vm827, %v826, %v824
  %829 = vrot.lane.b32.xlu0 %v828, 34
  %v830 = vpop.permute.xlu0 %829
  %vm831 = vcmask 302352
  %s832 = scalar_lea.vmem %s1, 1
  %833 = vst.msk [vmem:[%s832] ss:$3 sm:$0x3] %vm831, %v830
  %s834 = scalar_lea.vmem %s0, 11
  %v835 = vld [vmem:[%s834] sm:$0x1]
  %s836 = scalar_lea.vmem %s0, 138
  %v837 = vld [vmem:[%s836] sm:$0x2]
  %vm838 = vcmask 1041409
  %v839 = vsel %vm838, %v837, %v835
  %840 = vrot.lane.b32.xlu0 %v839, 33
  %v841 = vpop.permute.xlu0 %840
  %vm842 = vcmask 294152
  %843 = vst.msk [vmem:[%s1] ss:$3 sm:$0x3] %vm842, %v841
  %s844 = scalar_lea.vmem %s0, 96
  %v845 = vld [vmem:[%s844] sm:$0x1]
  %846 = vrot.lane.b32.xlu0 %v845, 32
  %v847 = vpop.permute.xlu0 %846
  %vm848 = vcmask 285952
  %s849 = scalar_lea.vmem %s1, 2
  %850 = vst.msk [vmem:[%s849] sm:$0x1] %vm848, %v847
  %s851 = scalar_lea.vmem %s0, 53
  %v852 = vld [vmem:[%s851] sm:$0x1]
  %s853 = scalar_lea.vmem %s0, 180
  %v854 = vld [vmem:[%s853] sm:$0x2]
  %vm855 = vcmask 1041409
  %v856 = vsel %vm855, %v854, %v852
  %857 = vrot.lane.b32.xlu0 %v856, 31
  %v858 = vpop.permute.xlu0 %857
  %vm859 = vcmask 277752
  %s860 = scalar_lea.vmem %s1, 1
  %861 = vst.msk [vmem:[%s860] ss:$3 sm:$0x3] %vm859, %v858
  %s862 = scalar_lea.vmem %s0, 10
  %v863 = vld [vmem:[%s862] sm:$0x1]
  %s864 = scalar_lea.vmem %s0, 137
  %v865 = vld [vmem:[%s864] sm:$0x2]
  %vm866 = vcmask 1041409
  %v867 = vsel %vm866, %v865, %v863
  %868 = vrot.lane.b32.xlu0 %v867, 30
  %v869 = vpop.permute.xlu0 %868
  %vm870 = vcmask 269552
  %871 = vst.msk [vmem:[%s1] ss:$3 sm:$0x3] %vm870, %v869
  %s872 = scalar_lea.vmem %s0, 95
  %v873 = vld [vmem:[%s872] sm:$0x1]
  %874 = vrot.lane.b32.xlu0 %v873, 29
  %v875 = vpop.permute.xlu0 %874
  %vm876 = vcmask 261352
  %s877 = scalar_lea.vmem %s1, 2
  %878 = vst.msk [vmem:[%s877] sm:$0x1] %vm876, %v875
  %s879 = scalar_lea.vmem %s0, 52
  %v880 = vld [vmem:[%s879] sm:$0x1]
  %s881 = scalar_lea.vmem %s0, 179
  %v882 = vld [vmem:[%s881] sm:$0x2]
  %vm883 = vcmask 1041409
  %v884 = vsel %vm883, %v882, %v880
  %885 = vrot.lane.b32.xlu0 %v884, 28
  %v886 = vpop.permute.xlu0 %885
  %vm887 = vcmask 253152
  %s888 = scalar_lea.vmem %s1, 1
  %889 = vst.msk [vmem:[%s888] ss:$3 sm:$0x3] %vm887, %v886
  %s890 = scalar_lea.vmem %s0, 9
  %v891 = vld [vmem:[%s890] sm:$0x1]
  %s892 = scalar_lea.vmem %s0, 136
  %v893 = vld [vmem:[%s892] sm:$0x2]
  %vm894 = vcmask 1041409
  %v895 = vsel %vm894, %v893, %v891
  %896 = vrot.lane.b32.xlu0 %v895, 27
  %v897 = vpop.permute.xlu0 %896
  %vm898 = vcmask 244952
  %899 = vst.msk [vmem:[%s1] ss:$3 sm:$0x3] %vm898, %v897
  %s900 = scalar_lea.vmem %s0, 94
  %v901 = vld [vmem:[%s900] sm:$0x1]
  %902 = vrot.lane.b32.xlu0 %v901, 26
  %v903 = vpop.permute.xlu0 %902
  %vm904 = vcmask 236752
  %s905 = scalar_lea.vmem %s1, 2
  %906 = vst.msk [vmem:[%s905] sm:$0x1] %vm904, %v903
  %s907 = scalar_lea.vmem %s0, 51
  %v908 = vld [vmem:[%s907] sm:$0x1]
  %s909 = scalar_lea.vmem %s0, 178
  %v910 = vld [vmem:[%s909] sm:$0x2]
  %vm911 = vcmask 1041409
  %v912 = vsel %vm911, %v910, %v908
  %913 = vrot.lane.b32.xlu0 %v912, 25
  %v914 = vpop.permute.xlu0 %913
  %vm915 = vcmask 228552
  %s916 = scalar_lea.vmem %s1, 1
  %917 = vst.msk [vmem:[%s916] ss:$3 sm:$0x3] %vm915, %v914
  %s918 = scalar_lea.vmem %s0, 8
  %v919 = vld [vmem:[%s918] sm:$0x1]
  %s920 = scalar_lea.vmem %s0, 135
  %v921 = vld [vmem:[%s920] sm:$0x2]
  %vm922 = vcmask 1041409
  %v923 = vsel %vm922, %v921, %v919
  %924 = vrot.lane.b32.xlu0 %v923, 24
  %v925 = vpop.permute.xlu0 %924
  %vm926 = vcmask 220352
  %927 = vst.msk [vmem:[%s1] ss:$3 sm:$0x3] %vm926, %v925
  %s928 = scalar_lea.vmem %s0, 93
  %v929 = vld [vmem:[%s928] sm:$0x1]
  %930 = vrot.lane.b32.xlu0 %v929, 23
  %v931 = vpop.permute.xlu0 %930
  %vm932 = vcmask 212152
  %s933 = scalar_lea.vmem %s1, 2
  %934 = vst.msk [vmem:[%s933] sm:$0x1] %vm932, %v931
  %s935 = scalar_lea.vmem %s0, 50
  %v936 = vld [vmem:[%s935] sm:$0x1]
  %s937 = scalar_lea.vmem %s0, 177
  %v938 = vld [vmem:[%s937] sm:$0x2]
  %vm939 = vcmask 1041409
  %v940 = vsel %vm939, %v938, %v936
  %941 = vrot.lane.b32.xlu0 %v940, 22
  %v942 = vpop.permute.xlu0 %941
  %vm943 = vcmask 203952
  %s944 = scalar_lea.vmem %s1, 1
  %945 = vst.msk [vmem:[%s944] ss:$3 sm:$0x3] %vm943, %v942
  %s946 = scalar_lea.vmem %s0, 7
  %v947 = vld [vmem:[%s946] sm:$0x1]
  %s948 = scalar_lea.vmem %s0, 134
  %v949 = vld [vmem:[%s948] sm:$0x2]
  %vm950 = vcmask 1041409
  %v951 = vsel %vm950, %v949, %v947
  %952 = vrot.lane.b32.xlu0 %v951, 21
  %v953 = vpop.permute.xlu0 %952
  %vm954 = vcmask 195752
  %955 = vst.msk [vmem:[%s1] ss:$3 sm:$0x3] %vm954, %v953
  %s956 = scalar_lea.vmem %s0, 92
  %v957 = vld [vmem:[%s956] sm:$0x1]
  %958 = vrot.lane.b32.xlu0 %v957, 20
  %v959 = vpop.permute.xlu0 %958
  %vm960 = vcmask 187552
  %s961 = scalar_lea.vmem %s1, 2
  %962 = vst.msk [vmem:[%s961] sm:$0x1] %vm960, %v959
  %s963 = scalar_lea.vmem %s0, 49
  %v964 = vld [vmem:[%s963] sm:$0x1]
  %s965 = scalar_lea.vmem %s0, 176
  %v966 = vld [vmem:[%s965] sm:$0x2]
  %vm967 = vcmask 1041409
  %v968 = vsel %vm967, %v966, %v964
  %969 = vrot.lane.b32.xlu0 %v968, 19
  %v970 = vpop.permute.xlu0 %969
  %vm971 = vcmask 179352
  %s972 = scalar_lea.vmem %s1, 1
  %973 = vst.msk [vmem:[%s972] ss:$3 sm:$0x3] %vm971, %v970
  %s974 = scalar_lea.vmem %s0, 6
  %v975 = vld [vmem:[%s974] sm:$0x1]
  %s976 = scalar_lea.vmem %s0, 133
  %v977 = vld [vmem:[%s976] sm:$0x2]
  %vm978 = vcmask 1041409
  %v979 = vsel %vm978, %v977, %v975
  %980 = vrot.lane.b32.xlu0 %v979, 18
  %v981 = vpop.permute.xlu0 %980
  %vm982 = vcmask 171152
  %983 = vst.msk [vmem:[%s1] ss:$3 sm:$0x3] %vm982, %v981
  %s984 = scalar_lea.vmem %s0, 91
  %v985 = vld [vmem:[%s984] sm:$0x1]
  %986 = vrot.lane.b32.xlu0 %v985, 17
  %v987 = vpop.permute.xlu0 %986
  %vm988 = vcmask 162952
  %s989 = scalar_lea.vmem %s1, 2
  %990 = vst.msk [vmem:[%s989] sm:$0x1] %vm988, %v987
  %s991 = scalar_lea.vmem %s0, 48
  %v992 = vld [vmem:[%s991] sm:$0x1]
  %s993 = scalar_lea.vmem %s0, 175
  %v994 = vld [vmem:[%s993] sm:$0x2]
  %vm995 = vcmask 1041409
  %v996 = vsel %vm995, %v994, %v992
  %997 = vrot.lane.b32.xlu0 %v996, 16
  %v998 = vpop.permute.xlu0 %997
  %vm999 = vcmask 154752
  %s1000 = scalar_lea.vmem %s1, 1
  %1001 = vst.msk [vmem:[%s1000] ss:$3 sm:$0x3] %vm999, %v998
  %s1002 = scalar_lea.vmem %s0, 5
  %v1003 = vld [vmem:[%s1002] sm:$0x1]
  %s1004 = scalar_lea.vmem %s0, 132
  %v1005 = vld [vmem:[%s1004] sm:$0x2]
  %vm1006 = vcmask 1041409
  %v1007 = vsel %vm1006, %v1005, %v1003
  %1008 = vrot.lane.b32.xlu0 %v1007, 15
  %v1009 = vpop.permute.xlu0 %1008
  %vm1010 = vcmask 146552
  %1011 = vst.msk [vmem:[%s1] ss:$3 sm:$0x3] %vm1010, %v1009
  %s1012 = scalar_lea.vmem %s0, 90
  %v1013 = vld [vmem:[%s1012] sm:$0x1]
  %1014 = vrot.lane.b32.xlu0 %v1013, 14
  %v1015 = vpop.permute.xlu0 %1014
  %vm1016 = vcmask 138352
  %s1017 = scalar_lea.vmem %s1, 2
  %1018 = vst.msk [vmem:[%s1017] sm:$0x1] %vm1016, %v1015
  %s1019 = scalar_lea.vmem %s0, 47
  %v1020 = vld [vmem:[%s1019] sm:$0x1]
  %s1021 = scalar_lea.vmem %s0, 174
  %v1022 = vld [vmem:[%s1021] sm:$0x2]
  %vm1023 = vcmask 1041409
  %v1024 = vsel %vm1023, %v1022, %v1020
  %1025 = vrot.lane.b32.xlu0 %v1024, 13
  %v1026 = vpop.permute.xlu0 %1025
  %vm1027 = vcmask 130152
  %s1028 = scalar_lea.vmem %s1, 1
  %1029 = vst.msk [vmem:[%s1028] ss:$3 sm:$0x3] %vm1027, %v1026
  %s1030 = scalar_lea.vmem %s0, 4
  %v1031 = vld [vmem:[%s1030] sm:$0x1]
  %s1032 = scalar_lea.vmem %s0, 131
  %v1033 = vld [vmem:[%s1032] sm:$0x2]
  %vm1034 = vcmask 1041409
  %v1035 = vsel %vm1034, %v1033, %v1031
  %1036 = vrot.lane.b32.xlu0 %v1035, 12
  %v1037 = vpop.permute.xlu0 %1036
  %vm1038 = vcmask 121952
  %1039 = vst.msk [vmem:[%s1] ss:$3 sm:$0x3] %vm1038, %v1037
  %s1040 = scalar_lea.vmem %s0, 89
  %v1041 = vld [vmem:[%s1040] sm:$0x1]
  %1042 = vrot.lane.b32.xlu0 %v1041, 11
  %v1043 = vpop.permute.xlu0 %1042
  %vm1044 = vcmask 113752
  %s1045 = scalar_lea.vmem %s1, 2
  %1046 = vst.msk [vmem:[%s1045] sm:$0x1] %vm1044, %v1043
  %s1047 = scalar_lea.vmem %s0, 46
  %v1048 = vld [vmem:[%s1047] sm:$0x1]
  %s1049 = scalar_lea.vmem %s0, 173
  %v1050 = vld [vmem:[%s1049] sm:$0x2]
  %vm1051 = vcmask 1041409
  %v1052 = vsel %vm1051, %v1050, %v1048
  %1053 = vrot.lane.b32.xlu0 %v1052, 10
  %v1054 = vpop.permute.xlu0 %1053
  %vm1055 = vcmask 105552
  %s1056 = scalar_lea.vmem %s1, 1
  %1057 = vst.msk [vmem:[%s1056] ss:$3 sm:$0x3] %vm1055, %v1054
  %s1058 = scalar_lea.vmem %s0, 3
  %v1059 = vld [vmem:[%s1058] sm:$0x1]
  %s1060 = scalar_lea.vmem %s0, 130
  %v1061 = vld [vmem:[%s1060] sm:$0x2]
  %vm1062 = vcmask 1041409
  %v1063 = vsel %vm1062, %v1061, %v1059
  %1064 = vrot.lane.b32.xlu0 %v1063, 9
  %v1065 = vpop.permute.xlu0 %1064
  %vm1066 = vcmask 97352
  %1067 = vst.msk [vmem:[%s1] ss:$3 sm:$0x3] %vm1066, %v1065
  %s1068 = scalar_lea.vmem %s0, 88
  %v1069 = vld [vmem:[%s1068] sm:$0x1]
  %1070 = vrot.lane.b32.xlu0 %v1069, 8
  %v1071 = vpop.permute.xlu0 %1070
  %vm1072 = vcmask 89152
  %s1073 = scalar_lea.vmem %s1, 2
  %1074 = vst.msk [vmem:[%s1073] sm:$0x1] %vm1072, %v1071
  %s1075 = scalar_lea.vmem %s0, 45
  %v1076 = vld [vmem:[%s1075] sm:$0x1]
  %s1077 = scalar_lea.vmem %s0, 172
  %v1078 = vld [vmem:[%s1077] sm:$0x2]
  %vm1079 = vcmask 1041409
  %v1080 = vsel %vm1079, %v1078, %v1076
  %1081 = vrot.lane.b32.xlu0 %v1080, 7
  %v1082 = vpop.permute.xlu0 %1081
  %vm1083 = vcmask 80952
  %s1084 = scalar_lea.vmem %s1, 1
  %1085 = vst.msk [vmem:[%s1084] ss:$3 sm:$0x3] %vm1083, %v1082
  %s1086 = scalar_lea.vmem %s0, 2
  %v1087 = vld [vmem:[%s1086] sm:$0x1]
  %s1088 = scalar_lea.vmem %s0, 129
  %v1089 = vld [vmem:[%s1088] sm:$0x2]
  %vm1090 = vcmask 1041409
  %v1091 = vsel %vm1090, %v1089, %v1087
  %1092 = vrot.lane.b32.xlu0 %v1091, 6
  %v1093 = vpop.permute.xlu0 %1092
  %vm1094 = vcmask 72752
  %1095 = vst.msk [vmem:[%s1] ss:$3 sm:$0x3] %vm1094, %v1093
  %s1096 = scalar_lea.vmem %s0, 87
  %v1097 = vld [vmem:[%s1096] sm:$0x1]
  %1098 = vrot.lane.b32.xlu0 %v1097, 5
  %v1099 = vpop.permute.xlu0 %1098
  %vm1100 = vcmask 64552
  %s1101 = scalar_lea.vmem %s1, 2
  %1102 = vst.msk [vmem:[%s1101] sm:$0x1] %vm1100, %v1099
  %s1103 = scalar_lea.vmem %s0, 44
  %v1104 = vld [vmem:[%s1103] sm:$0x1]
  %s1105 = scalar_lea.vmem %s0, 171
  %v1106 = vld [vmem:[%s1105] sm:$0x2]
  %vm1107 = vcmask 1041409
  %v1108 = vsel %vm1107, %v1106, %v1104
  %1109 = vrot.lane.b32.xlu0 %v1108, 4
  %v1110 = vpop.permute.xlu0 %1109
  %vm1111 = vcmask 56352
  %s1112 = scalar_lea.vmem %s1, 1
  %1113 = vst.msk [vmem:[%s1112] ss:$3 sm:$0x3] %vm1111, %v1110
  %s1114 = scalar_lea.vmem %s0, 1
  %v1115 = vld [vmem:[%s1114] sm:$0x1]
  %s1116 = scalar_lea.vmem %s0, 128
  %v1117 = vld [vmem:[%s1116] sm:$0x2]
  %vm1118 = vcmask 1041409
  %v1119 = vsel %vm1118, %v1117, %v1115
  %1120 = vrot.lane.b32.xlu0 %v1119, 3
  %v1121 = vpop.permute.xlu0 %1120
  %vm1122 = vcmask 48152
  %1123 = vst.msk [vmem:[%s1] ss:$3 sm:$0x3] %vm1122, %v1121
  %s1124 = scalar_lea.vmem %s0, 86
  %v1125 = vld [vmem:[%s1124] sm:$0x1]
  %1126 = vrot.lane.b32.xlu0 %v1125, 2
  %v1127 = vpop.permute.xlu0 %1126
  %vm1128 = vcmask 39952
  %s1129 = scalar_lea.vmem %s1, 2
  %1130 = vst.msk [vmem:[%s1129] sm:$0x1] %vm1128, %v1127
  %s1131 = scalar_lea.vmem %s0, 43
  %v1132 = vld [vmem:[%s1131] sm:$0x1]
  %s1133 = scalar_lea.vmem %s0, 170
  %v1134 = vld [vmem:[%s1133] sm:$0x2]
  %vm1135 = vcmask 1041409
  %v1136 = vsel %vm1135, %v1134, %v1132
  %1137 = vrot.lane.b32.xlu0 %v1136, 1
  %v1138 = vpop.permute.xlu0 %1137
  %vm1139 = vcmask 31752
  %s1140 = scalar_lea.vmem %s1, 1
  %1141 = vst.msk [vmem:[%s1140] ss:$3 sm:$0x3] %vm1139, %v1138

// kernel: dino_forward.3
$region0: #{dino_forward.3}
  #allocation0 [shape = 'u32[]', space=smem, size = 0x4, offset = 0x4, fixed_abs, tag = 'smem constant byte address 0x4 - core index']
  #allocation1 [shape = 'u32[144,128]{1,0:T(1,128)}', space=vmem, size = 0x12000, scoped, tag = 'internal scratch']
  %s0 = inlined_call_operand.vmem [shape: f32[2,4,640], index: 0, kind: input, shape index: {}]
  %s1 = inlined_call_operand.vmem [shape: bf16[640,128], index: 1, kind: input, shape index: {}]
  %s2 = inlined_call_operand.vmem [shape: f32[1,128], index: 2, kind: input, shape index: {}]
  %s3 = inlined_call_operand.vmem [shape: f32[2,4,128], index: 3, kind: output, shape index: {}]
  %s4 = sld [smem:[#allocation0]]
  $region45: #{dino_forward.3} parent=0
    _
  %s6 = ssub.s32 1, %s4
  %s7 = scalar_select 0, %s6, %s4
  loop: start=0, step=1, limit=4
  $region2: #{dino_forward.3} parent=0 // loop_pre_header
    _
  $region3: #{dino_forward.3} parent=0 // loop_header
    %s9 = sphi 0, %s13
    %p10 = scmp.ge.s32.totalorder %s9, 4
    %s19 = sphi 0, %s21
    %s22 = sphi 0, %s19
    %s23 = sphi 0, %s22
    %s39 = sphi 0, %s23
    %s43 = sphi 0, %s43
    %s45 = sphi 0, %s43
    %s46 = sphi 0, %s45
    %s60 = sphi 0, %s46
    %s64 = sphi 0, %s64
    %s66 = sphi 0, %s64
    %s67 = sphi 0, %s66
    %s81 = sphi 0, %s67
    %s87 = sphi 0, %s89
    %s90 = sphi 0, %s87
    %s91 = sphi 0, %s90
    %s107 = sphi 0, %s91
  $region4: #{dino_forward.3} parent=0 // loop_header_branch
    %12 = sbr.rel (%p10) target = $region8
  $region5: #{dino_forward.3} parent=0 // loop_body
    %s14 = ssub.s32 %s9, 1
    %s15 = ssub.s32 %s9, 2
    %s16 = sadd.s32 %s9, 1
    %s17 = ssub.s32 %s9, %s16
    %p18 = scmp.eq.s32.totalorder %s17, 0
    %s20 = sadd.s32 %s19, 1
    %s21 = scalar_select %p18, %s19, %s20
    %p24 = pneg %p18
    %p25 = scmp.eq.s32.totalorder %s9, 1
    %p26 = por %p24, %p25
    %p27 = scmp.ne.s32.totalorder %s19, %s22
    %p28 = scmp.eq.s32.totalorder %s9, 0
    %p29 = por %p27, %p28
    %p30 = scmp.ne.s32.totalorder %s19, %s22
    %p31 = scmp.eq.s32.totalorder %s14, 1
    %p32 = por %p30, %p31
    %p33 = scmp.ne.s32.totalorder %s22, %s23
    %p34 = scmp.eq.s32.totalorder %s14, 0
    %p35 = por %p33, %p34
    %p36 = scmp.ne.s32.totalorder %s22, %s23
    %p37 = scmp.eq.s32.totalorder %s15, 1
    %p38 = por %p36, %p37
    %p40 = scmp.ne.s32.totalorder %s23, %s39
    %p41 = scmp.eq.s32.totalorder %s15, 0
    %p42 = por %p40, %p41
    %s44 = sadd.s32 %s43, 1
    %p47 = scmp.eq.s32.totalorder %s9, 1
    %p48 = scmp.ne.s32.totalorder %s43, %s45
    %p49 = scmp.eq.s32.totalorder %s9, 0
    %p50 = por %p48, %p49
    %p51 = scmp.ne.s32.totalorder %s43, %s45
    %p52 = scmp.eq.s32.totalorder %s14, 1
    %p53 = por %p51, %p52
    %p54 = scmp.ne.s32.totalorder %s45, %s46
    %p55 = scmp.eq.s32.totalorder %s14, 0
    %p56 = por %p54, %p55
    %p57 = scmp.ne.s32.totalorder %s45, %s46
    %p58 = scmp.eq.s32.totalorder %s15, 1
    %p59 = por %p57, %p58
    %p61 = scmp.ne.s32.totalorder %s46, %s60
    %p62 = scmp.eq.s32.totalorder %s15, 0
    %p63 = por %p61, %p62
    %s65 = sadd.s32 %s64, 1
    %p68 = scmp.eq.s32.totalorder %s9, 1
    %p69 = scmp.ne.s32.totalorder %s64, %s66
    %p70 = scmp.eq.s32.totalorder %s9, 0
    %p71 = por %p69, %p70
    %p72 = scmp.ne.s32.totalorder %s64, %s66
    %p73 = scmp.eq.s32.totalorder %s14, 1
    %p74 = por %p72, %p73
    %p75 = scmp.ne.s32.totalorder %s66, %s67
    %p76 = scmp.eq.s32.totalorder %s14, 0
    %p77 = por %p75, %p76
    %p78 = scmp.ne.s32.totalorder %s66, %s67
    %p79 = scmp.eq.s32.totalorder %s15, 1
    %p80 = por %p78, %p79
    %p82 = scmp.ne.s32.totalorder %s67, %s81
    %p83 = scmp.eq.s32.totalorder %s15, 0
    %p84 = por %p82, %p83
    %s85 = ssub.s32 %s9, %s16
    %p86 = scmp.eq.s32.totalorder %s85, 0
    %s88 = sadd.s32 %s87, 1
    %s89 = scalar_select %p86, %s87, %s88
    %p92 = pneg %p86
    %p93 = scmp.eq.s32.totalorder %s9, 1
    %p94 = por %p92, %p93
    %p95 = scmp.ne.s32.totalorder %s87, %s90
    %p96 = scmp.eq.s32.totalorder %s9, 0
    %p97 = por %p95, %p96
    %p98 = scmp.ne.s32.totalorder %s87, %s90
    %p99 = scmp.eq.s32.totalorder %s14, 1
    %p100 = por %p98, %p99
    %p101 = scmp.ne.s32.totalorder %s90, %s91
    %p102 = scmp.eq.s32.totalorder %s14, 0
    %p103 = por %p101, %p102
    %p104 = scmp.ne.s32.totalorder %s90, %s91
    %p105 = scmp.eq.s32.totalorder %s15, 1
    %p106 = por %p104, %p105
    %p108 = scmp.ne.s32.totalorder %s91, %s107
    %p109 = scmp.eq.s32.totalorder %s15, 0
    %p110 = por %p108, %p109
    %p111 = scmp.le.s32.totalorder 1, %s9
    %p112 = scmp.lt.s32.totalorder %s9, 3
    %p113 = pnand %p111, %p112
    %p114 = pneg %p113
    // Predicated region
    $region9: #{dino_forward.3} parent=5 // pred_check
      _
    $region10: #{dino_forward.3} parent=5 // pred_check_branch
      %116 = sbr.rel (%p113) target = $region12
    $region11: #{dino_forward.3} parent=5 // pred_region
      %s117 = ssub.s32 %s9, 1
      // Predicated region
      $region13: #{dino_forward.3} parent=11 // pred_check
        %p118 = pneg %p56
      $region14: #{dino_forward.3} parent=11 // pred_check_branch
        %120 = sbr.rel (%p118) target = $region16
      $region15: #{dino_forward.3} parent=11 // pred_region
        _
      $region16: #{dino_forward.3} parent=11 // pred_fallthru
        _
      // Predicated region
      $region17: #{dino_forward.3} parent=11 // pred_check
        %p121 = pneg %p77
      $region18: #{dino_forward.3} parent=11 // pred_check_branch
        %123 = sbr.rel (%p121) target = $region20
      $region19: #{dino_forward.3} parent=11 // pred_region
        _
      $region20: #{dino_forward.3} parent=11 // pred_fallthru
        _
    $region12: #{dino_forward.3} parent=5 // pred_fallthru
      _
    %p124 = scmp.lt.s32.totalorder %s9, 2
    // Predicated region
    $region21: #{dino_forward.3} parent=5 // pred_check
      %p125 = pneg %p124
    $region22: #{dino_forward.3} parent=5 // pred_check_branch
      %127 = sbr.rel (%p125) target = $region24
    $region23: #{dino_forward.3} parent=5 // pred_region
      // Predicated region
      $region25: #{dino_forward.3} parent=23 // pred_check
        %p128 = pneg %p29
      $region26: #{dino_forward.3} parent=23 // pred_check_branch
        %130 = sbr.rel (%p128) target = $region28
      $region27: #{dino_forward.3} parent=23 // pred_region
        %p131 = scmp.lt.s32.totalorder %s9, 1
        %s132 = scalar_select %p131, %s9, 1
        %s133 = smul.addr %s132, 5
        %s134 = smul.addr %s133, 4
        %s135 = scalar_lea.vmem %s0, %s134
      $region28: #{dino_forward.3} parent=23 // pred_fallthru
        _
    $region24: #{dino_forward.3} parent=5 // pred_fallthru
      _
    %p136 = scmp.le.s32.totalorder 1, %s9
    %p137 = scmp.lt.s32.totalorder %s9, 3
    %p138 = pnand %p136, %p137
    %p139 = pneg %p138
    // Predicated region
    $region29: #{dino_forward.3} parent=5 // pred_check
      _
    $region30: #{dino_forward.3} parent=5 // pred_check_branch
      %141 = sbr.rel (%p138) target = $region32
    $region31: #{dino_forward.3} parent=5 // pred_region
      %s142 = ssub.s32 %s9, 1
      %p143 = scmp.lt.s32.totalorder %s14, 1
      %s144 = scalar_select %p143, %s14, 1
      %s145 = smul.addr %s144, 5
      %s146 = smul.addr %s145, 4
      %s147 = scalar_lea.vmem %s0, %s146
      %p148 = pneg %p35
      %p149 = pneg %p32
      %p150 = pneg %p56
      %p151 = pneg %p53
      %p152 = pneg %p77
      %p153 = pneg %p74
      %p154 = pneg %p103
      %p155 = pneg %p100
      %p156 = scmp.lt.s32.totalorder %s14, 1
      %s157 = scalar_select %p156, %s14, 1
      %s158 = smul.addr %s157, 4
      %s159 = scalar_lea.vmem %s3, %s158
      %p160 = scmp.lt.s32.totalorder %s14, 1
      %s161 = scalar_select %p160, %s14, 1
      %s162 = smul.addr %s161, 5
      %s163 = smul.addr %s162, 4
      %s164 = scalar_lea.vmem %s0, %s163
      %p165 = scmp.lt.s32.totalorder %s14, 1
      %s166 = scalar_select %p165, %s14, 1
      %s167 = smul.addr %s166, 4
      %s168 = scalar_lea.vmem %s3, %s167
      %v170 = vld [vmem:[%s164] sm:$0xff]
      %v171 = vld [vmem:[%s164 + $0x8] sm:$0xff]
      %v172 = vld [vmem:[%s164 + $0x10] sm:$0xf]
      %v175 = vcombine.high %v170, %v170
      %v176 = vcombine.high %v171, %v171
      %v179 = vpack.c.bf16 %v170, %v170
      %v180 = vpack.c.bf16 %v175, %v175
      %v181 = vpack.c.bf16 %v171, %v171
      %v182 = vpack.c.bf16 %v176, %v176
      %v183 = vpack.c.bf16 %v172, %v172
      %v184 = vld [vmem:[%s1] sm:$0xf]
      %v185 = vld [vmem:[%s1 + $0x4] sm:$0xf]
      %v186 = vld [vmem:[%s1 + $0x8] sm:$0xf]
      %v187 = vld [vmem:[%s1 + $0xc] sm:$0xf]
      %v188 = vld [vmem:[%s1 + $0x10] sm:$0xf]
      %v189 = vld [vmem:[%s1 + $0x14] sm:$0xf]
      %v190 = vld [vmem:[%s1 + $0x18] sm:$0xf]
      %v191 = vld [vmem:[%s1 + $0x1c] sm:$0xf]
      %v192 = vld [vmem:[%s1 + $0x20] sm:$0xf]
      %v193 = vld [vmem:[%s1 + $0x24] sm:$0xf]
      %v194 = vld [vmem:[%s1 + $0x28] sm:$0xf]
      %v195 = vld [vmem:[%s1 + $0x2c] sm:$0xf]
      %v196 = vld [vmem:[%s1 + $0x30] sm:$0xf]
      %v197 = vld [vmem:[%s1 + $0x34] sm:$0xf]
      %v198 = vld [vmem:[%s1 + $0x38] sm:$0xf]
      %v199 = vld [vmem:[%s1 + $0x3c] sm:$0xf]
      %v200 = vld [vmem:[%s1 + $0x40] sm:$0xf]
      %v201 = vld [vmem:[%s1 + $0x44] sm:$0xf]
      %v202 = vld [vmem:[%s1 + $0x48] sm:$0xf]
      %v203 = vld [vmem:[%s1 + $0x4c] sm:$0xf]
      %v204 = vld [vmem:[%s1 + $0x50] sm:$0xf]
      %v205 = vld [vmem:[%s1 + $0x54] sm:$0xf]
      %v206 = vld [vmem:[%s1 + $0x58] sm:$0xf]
      %v207 = vld [vmem:[%s1 + $0x5c] sm:$0xf]
      %v208 = vld [vmem:[%s1 + $0x60] sm:$0xf]
      %v209 = vld [vmem:[%s1 + $0x64] sm:$0xf]
      %v210 = vld [vmem:[%s1 + $0x68] sm:$0xf]
      %v211 = vld [vmem:[%s1 + $0x6c] sm:$0xf]
      %v212 = vld [vmem:[%s1 + $0x70] sm:$0xf]
      %v213 = vld [vmem:[%s1 + $0x74] sm:$0xf]
      %v214 = vld [vmem:[%s1 + $0x78] sm:$0xf]
      %v215 = vld [vmem:[%s1 + $0x7c] sm:$0xf]
      %v216 = vld [vmem:[%s1 + $0x80] sm:$0xf]
      %v217 = vld [vmem:[%s1 + $0x84] sm:$0xf]
      %v218 = vld [vmem:[%s1 + $0x88] sm:$0xf]
      %v219 = vld [vmem:[%s1 + $0x8c] sm:$0xf]
      %v220 = vld [vmem:[%s1 + $0x90] sm:$0xf]
      %v221 = vld [vmem:[%s1 + $0x94] sm:$0xf]
      %v222 = vld [vmem:[%s1 + $0x98] sm:$0xf]
      %v223 = vld [vmem:[%s1 + $0x9c] sm:$0xf]
      %v224 = vld [vmem:[%s1 + $0xa0] sm:$0xf]
      %v225 = vld [vmem:[%s1 + $0xa4] sm:$0xf]
      %v226 = vld [vmem:[%s1 + $0xa8] sm:$0xf]
      %v227 = vld [vmem:[%s1 + $0xac] sm:$0xf]
      %v228 = vld [vmem:[%s1 + $0xb0] sm:$0xf]
      %v229 = vld [vmem:[%s1 + $0xb4] sm:$0xf]
      %v230 = vld [vmem:[%s1 + $0xb8] sm:$0xf]
      %v231 = vld [vmem:[%s1 + $0xbc] sm:$0xf]
      %v232 = vld [vmem:[%s1 + $0xc0] sm:$0xf]
      %v233 = vld [vmem:[%s1 + $0xc4] sm:$0xf]
      %v234 = vld [vmem:[%s1 + $0xc8] sm:$0xf]
      %v235 = vld [vmem:[%s1 + $0xcc] sm:$0xf]
      %v236 = vld [vmem:[%s1 + $0xd0] sm:$0xf]
      %v237 = vld [vmem:[%s1 + $0xd4] sm:$0xf]
      %v238 = vld [vmem:[%s1 + $0xd8] sm:$0xf]
      %v239 = vld [vmem:[%s1 + $0xdc] sm:$0xf]
      %v240 = vld [vmem:[%s1 + $0xe0] sm:$0xf]
      %v241 = vld [vmem:[%s1 + $0xe4] sm:$0xf]
      %v242 = vld [vmem:[%s1 + $0xe8] sm:$0xf]
      %v243 = vld [vmem:[%s1 + $0xec] sm:$0xf]
      %v244 = vld [vmem:[%s1 + $0xf0] sm:$0xf]
      %v245 = vld [vmem:[%s1 + $0xf4] sm:$0xf]
      %v246 = vld [vmem:[%s1 + $0xf8] sm:$0xf]
      %v247 = vld [vmem:[%s1 + $0xfc] sm:$0xf]
      %v248 = vld [vmem:[%s1 + $0x100] sm:$0xf]
      %v249 = vld [vmem:[%s1 + $0x104] sm:$0xf]
      %v250 = vld [vmem:[%s1 + $0x108] sm:$0xf]
      %v251 = vld [vmem:[%s1 + $0x10c] sm:$0xf]
      %v252 = vld [vmem:[%s1 + $0x110] sm:$0xf]
      %v253 = vld [vmem:[%s1 + $0x114] sm:$0xf]
      %v254 = vld [vmem:[%s1 + $0x118] sm:$0xf]
      %v255 = vld [vmem:[%s1 + $0x11c] sm:$0xf]
      %v256 = vld [vmem:[%s1 + $0x120] sm:$0xf]
      %v257 = vld [vmem:[%s1 + $0x124] sm:$0xf]
      %v258 = vld [vmem:[%s1 + $0x128] sm:$0xf]
      %v259 = vld [vmem:[%s1 + $0x12c] sm:$0xf]
      %v260 = vld [vmem:[%s1 + $0x130] sm:$0xf]
      %v261 = vld [vmem:[%s1 + $0x134] sm:$0xf]
      %v262 = vld [vmem:[%s1 + $0x138] sm:$0xf]
      %v263 = vld [vmem:[%s1 + $0x13c] sm:$0xf]
      %v264 = vld [vmem:[%s2] sm:$0x1]
      %v266 = vlaneseq
      %v267 = vshrl.u32 %v266, 7
      %v268 = vsub.s32 0, %v267
      %v269 = vrot.slane %v264, %v268
      %v351 = vunpack.c.l.b16 %v184
      %v352 = vunpack.c.l.b16 %v185
      %v353 = vunpack.c.l.b16 %v186
      %v354 = vunpack.c.l.b16 %v187
      %v355 = vunpack.c.l.b16 %v188
      %v356 = vunpack.c.l.b16 %v189
      %v357 = vunpack.c.l.b16 %v190
      %v358 = vunpack.c.l.b16 %v191
      %v359 = vunpack.c.l.b16 %v192
      %v360 = vunpack.c.l.b16 %v193
      %v361 = vunpack.c.l.b16 %v194
      %v362 = vunpack.c.l.b16 %v195
      %v363 = vunpack.c.l.b16 %v196
      %v364 = vunpack.c.l.b16 %v197
      %v365 = vunpack.c.l.b16 %v198
      %v366 = vunpack.c.l.b16 %v199
      %v367 = vunpack.c.l.b16 %v200
      %v368 = vunpack.c.l.b16 %v201
      %v369 = vunpack.c.l.b16 %v202
      %v370 = vunpack.c.l.b16 %v203
      %v371 = vunpack.c.l.b16 %v204
      %v372 = vunpack.c.l.b16 %v205
      %v373 = vunpack.c.l.b16 %v206
      %v374 = vunpack.c.l.b16 %v207
      %v375 = vunpack.c.l.b16 %v208
      %v376 = vunpack.c.l.b16 %v209
      %v377 = vunpack.c.l.b16 %v210
      %v378 = vunpack.c.l.b16 %v211
      %v379 = vunpack.c.l.b16 %v212
      %v380 = vunpack.c.l.b16 %v213
      %v381 = vunpack.c.l.b16 %v214
      %v382 = vunpack.c.l.b16 %v215
      %v383 = vunpack.c.l.b16 %v216
      %v384 = vunpack.c.l.b16 %v217
      %v385 = vunpack.c.l.b16 %v218
      %v386 = vunpack.c.l.b16 %v219
      %v387 = vunpack.c.l.b16 %v220
      %v388 = vunpack.c.l.b16 %v221
      %v389 = vunpack.c.l.b16 %v222
      %v390 = vunpack.c.l.b16 %v223
      %v391 = vunpack.c.l.b16 %v224
      %v392 = vunpack.c.l.b16 %v225
      %v393 = vunpack.c.l.b16 %v226
      %v394 = vunpack.c.l.b16 %v227
      %v395 = vunpack.c.l.b16 %v228
      %v396 = vunpack.c.l.b16 %v229
      %v397 = vunpack.c.l.b16 %v230
      %v398 = vunpack.c.l.b16 %v231
      %v399 = vunpack.c.l.b16 %v232
      %v400 = vunpack.c.l.b16 %v233
      %v401 = vunpack.c.l.b16 %v234
      %v402 = vunpack.c.l.b16 %v235
      %v403 = vunpack.c.l.b16 %v236
      %v404 = vunpack.c.l.b16 %v237
      %v405 = vunpack.c.l.b16 %v238
      %v406 = vunpack.c.l.b16 %v239
      %v407 = vunpack.c.l.b16 %v240
      %v408 = vunpack.c.l.b16 %v241
      %v409 = vunpack.c.l.b16 %v242
      %v410 = vunpack.c.l.b16 %v243
      %v411 = vunpack.c.l.b16 %v244
      %v412 = vunpack.c.l.b16 %v245
      %v413 = vunpack.c.l.b16 %v246
      %v414 = vunpack.c.l.b16 %v247
      %v415 = vunpack.c.l.b16 %v248
      %v416 = vunpack.c.l.b16 %v249
      %v417 = vunpack.c.l.b16 %v250
      %v418 = vunpack.c.l.b16 %v251
      %v419 = vunpack.c.l.b16 %v252
      %v420 = vunpack.c.l.b16 %v253
      %v421 = vunpack.c.l.b16 %v254
      %v422 = vunpack.c.l.b16 %v255
      %v423 = vunpack.c.l.b16 %v256
      %v424 = vunpack.c.l.b16 %v257
      %v425 = vunpack.c.l.b16 %v258
      %v426 = vunpack.c.l.b16 %v259
      %v427 = vunpack.c.l.b16 %v260
      %v428 = vunpack.c.l.b16 %v261
      %v429 = vunpack.c.l.b16 %v262
      %v430 = vunpack.c.l.b16 %v263
      %v431 = vpack.c.b16 %v352, %v351
      %v432 = vpack.c.b16 %v354, %v353
      %v433 = vpack.c.b16 %v356, %v355
      %v434 = vpack.c.b16 %v358, %v357
      %v435 = vpack.c.b16 %v360, %v359
      %v436 = vpack.c.b16 %v362, %v361
      %v437 = vpack.c.b16 %v364, %v363
      %v438 = vpack.c.b16 %v366, %v365
      %v439 = vpack.c.b16 %v368, %v367
      %v440 = vpack.c.b16 %v370, %v369
      %v441 = vpack.c.b16 %v372, %v371
      %v442 = vpack.c.b16 %v374, %v373
      %v443 = vpack.c.b16 %v376, %v375
      %v444 = vpack.c.b16 %v378, %v377
      %v445 = vpack.c.b16 %v380, %v379
      %v446 = vpack.c.b16 %v382, %v381
      %v447 = vpack.c.b16 %v384, %v383
      %v448 = vpack.c.b16 %v386, %v385
      %v449 = vpack.c.b16 %v388, %v387
      %v450 = vpack.c.b16 %v390, %v389
      %v451 = vpack.c.b16 %v392, %v391
      %v452 = vpack.c.b16 %v394, %v393
      %v453 = vpack.c.b16 %v396, %v395
      %v454 = vpack.c.b16 %v398, %v397
      %v455 = vpack.c.b16 %v400, %v399
      %v456 = vpack.c.b16 %v402, %v401
      %v457 = vpack.c.b16 %v404, %v403
      %v458 = vpack.c.b16 %v406, %v405
      %v459 = vpack.c.b16 %v408, %v407
      %v460 = vpack.c.b16 %v410, %v409
      %v461 = vpack.c.b16 %v412, %v411
      %v462 = vpack.c.b16 %v414, %v413
      %v463 = vpack.c.b16 %v416, %v415
      %v464 = vpack.c.b16 %v418, %v417
      %v465 = vpack.c.b16 %v420, %v419
      %v466 = vpack.c.b16 %v422, %v421
      %v467 = vpack.c.b16 %v424, %v423
      %v468 = vpack.c.b16 %v426, %v425
      %v469 = vpack.c.b16 %v428, %v427
      %v470 = vpack.c.b16 %v430, %v429
      %511 = vmatprep.subr.bf16.mxu0 0
      %512 = vmatpush1.bf16.msra.mxu0 %v431
      %513 = vmatprep.subr.bf16.mxu0 0
      %514 = vmatpush1.bf16.msra.mxu0 %v432
      %515 = vmatprep.subr.bf16.mxu0 0
      %516 = vmatpush1.bf16.msra.mxu0 %v433
      %517 = vmatprep.subr.bf16.mxu0 0
      %518 = vmatpush1.bf16.msra.mxu0 %v434
      %519 = vmatprep.subr.bf16.mxu0 0
      %520 = vmatpush1.bf16.msra.mxu0 %v435
      %521 = vmatprep.subr.bf16.mxu0 0
      %522 = vmatpush1.bf16.msra.mxu0 %v436
      %523 = vmatprep.subr.bf16.mxu0 0
      %524 = vmatpush1.bf16.msra.mxu0 %v437
      %525 = vmatprep.subr.bf16.mxu0 0
      %526 = vmatpush1.bf16.msra.mxu0 %v438
      %527 = vmatprep.subr.bf16.mxu0 0
      %528 = vmatpush1.bf16.msra.mxu0 %v439
      %529 = vmatprep.subr.bf16.mxu0 0
      %530 = vmatpush1.bf16.msra.mxu0 %v440
      %531 = vmatprep.subr.bf16.mxu0 0
      %532 = vmatpush1.bf16.msra.mxu0 %v441
      %533 = vmatprep.subr.bf16.mxu0 0
      %534 = vmatpush1.bf16.msra.mxu0 %v442
      %535 = vmatprep.subr.bf16.mxu0 0
      %536 = vmatpush1.bf16.msra.mxu0 %v443
      %537 = vmatprep.subr.bf16.mxu0 0
      %538 = vmatpush1.bf16.msra.mxu0 %v444
      %539 = vmatprep.subr.bf16.mxu0 0
      %540 = vmatpush1.bf16.msra.mxu0 %v445
      %541 = vmatprep.subr.bf16.mxu0 0
      %542 = vmatpush1.bf16.msra.mxu0 %v446
      %543 = vmatprep.mubr.bf16.mxu0 %v180
      %544 = vmatmul.mubr.bf16.gmra.mrb[0].mxu0 %v179
      %v545 = vpop.f32.mrb[0].mxu0
      %v546 = vadd.f32 %v269, %v545
      %v547 = vpop.f32.mrb[0].mxu0
      %v548 = vpop.f32.mrb[0].mxu0
      %v549 = vpop.f32.mrb[0].mxu0
      %550 = vdwg.mxu0
      %551 = vmatprep.subr.bf16.mxu0 0
      %552 = vmatpush1.bf16.msra.mxu0 %v447
      %553 = vmatprep.subr.bf16.mxu0 0
      %554 = vmatpush1.bf16.msra.mxu0 %v448
      %555 = vmatprep.subr.bf16.mxu0 0
      %556 = vmatpush1.bf16.msra.mxu0 %v449
      %557 = vmatprep.subr.bf16.mxu0 0
      %558 = vmatpush1.bf16.msra.mxu0 %v450
      %559 = vmatprep.subr.bf16.mxu0 0
      %560 = vmatpush1.bf16.msra.mxu0 %v451
      %561 = vmatprep.subr.bf16.mxu0 0
      %562 = vmatpush1.bf16.msra.mxu0 %v452
      %563 = vmatprep.subr.bf16.mxu0 0
      %564 = vmatpush1.bf16.msra.mxu0 %v453
      %565 = vmatprep.subr.bf16.mxu0 0
      %566 = vmatpush1.bf16.msra.mxu0 %v454
      %567 = vmatprep.subr.bf16.mxu0 0
      %568 = vmatpush1.bf16.msra.mxu0 %v455
      %569 = vmatprep.subr.bf16.mxu0 0
      %570 = vmatpush1.bf16.msra.mxu0 %v456
      %571 = vmatprep.subr.bf16.mxu0 0
      %572 = vmatpush1.bf16.msra.mxu0 %v457
      %573 = vmatprep.subr.bf16.mxu0 0
      %574 = vmatpush1.bf16.msra.mxu0 %v458
      %575 = vmatprep.subr.bf16.mxu0 0
      %576 = vmatpush1.bf16.msra.mxu0 %v459
      %577 = vmatprep.subr.bf16.mxu0 0
      %578 = vmatpush1.bf16.msra.mxu0 %v460
      %579 = vmatprep.subr.bf16.mxu0 0
      %580 = vmatpush1.bf16.msra.mxu0 %v461
      %581 = vmatprep.subr.bf16.mxu0 0
      %582 = vmatpush1.bf16.msra.mxu0 %v462
      %583 = vmatprep.mubr.bf16.mxu0 %v182
      %584 = vmatmul.mubr.bf16.gmra.mrb[0].mxu0 %v181
      %v585 = vpop.f32.mrb[0].mxu0
      %v586 = vadd.f32 %v546, %v585
      %v587 = vpop.f32.mrb[0].mxu0
      %v588 = vpop.f32.mrb[0].mxu0
      %v589 = vpop.f32.mrb[0].mxu0
      %590 = vdwg.mxu0
      %591 = vmatprep.subr.bf16.mxu0 0
      %592 = vmatpush1.bf16.msra.mxu0 %v463
      %593 = vmatprep.subr.bf16.mxu0 0
      %594 = vmatpush1.bf16.msra.mxu0 %v464
      %595 = vmatprep.subr.bf16.mxu0 0
      %596 = vmatpush1.bf16.msra.mxu0 %v465
      %597 = vmatprep.subr.bf16.mxu0 0
      %598 = vmatpush1.bf16.msra.mxu0 %v466
      %599 = vmatprep.subr.bf16.mxu0 0
      %600 = vmatpush1.bf16.msra.mxu0 %v467
      %601 = vmatprep.subr.bf16.mxu0 0
      %602 = vmatpush1.bf16.msra.mxu0 %v468
      %603 = vmatprep.subr.bf16.mxu0 0
      %604 = vmatpush1.bf16.msra.mxu0 %v469
      %605 = vmatprep.subr.bf16.mxu0 0
      %606 = vmatpush1.bf16.msra.mxu0 %v470
      %607 = vmatprep.subr.bf16.mxu0 0
      %608 = vmatpush1.bf16.msra.mxu0 0
      %609 = vmatprep.subr.bf16.mxu0 0
      %610 = vmatpush1.bf16.msra.mxu0 0
      %611 = vmatprep.subr.bf16.mxu0 0
      %612 = vmatpush1.bf16.msra.mxu0 0
      %613 = vmatprep.subr.bf16.mxu0 0
      %614 = vmatpush1.bf16.msra.mxu0 0
      %615 = vmatprep.subr.bf16.mxu0 0
      %616 = vmatpush1.bf16.msra.mxu0 0
      %617 = vmatprep.subr.bf16.mxu0 0
      %618 = vmatpush1.bf16.msra.mxu0 0
      %619 = vmatprep.subr.bf16.mxu0 0
      %620 = vmatpush1.bf16.msra.mxu0 0
      %621 = vmatprep.subr.bf16.mxu0 0
      %622 = vmatpush1.bf16.msra.mxu0 0
      %623 = vmatprep.mubr.bf16.mxu0 0
      %624 = vmatmul.mubr.bf16.gmra.mrb[0].mxu0 %v183
      %v625 = vpop.f32.mrb[0].mxu0
      %v626 = vadd.f32 %v586, %v625
      %v627 = vpop.f32.mrb[0].mxu0
      %v628 = vpop.f32.mrb[0].mxu0
      %v629 = vpop.f32.mrb[0].mxu0
      %630 = vdwg.mxu0
      %631 = vst [vmem:[%s168] sm:$0xf] %v626
      %p632 = scmp.lt.s32.totalorder %s14, 1
      %s633 = scalar_select %p632, %s14, 1
      %s634 = smul.addr %s633, 4
      %s635 = scalar_lea.vmem %s3, %s634
      // Predicated region
      $region33: #{dino_forward.3} parent=31 // pred_check
        %p636 = pneg %p100
      $region34: #{dino_forward.3} parent=31 // pred_check_branch
        %638 = sbr.rel (%p636) target = $region36
      $region35: #{dino_forward.3} parent=31 // pred_region
        _
      $region36: #{dino_forward.3} parent=31 // pred_fallthru
        _
    $region32: #{dino_forward.3} parent=5 // pred_fallthru
      _
    %p639 = scmp.le.s32.totalorder 2, %s9
    // Predicated region
    $region37: #{dino_forward.3} parent=5 // pred_check
      %p640 = pneg %p639
    $region38: #{dino_forward.3} parent=5 // pred_check_branch
      %642 = sbr.rel (%p640) target = $region40
    $region39: #{dino_forward.3} parent=5 // pred_region
      %s643 = ssub.s32 %s9, 2
      // Predicated region
      $region41: #{dino_forward.3} parent=39 // pred_check
        %p644 = pneg %p106
      $region42: #{dino_forward.3} parent=39 // pred_check_branch
        %646 = sbr.rel (%p644) target = $region44
      $region43: #{dino_forward.3} parent=39 // pred_region
        %p647 = scmp.lt.s32.totalorder %s15, 1
        %s648 = scalar_select %p647, %s15, 1
        %s649 = smul.addr %s648, 4
        %s650 = scalar_lea.vmem %s3, %s649
      $region44: #{dino_forward.3} parent=39 // pred_fallthru
        _
    $region40: #{dino_forward.3} parent=5 // pred_fallthru
      _
  $region6: #{dino_forward.3} parent=0 // loop_footer
    %s13 = sadd.s32 1, %s9
  $region7: #{dino_forward.3} parent=0 // loop_footer_branch
    %8 = sbr.rel target = $region3
  $region8: #{dino_forward.3} parent=0 // loop_exit
    _

// kernel: dino_forward.4
$region0: #{dino_forward.4}
  #allocation0 [shape = 'u32[]', space=smem, size = 0x4, offset = 0x4, fixed_abs, tag = 'smem constant byte address 0x4 - core index']
  #allocation1 [shape = 'u32[144,128]{1,0:T(1,128)}', space=vmem, size = 0x12000, scoped, tag = 'internal scratch']
  %s0 = inlined_call_operand.vmem [shape: f32[2,16,128], index: 0, kind: input, shape index: {}]
  %s1 = inlined_call_operand.vmem [shape: f32[1,16], index: 1, kind: input, shape index: {}]
  %s2 = inlined_call_operand.vmem [shape: f32[1,128], index: 2, kind: input, shape index: {}]
  %s3 = inlined_call_operand.vmem [shape: f32[1,128], index: 3, kind: input, shape index: {}]
  %s4 = inlined_call_operand.vmem [shape: bf16[128,384], index: 4, kind: input, shape index: {}]
  %s5 = inlined_call_operand.vmem [shape: f32[1,384], index: 5, kind: input, shape index: {}]
  %s6 = inlined_call_operand.vmem [shape: bf16[128,128], index: 6, kind: input, shape index: {}]
  %s7 = inlined_call_operand.vmem [shape: f32[1,128], index: 7, kind: input, shape index: {}]
  %s8 = inlined_call_operand.vmem [shape: f32[1,128], index: 8, kind: input, shape index: {}]
  %s9 = inlined_call_operand.vmem [shape: f32[1,128], index: 9, kind: input, shape index: {}]
  %s10 = inlined_call_operand.vmem [shape: bf16[128,512], index: 10, kind: input, shape index: {}]
  %s11 = inlined_call_operand.vmem [shape: f32[1,512], index: 11, kind: input, shape index: {}]
  %s12 = inlined_call_operand.vmem [shape: bf16[512,128], index: 12, kind: input, shape index: {}]
  %s13 = inlined_call_operand.vmem [shape: f32[1,128], index: 13, kind: input, shape index: {}]
  %s14 = inlined_call_operand.vmem [shape: f32[2,16,128], index: 14, kind: output, shape index: {}]
  %s15 = sld [smem:[#allocation0]]
  $region89: #{dino_forward.4} parent=0
    _
  %s17 = ssub.s32 1, %s15
  %s18 = scalar_select 0, %s17, %s15
  loop: start=0, step=1, limit=4
  $region2: #{dino_forward.4} parent=0 // loop_pre_header
    _
  $region3: #{dino_forward.4} parent=0 // loop_header
    %s20 = sphi 0, %s24
    %p21 = scmp.ge.s32.totalorder %s20, 4
    %s30 = sphi 0, %s32
    %s33 = sphi 0, %s30
    %s34 = sphi 0, %s33
    %s50 = sphi 0, %s34
    %s54 = sphi 0, %s54
    %s56 = sphi 0, %s54
    %s57 = sphi 0, %s56
    %s71 = sphi 0, %s57
    %s75 = sphi 0, %s75
    %s77 = sphi 0, %s75
    %s78 = sphi 0, %s77
    %s92 = sphi 0, %s78
    %s96 = sphi 0, %s96
    %s98 = sphi 0, %s96
    %s99 = sphi 0, %s98
    %s113 = sphi 0, %s99
    %s117 = sphi 0, %s117
    %s119 = sphi 0, %s117
    %s120 = sphi 0, %s119
    %s134 = sphi 0, %s120
    %s138 = sphi 0, %s138
    %s140 = sphi 0, %s138
    %s141 = sphi 0, %s140
    %s155 = sphi 0, %s141
    %s159 = sphi 0, %s159
    %s161 = sphi 0, %s159
    %s162 = sphi 0, %s161
    %s176 = sphi 0, %s162
    %s180 = sphi 0, %s180
    %s182 = sphi 0, %s180
    %s183 = sphi 0, %s182
    %s197 = sphi 0, %s183
    %s201 = sphi 0, %s201
    %s203 = sphi 0, %s201
    %s204 = sphi 0, %s203
    %s218 = sphi 0, %s204
    %s222 = sphi 0, %s222
    %s224 = sphi 0, %s222
    %s225 = sphi 0, %s224
    %s239 = sphi 0, %s225
    %s243 = sphi 0, %s243
    %s245 = sphi 0, %s243
    %s246 = sphi 0, %s245
    %s260 = sphi 0, %s246
    %s264 = sphi 0, %s264
    %s266 = sphi 0, %s264
    %s267 = sphi 0, %s266
    %s281 = sphi 0, %s267
    %s285 = sphi 0, %s285
    %s287 = sphi 0, %s285
    %s288 = sphi 0, %s287
    %s302 = sphi 0, %s288
    %s306 = sphi 0, %s306
    %s308 = sphi 0, %s306
    %s309 = sphi 0, %s308
    %s323 = sphi 0, %s309
    %s329 = sphi 0, %s331
    %s332 = sphi 0, %s329
    %s333 = sphi 0, %s332
    %s349 = sphi 0, %s333
  $region4: #{dino_forward.4} parent=0 // loop_header_branch
    %23 = sbr.rel (%p21) target = $region8
  $region5: #{dino_forward.4} parent=0 // loop_body
    %s25 = ssub.s32 %s20, 1
    %s26 = ssub.s32 %s20, 2
    %s27 = sadd.s32 %s20, 1
    %s28 = ssub.s32 %s20, %s27
    %p29 = scmp.eq.s32.totalorder %s28, 0
    %s31 = sadd.s32 %s30, 1
    %s32 = scalar_select %p29, %s30, %s31
    %p35 = pneg %p29
    %p36 = scmp.eq.s32.totalorder %s20, 1
    %p37 = por %p35, %p36
    %p38 = scmp.ne.s32.totalorder %s30, %s33
    %p39 = scmp.eq.s32.totalorder %s20, 0
    %p40 = por %p38, %p39
    %p41 = scmp.ne.s32.totalorder %s30, %s33
    %p42 = scmp.eq.s32.totalorder %s25, 1
    %p43 = por %p41, %p42
    %p44 = scmp.ne.s32.totalorder %s33, %s34
    %p45 = scmp.eq.s32.totalorder %s25, 0
    %p46 = por %p44, %p45
    %p47 = scmp.ne.s32.totalorder %s33, %s34
    %p48 = scmp.eq.s32.totalorder %s26, 1
    %p49 = por %p47, %p48
    %p51 = scmp.ne.s32.totalorder %s34, %s50
    %p52 = scmp.eq.s32.totalorder %s26, 0
    %p53 = por %p51, %p52
    %s55 = sadd.s32 %s54, 1
    %p58 = scmp.eq.s32.totalorder %s20, 1
    %p59 = scmp.ne.s32.totalorder %s54, %s56
    %p60 = scmp.eq.s32.totalorder %s20, 0
    %p61 = por %p59, %p60
    %p62 = scmp.ne.s32.totalorder %s54, %s56
    %p63 = scmp.eq.s32.totalorder %s25, 1
    %p64 = por %p62, %p63
    %p65 = scmp.ne.s32.totalorder %s56, %s57
    %p66 = scmp.eq.s32.totalorder %s25, 0
    %p67 = por %p65, %p66
    %p68 = scmp.ne.s32.totalorder %s56, %s57
    %p69 = scmp.eq.s32.totalorder %s26, 1
    %p70 = por %p68, %p69
    %p72 = scmp.ne.s32.totalorder %s57, %s71
    %p73 = scmp.eq.s32.totalorder %s26, 0
    %p74 = por %p72, %p73
    %s76 = sadd.s32 %s75, 1
    %p79 = scmp.eq.s32.totalorder %s20, 1
    %p80 = scmp.ne.s32.totalorder %s75, %s77
    %p81 = scmp.eq.s32.totalorder %s20, 0
    %p82 = por %p80, %p81
    %p83 = scmp.ne.s32.totalorder %s75, %s77
    %p84 = scmp.eq.s32.totalorder %s25, 1
    %p85 = por %p83, %p84
    %p86 = scmp.ne.s32.totalorder %s77, %s78
    %p87 = scmp.eq.s32.totalorder %s25, 0
    %p88 = por %p86, %p87
    %p89 = scmp.ne.s32.totalorder %s77, %s78
    %p90 = scmp.eq.s32.totalorder %s26, 1
    %p91 = por %p89, %p90
    %p93 = scmp.ne.s32.totalorder %s78, %s92
    %p94 = scmp.eq.s32.totalorder %s26, 0
    %p95 = por %p93, %p94
    %s97 = sadd.s32 %s96, 1
    %p100 = scmp.eq.s32.totalorder %s20, 1
    %p101 = scmp.ne.s32.totalorder %s96, %s98
    %p102 = scmp.eq.s32.totalorder %s20, 0
    %p103 = por %p101, %p102
    %p104 = scmp.ne.s32.totalorder %s96, %s98
    %p105 = scmp.eq.s32.totalorder %s25, 1
    %p106 = por %p104, %p105
    %p107 = scmp.ne.s32.totalorder %s98, %s99
    %p108 = scmp.eq.s32.totalorder %s25, 0
    %p109 = por %p107, %p108
    %p110 = scmp.ne.s32.totalorder %s98, %s99
    %p111 = scmp.eq.s32.totalorder %s26, 1
    %p112 = por %p110, %p111
    %p114 = scmp.ne.s32.totalorder %s99, %s113
    %p115 = scmp.eq.s32.totalorder %s26, 0
    %p116 = por %p114, %p115
    %s118 = sadd.s32 %s117, 1
    %p121 = scmp.eq.s32.totalorder %s20, 1
    %p122 = scmp.ne.s32.totalorder %s117, %s119
    %p123 = scmp.eq.s32.totalorder %s20, 0
    %p124 = por %p122, %p123
    %p125 = scmp.ne.s32.totalorder %s117, %s119
    %p126 = scmp.eq.s32.totalorder %s25, 1
    %p127 = por %p125, %p126
    %p128 = scmp.ne.s32.totalorder %s119, %s120
    %p129 = scmp.eq.s32.totalorder %s25, 0
    %p130 = por %p128, %p129
    %p131 = scmp.ne.s32.totalorder %s119, %s120
    %p132 = scmp.eq.s32.totalorder %s26, 1
    %p133 = por %p131, %p132
    %p135 = scmp.ne.s32.totalorder %s120, %s134
    %p136 = scmp.eq.s32.totalorder %s26, 0
    %p137 = por %p135, %p136
    %s139 = sadd.s32 %s138, 1
    %p142 = scmp.eq.s32.totalorder %s20, 1
    %p143 = scmp.ne.s32.totalorder %s138, %s140
    %p144 = scmp.eq.s32.totalorder %s20, 0
    %p145 = por %p143, %p144
    %p146 = scmp.ne.s32.totalorder %s138, %s140
    %p147 = scmp.eq.s32.totalorder %s25, 1
    %p148 = por %p146, %p147
    %p149 = scmp.ne.s32.totalorder %s140, %s141
    %p150 = scmp.eq.s32.totalorder %s25, 0
    %p151 = por %p149, %p150
    %p152 = scmp.ne.s32.totalorder %s140, %s141
    %p153 = scmp.eq.s32.totalorder %s26, 1
    %p154 = por %p152, %p153
    %p156 = scmp.ne.s32.totalorder %s141, %s155
    %p157 = scmp.eq.s32.totalorder %s26, 0
    %p158 = por %p156, %p157
    %s160 = sadd.s32 %s159, 1
    %p163 = scmp.eq.s32.totalorder %s20, 1
    %p164 = scmp.ne.s32.totalorder %s159, %s161
    %p165 = scmp.eq.s32.totalorder %s20, 0
    %p166 = por %p164, %p165
    %p167 = scmp.ne.s32.totalorder %s159, %s161
    %p168 = scmp.eq.s32.totalorder %s25, 1
    %p169 = por %p167, %p168
    %p170 = scmp.ne.s32.totalorder %s161, %s162
    %p171 = scmp.eq.s32.totalorder %s25, 0
    %p172 = por %p170, %p171
    %p173 = scmp.ne.s32.totalorder %s161, %s162
    %p174 = scmp.eq.s32.totalorder %s26, 1
    %p175 = por %p173, %p174
    %p177 = scmp.ne.s32.totalorder %s162, %s176
    %p178 = scmp.eq.s32.totalorder %s26, 0
    %p179 = por %p177, %p178
    %s181 = sadd.s32 %s180, 1
    %p184 = scmp.eq.s32.totalorder %s20, 1
    %p185 = scmp.ne.s32.totalorder %s180, %s182
    %p186 = scmp.eq.s32.totalorder %s20, 0
    %p187 = por %p185, %p186
    %p188 = scmp.ne.s32.totalorder %s180, %s182
    %p189 = scmp.eq.s32.totalorder %s25, 1
    %p190 = por %p188, %p189
    %p191 = scmp.ne.s32.totalorder %s182, %s183
    %p192 = scmp.eq.s32.totalorder %s25, 0
    %p193 = por %p191, %p192
    %p194 = scmp.ne.s32.totalorder %s182, %s183
    %p195 = scmp.eq.s32.totalorder %s26, 1
    %p196 = por %p194, %p195
    %p198 = scmp.ne.s32.totalorder %s183, %s197
    %p199 = scmp.eq.s32.totalorder %s26, 0
    %p200 = por %p198, %p199
    %s202 = sadd.s32 %s201, 1
    %p205 = scmp.eq.s32.totalorder %s20, 1
    %p206 = scmp.ne.s32.totalorder %s201, %s203
    %p207 = scmp.eq.s32.totalorder %s20, 0
    %p208 = por %p206, %p207
    %p209 = scmp.ne.s32.totalorder %s201, %s203
    %p210 = scmp.eq.s32.totalorder %s25, 1
    %p211 = por %p209, %p210
    %p212 = scmp.ne.s32.totalorder %s203, %s204
    %p213 = scmp.eq.s32.totalorder %s25, 0
    %p214 = por %p212, %p213
    %p215 = scmp.ne.s32.totalorder %s203, %s204
    %p216 = scmp.eq.s32.totalorder %s26, 1
    %p217 = por %p215, %p216
    %p219 = scmp.ne.s32.totalorder %s204, %s218
    %p220 = scmp.eq.s32.totalorder %s26, 0
    %p221 = por %p219, %p220
    %s223 = sadd.s32 %s222, 1
    %p226 = scmp.eq.s32.totalorder %s20, 1
    %p227 = scmp.ne.s32.totalorder %s222, %s224
    %p228 = scmp.eq.s32.totalorder %s20, 0
    %p229 = por %p227, %p228
    %p230 = scmp.ne.s32.totalorder %s222, %s224
    %p231 = scmp.eq.s32.totalorder %s25, 1
    %p232 = por %p230, %p231
    %p233 = scmp.ne.s32.totalorder %s224, %s225
    %p234 = scmp.eq.s32.totalorder %s25, 0
    %p235 = por %p233, %p234
    %p236 = scmp.ne.s32.totalorder %s224, %s225
    %p237 = scmp.eq.s32.totalorder %s26, 1
    %p238 = por %p236, %p237
    %p240 = scmp.ne.s32.totalorder %s225, %s239
    %p241 = scmp.eq.s32.totalorder %s26, 0
    %p242 = por %p240, %p241
    %s244 = sadd.s32 %s243, 1
    %p247 = scmp.eq.s32.totalorder %s20, 1
    %p248 = scmp.ne.s32.totalorder %s243, %s245
    %p249 = scmp.eq.s32.totalorder %s20, 0
    %p250 = por %p248, %p249
    %p251 = scmp.ne.s32.totalorder %s243, %s245
    %p252 = scmp.eq.s32.totalorder %s25, 1
    %p253 = por %p251, %p252
    %p254 = scmp.ne.s32.totalorder %s245, %s246
    %p255 = scmp.eq.s32.totalorder %s25, 0
    %p256 = por %p254, %p255
    %p257 = scmp.ne.s32.totalorder %s245, %s246
    %p258 = scmp.eq.s32.totalorder %s26, 1
    %p259 = por %p257, %p258
    %p261 = scmp.ne.s32.totalorder %s246, %s260
    %p262 = scmp.eq.s32.totalorder %s26, 0
    %p263 = por %p261, %p262
    %s265 = sadd.s32 %s264, 1
    %p268 = scmp.eq.s32.totalorder %s20, 1
    %p269 = scmp.ne.s32.totalorder %s264, %s266
    %p270 = scmp.eq.s32.totalorder %s20, 0
    %p271 = por %p269, %p270
    %p272 = scmp.ne.s32.totalorder %s264, %s266
    %p273 = scmp.eq.s32.totalorder %s25, 1
    %p274 = por %p272, %p273
    %p275 = scmp.ne.s32.totalorder %s266, %s267
    %p276 = scmp.eq.s32.totalorder %s25, 0
    %p277 = por %p275, %p276
    %p278 = scmp.ne.s32.totalorder %s266, %s267
    %p279 = scmp.eq.s32.totalorder %s26, 1
    %p280 = por %p278, %p279
    %p282 = scmp.ne.s32.totalorder %s267, %s281
    %p283 = scmp.eq.s32.totalorder %s26, 0
    %p284 = por %p282, %p283
    %s286 = sadd.s32 %s285, 1
    %p289 = scmp.eq.s32.totalorder %s20, 1
    %p290 = scmp.ne.s32.totalorder %s285, %s287
    %p291 = scmp.eq.s32.totalorder %s20, 0
    %p292 = por %p290, %p291
    %p293 = scmp.ne.s32.totalorder %s285, %s287
    %p294 = scmp.eq.s32.totalorder %s25, 1
    %p295 = por %p293, %p294
    %p296 = scmp.ne.s32.totalorder %s287, %s288
    %p297 = scmp.eq.s32.totalorder %s25, 0
    %p298 = por %p296, %p297
    %p299 = scmp.ne.s32.totalorder %s287, %s288
    %p300 = scmp.eq.s32.totalorder %s26, 1
    %p301 = por %p299, %p300
    %p303 = scmp.ne.s32.totalorder %s288, %s302
    %p304 = scmp.eq.s32.totalorder %s26, 0
    %p305 = por %p303, %p304
    %s307 = sadd.s32 %s306, 1
    %p310 = scmp.eq.s32.totalorder %s20, 1
    %p311 = scmp.ne.s32.totalorder %s306, %s308
    %p312 = scmp.eq.s32.totalorder %s20, 0
    %p313 = por %p311, %p312
    %p314 = scmp.ne.s32.totalorder %s306, %s308
    %p315 = scmp.eq.s32.totalorder %s25, 1
    %p316 = por %p314, %p315
    %p317 = scmp.ne.s32.totalorder %s308, %s309
    %p318 = scmp.eq.s32.totalorder %s25, 0
    %p319 = por %p317, %p318
    %p320 = scmp.ne.s32.totalorder %s308, %s309
    %p321 = scmp.eq.s32.totalorder %s26, 1
    %p322 = por %p320, %p321
    %p324 = scmp.ne.s32.totalorder %s309, %s323
    %p325 = scmp.eq.s32.totalorder %s26, 0
    %p326 = por %p324, %p325
    %s327 = ssub.s32 %s20, %s27
    %p328 = scmp.eq.s32.totalorder %s327, 0
    %s330 = sadd.s32 %s329, 1
    %s331 = scalar_select %p328, %s329, %s330
    %p334 = pneg %p328
    %p335 = scmp.eq.s32.totalorder %s20, 1
    %p336 = por %p334, %p335
    %p337 = scmp.ne.s32.totalorder %s329, %s332
    %p338 = scmp.eq.s32.totalorder %s20, 0
    %p339 = por %p337, %p338
    %p340 = scmp.ne.s32.totalorder %s329, %s332
    %p341 = scmp.eq.s32.totalorder %s25, 1
    %p342 = por %p340, %p341
    %p343 = scmp.ne.s32.totalorder %s332, %s333
    %p344 = scmp.eq.s32.totalorder %s25, 0
    %p345 = por %p343, %p344
    %p346 = scmp.ne.s32.totalorder %s332, %s333
    %p347 = scmp.eq.s32.totalorder %s26, 1
    %p348 = por %p346, %p347
    %p350 = scmp.ne.s32.totalorder %s333, %s349
    %p351 = scmp.eq.s32.totalorder %s26, 0
    %p352 = por %p350, %p351
    %p353 = scmp.le.s32.totalorder 1, %s20
    %p354 = scmp.lt.s32.totalorder %s20, 3
    %p355 = pnand %p353, %p354
    %p356 = pneg %p355
    // Predicated region
    $region9: #{dino_forward.4} parent=5 // pred_check
      _
    $region10: #{dino_forward.4} parent=5 // pred_check_branch
      %358 = sbr.rel (%p355) target = $region12
    $region11: #{dino_forward.4} parent=5 // pred_region
      %s359 = ssub.s32 %s20, 1
      // Predicated region
      $region13: #{dino_forward.4} parent=11 // pred_check
        %p360 = pneg %p67
      $region14: #{dino_forward.4} parent=11 // pred_check_branch
        %362 = sbr.rel (%p360) target = $region16
      $region15: #{dino_forward.4} parent=11 // pred_region
        _
      $region16: #{dino_forward.4} parent=11 // pred_fallthru
        _
      // Predicated region
      $region17: #{dino_forward.4} parent=11 // pred_check
        %p363 = pneg %p88
      $region18: #{dino_forward.4} parent=11 // pred_check_branch
        %365 = sbr.rel (%p363) target = $region20
      $region19: #{dino_forward.4} parent=11 // pred_region
        _
      $region20: #{dino_forward.4} parent=11 // pred_fallthru
        _
      // Predicated region
      $region21: #{dino_forward.4} parent=11 // pred_check
        %p366 = pneg %p109
      $region22: #{dino_forward.4} parent=11 // pred_check_branch
        %368 = sbr.rel (%p366) target = $region24
      $region23: #{dino_forward.4} parent=11 // pred_region
        _
      $region24: #{dino_forward.4} parent=11 // pred_fallthru
        _
      // Predicated region
      $region25: #{dino_forward.4} parent=11 // pred_check
        %p369 = pneg %p130
      $region26: #{dino_forward.4} parent=11 // pred_check_branch
        %371 = sbr.rel (%p369) target = $region28
      $region27: #{dino_forward.4} parent=11 // pred_region
        _
      $region28: #{dino_forward.4} parent=11 // pred_fallthru
        _
      // Predicated region
      $region29: #{dino_forward.4} parent=11 // pred_check
        %p372 = pneg %p151
      $region30: #{dino_forward.4} parent=11 // pred_check_branch
        %374 = sbr.rel (%p372) target = $region32
      $region31: #{dino_forward.4} parent=11 // pred_region
        _
      $region32: #{dino_forward.4} parent=11 // pred_fallthru
        _
      // Predicated region
      $region33: #{dino_forward.4} parent=11 // pred_check
        %p375 = pneg %p172
      $region34: #{dino_forward.4} parent=11 // pred_check_branch
        %377 = sbr.rel (%p375) target = $region36
      $region35: #{dino_forward.4} parent=11 // pred_region
        _
      $region36: #{dino_forward.4} parent=11 // pred_fallthru
        _
      // Predicated region
      $region37: #{dino_forward.4} parent=11 // pred_check
        %p378 = pneg %p193
      $region38: #{dino_forward.4} parent=11 // pred_check_branch
        %380 = sbr.rel (%p378) target = $region40
      $region39: #{dino_forward.4} parent=11 // pred_region
        _
      $region40: #{dino_forward.4} parent=11 // pred_fallthru
        _
      // Predicated region
      $region41: #{dino_forward.4} parent=11 // pred_check
        %p381 = pneg %p214
      $region42: #{dino_forward.4} parent=11 // pred_check_branch
        %383 = sbr.rel (%p381) target = $region44
      $region43: #{dino_forward.4} parent=11 // pred_region
        _
      $region44: #{dino_forward.4} parent=11 // pred_fallthru
        _
      // Predicated region
      $region45: #{dino_forward.4} parent=11 // pred_check
        %p384 = pneg %p235
      $region46: #{dino_forward.4} parent=11 // pred_check_branch
        %386 = sbr.rel (%p384) target = $region48
      $region47: #{dino_forward.4} parent=11 // pred_region
        _
      $region48: #{dino_forward.4} parent=11 // pred_fallthru
        _
      // Predicated region
      $region49: #{dino_forward.4} parent=11 // pred_check
        %p387 = pneg %p256
      $region50: #{dino_forward.4} parent=11 // pred_check_branch
        %389 = sbr.rel (%p387) target = $region52
      $region51: #{dino_forward.4} parent=11 // pred_region
        _
      $region52: #{dino_forward.4} parent=11 // pred_fallthru
        _
      // Predicated region
      $region53: #{dino_forward.4} parent=11 // pred_check
        %p390 = pneg %p277
      $region54: #{dino_forward.4} parent=11 // pred_check_branch
        %392 = sbr.rel (%p390) target = $region56
      $region55: #{dino_forward.4} parent=11 // pred_region
        _
      $region56: #{dino_forward.4} parent=11 // pred_fallthru
        _
      // Predicated region
      $region57: #{dino_forward.4} parent=11 // pred_check
        %p393 = pneg %p298
      $region58: #{dino_forward.4} parent=11 // pred_check_branch
        %395 = sbr.rel (%p393) target = $region60
      $region59: #{dino_forward.4} parent=11 // pred_region
        _
      $region60: #{dino_forward.4} parent=11 // pred_fallthru
        _
      // Predicated region
      $region61: #{dino_forward.4} parent=11 // pred_check
        %p396 = pneg %p319
      $region62: #{dino_forward.4} parent=11 // pred_check_branch
        %398 = sbr.rel (%p396) target = $region64
      $region63: #{dino_forward.4} parent=11 // pred_region
        _
      $region64: #{dino_forward.4} parent=11 // pred_fallthru
        _
    $region12: #{dino_forward.4} parent=5 // pred_fallthru
      _
    %p399 = scmp.lt.s32.totalorder %s20, 2
    // Predicated region
    $region65: #{dino_forward.4} parent=5 // pred_check
      %p400 = pneg %p399
    $region66: #{dino_forward.4} parent=5 // pred_check_branch
      %402 = sbr.rel (%p400) target = $region68
    $region67: #{dino_forward.4} parent=5 // pred_region
      // Predicated region
      $region69: #{dino_forward.4} parent=67 // pred_check
        %p403 = pneg %p40
      $region70: #{dino_forward.4} parent=67 // pred_check_branch
        %405 = sbr.rel (%p403) target = $region72
      $region71: #{dino_forward.4} parent=67 // pred_region
        %p406 = scmp.lt.s32.totalorder %s20, 1
        %s407 = scalar_select %p406, %s20, 1
        %s408 = smul.addr %s407, 2
        %s409 = smul.addr %s408, 8
        %s410 = scalar_lea.vmem %s0, %s409
      $region72: #{dino_forward.4} parent=67 // pred_fallthru
        _
    $region68: #{dino_forward.4} parent=5 // pred_fallthru
      _
    %p411 = scmp.le.s32.totalorder 1, %s20
    %p412 = scmp.lt.s32.totalorder %s20, 3
    %p413 = pnand %p411, %p412
    %p414 = pneg %p413
    // Predicated region
    $region73: #{dino_forward.4} parent=5 // pred_check
      _
    $region74: #{dino_forward.4} parent=5 // pred_check_branch
      %416 = sbr.rel (%p413) target = $region76
    $region75: #{dino_forward.4} parent=5 // pred_region
      %s417 = ssub.s32 %s20, 1
      %p418 = scmp.lt.s32.totalorder %s25, 1
      %s419 = scalar_select %p418, %s25, 1
      %s420 = smul.addr %s419, 2
      %s421 = smul.addr %s420, 8
      %s422 = scalar_lea.vmem %s0, %s421
      %p423 = pneg %p46
      %p424 = pneg %p43
      %p425 = pneg %p67
      %p426 = pneg %p64
      %p427 = pneg %p88
      %p428 = pneg %p85
      %p429 = pneg %p109
      %p430 = pneg %p106
      %p431 = pneg %p130
      %p432 = pneg %p127
      %p433 = pneg %p151
      %p434 = pneg %p148
      %p435 = pneg %p172
      %p436 = pneg %p169
      %p437 = pneg %p193
      %p438 = pneg %p190
      %p439 = pneg %p214
      %p440 = pneg %p211
      %p441 = pneg %p235
      %p442 = pneg %p232
      %p443 = pneg %p256
      %p444 = pneg %p253
      %p445 = pneg %p277
      %p446 = pneg %p274
      %p447 = pneg %p298
      %p448 = pneg %p295
      %p449 = pneg %p319
      %p450 = pneg %p316
      %p451 = pneg %p345
      %p452 = pneg %p342
      %p453 = scmp.lt.s32.totalorder %s25, 1
      %s454 = scalar_select %p453, %s25, 1
      %s455 = smul.addr %s454, 2
      %s456 = smul.addr %s455, 8
      %s457 = scalar_lea.vmem %s14, %s456
      %p458 = scmp.lt.s32.totalorder %s25, 1
      %s459 = scalar_select %p458, %s25, 1
      %s460 = smul.addr %s459, 2
      %s461 = smul.addr %s460, 8
      %s462 = scalar_lea.vmem %s0, %s461
      %p463 = scmp.lt.s32.totalorder %s25, 1
      %s464 = scalar_select %p463, %s25, 1
      %s465 = smul.addr %s464, 2
      %s466 = smul.addr %s465, 8
      %s467 = scalar_lea.vmem %s14, %s466
      %v469 = vld [vmem:[%s462] sm:$0xff]
      %v470 = vld [vmem:[%s462 + $0x8] sm:$0xff]
      %471 = vadd.xlane.f32.xlu0 %v469
      %v472 = vpop.xlane.xlu0 %471
      %473 = vadd.xlane.f32.xlu0 %v470
      %v474 = vpop.xlane.xlu0 %473
      %v475 = vrcp.pop 128.0
      %v476 = vmul.f32 %v472, %v475
      %v477 = vmul.f32 %v474, %v475
      %v478 = vsub.f32 %v469, %v476
      %v479 = vsub.f32 %v470, %v477
      %v480 = vmul.f32 %v478, %v478
      %v481 = vmul.f32 %v479, %v479
      %482 = vadd.xlane.f32.xlu0 %v480
      %v483 = vpop.xlane.xlu0 %482
      %484 = vadd.xlane.f32.xlu0 %v481
      %v485 = vpop.xlane.xlu0 %484
      %v486 = vmul.f32 %v483, %v475
      %v487 = vmul.f32 %v485, %v475
      %v488 = vadd.f32 %v486, 1e-06
      %v489 = vadd.f32 %v487, 1e-06
      %v490 = vrsqrt.pop %v488
      %v491 = vrsqrt.pop %v489
      %v492 = vmul.f32 %v478, %v490
      %v493 = vmul.f32 %v479, %v491
      %v494 = vld [vmem:[%s2] sm:$0x1]
      %v496 = vlaneseq
      %v497 = vshrl.u32 %v496, 7
      %v498 = vsub.s32 0, %v497
      %v499 = vrot.slane %v494, %v498
      %v501 = vmul.f32 %v492, %v499
      %v502 = vmul.f32 %v493, %v499
      %v503 = vld [vmem:[%s3] sm:$0x1]
      %v505 = vlaneseq
      %v506 = vshrl.u32 %v505, 7
      %v507 = vsub.s32 0, %v506
      %v508 = vrot.slane %v503, %v507
      %v510 = vadd.f32 %v501, %v508
      %v511 = vadd.f32 %v502, %v508
      %v512 = vpack.c.bf16 %v511, %v510
      %v513 = vld [vmem:[%s4] sm:$0xff]
      %v514 = vld [vmem:[%s4 + $0x8] sm:$0xf]
      %v515 = vld [vmem:[%s4 + $0xc] sm:$0xff]
      %v516 = vld [vmem:[%s4 + $0x14] sm:$0xf]
      %v517 = vld [vmem:[%s4 + $0x18] sm:$0xff]
      %v518 = vld [vmem:[%s4 + $0x20] sm:$0xf]
      %v519 = vld [vmem:[%s4 + $0x24] sm:$0xff]
      %v520 = vld [vmem:[%s4 + $0x2c] sm:$0xf]
      %v521 = vld [vmem:[%s4 + $0x30] sm:$0xff]
      %v522 = vld [vmem:[%s4 + $0x38] sm:$0xf]
      %v523 = vld [vmem:[%s4 + $0x3c] sm:$0xff]
      %v524 = vld [vmem:[%s4 + $0x44] sm:$0xf]
      %v525 = vld [vmem:[%s4 + $0x48] sm:$0xff]
      %v526 = vld [vmem:[%s4 + $0x50] sm:$0xf]
      %v527 = vld [vmem:[%s4 + $0x54] sm:$0xff]
      %v528 = vld [vmem:[%s4 + $0x5c] sm:$0xf]
      %v529 = vld [vmem:[%s4 + $0x60] sm:$0xff]
      %v530 = vld [vmem:[%s4 + $0x68] sm:$0xf]
      %v531 = vld [vmem:[%s4 + $0x6c] sm:$0xff]
      %v532 = vld [vmem:[%s4 + $0x74] sm:$0xf]
      %v533 = vld [vmem:[%s4 + $0x78] sm:$0xff]
      %v534 = vld [vmem:[%s4 + $0x80] sm:$0xf]
      %v535 = vld [vmem:[%s4 + $0x84] sm:$0xff]
      %v536 = vld [vmem:[%s4 + $0x8c] sm:$0xf]
      %v537 = vld [vmem:[%s4 + $0x90] sm:$0xff]
      %v538 = vld [vmem:[%s4 + $0x98] sm:$0xf]
      %v539 = vld [vmem:[%s4 + $0x9c] sm:$0xff]
      %v540 = vld [vmem:[%s4 + $0xa4] sm:$0xf]
      %v541 = vld [vmem:[%s4 + $0xa8] sm:$0xff]
      %v542 = vld [vmem:[%s4 + $0xb0] sm:$0xf]
      %v543 = vld [vmem:[%s4 + $0xb4] sm:$0xff]
      %v544 = vld [vmem:[%s4 + $0xbc] sm:$0xf]
      %v545 = vld [vmem:[%s5] sm:$0x7]
      %v547 = vlaneseq
      %v548 = vshrl.u32 %v547, 7
      %v549 = vsub.s32 0, %v548
      %v550 = vrot.slane %v545, %v549
      %v551 = vlaneseq
      %v552 = vshrl.u32 %v551, 7
      %v553 = vsub.s32 1, %v552
      %v554 = vrot.slane %v545, %v553
      %v555 = vlaneseq
      %v556 = vshrl.u32 %v555, 7
      %v557 = vsub.s32 2, %v556
      %v558 = vrot.slane %v545, %v557
      %v594 = vunpack.c.l.b16 %v513
      %v595 = vunpack.c.h.b16 %v513
      %v596 = vunpack.c.l.b16 %v514
      %v597 = vunpack.c.l.b16 %v515
      %v598 = vunpack.c.h.b16 %v515
      %v599 = vunpack.c.l.b16 %v516
      %v600 = vunpack.c.l.b16 %v517
      %v601 = vunpack.c.h.b16 %v517
      %v602 = vunpack.c.l.b16 %v518
      %v603 = vunpack.c.l.b16 %v519
      %v604 = vunpack.c.h.b16 %v519
      %v605 = vunpack.c.l.b16 %v520
      %v606 = vunpack.c.l.b16 %v521
      %v607 = vunpack.c.h.b16 %v521
      %v608 = vunpack.c.l.b16 %v522
      %v609 = vunpack.c.l.b16 %v523
      %v610 = vunpack.c.h.b16 %v523
      %v611 = vunpack.c.l.b16 %v524
      %v612 = vunpack.c.l.b16 %v525
      %v613 = vunpack.c.h.b16 %v525
      %v614 = vunpack.c.l.b16 %v526
      %v615 = vunpack.c.l.b16 %v527
      %v616 = vunpack.c.h.b16 %v527
      %v617 = vunpack.c.l.b16 %v528
      %v618 = vunpack.c.l.b16 %v529
      %v619 = vunpack.c.h.b16 %v529
      %v620 = vunpack.c.l.b16 %v530
      %v621 = vunpack.c.l.b16 %v531
      %v622 = vunpack.c.h.b16 %v531
      %v623 = vunpack.c.l.b16 %v532
      %v624 = vunpack.c.l.b16 %v533
      %v625 = vunpack.c.h.b16 %v533
      %v626 = vunpack.c.l.b16 %v534
      %v627 = vunpack.c.l.b16 %v535
      %v628 = vunpack.c.h.b16 %v535
      %v629 = vunpack.c.l.b16 %v536
      %v630 = vunpack.c.l.b16 %v537
      %v631 = vunpack.c.h.b16 %v537
      %v632 = vunpack.c.l.b16 %v538
      %v633 = vunpack.c.l.b16 %v539
      %v634 = vunpack.c.h.b16 %v539
      %v635 = vunpack.c.l.b16 %v540
      %v636 = vunpack.c.l.b16 %v541
      %v637 = vunpack.c.h.b16 %v541
      %v638 = vunpack.c.l.b16 %v542
      %v639 = vunpack.c.l.b16 %v543
      %v640 = vunpack.c.h.b16 %v543
      %v641 = vunpack.c.l.b16 %v544
      %v642 = vpack.c.b16 %v597, %v594
      %v643 = vpack.c.b16 %v598, %v595
      %v644 = vpack.c.b16 %v599, %v596
      %v645 = vpack.c.b16 %v603, %v600
      %v646 = vpack.c.b16 %v604, %v601
      %v647 = vpack.c.b16 %v605, %v602
      %v648 = vpack.c.b16 %v609, %v606
      %v649 = vpack.c.b16 %v610, %v607
      %v650 = vpack.c.b16 %v611, %v608
      %v651 = vpack.c.b16 %v615, %v612
      %v652 = vpack.c.b16 %v616, %v613
      %v653 = vpack.c.b16 %v617, %v614
      %v654 = vpack.c.b16 %v621, %v618
      %v655 = vpack.c.b16 %v622, %v619
      %v656 = vpack.c.b16 %v623, %v620
      %v657 = vpack.c.b16 %v627, %v624
      %v658 = vpack.c.b16 %v628, %v625
      %v659 = vpack.c.b16 %v629, %v626
      %v660 = vpack.c.b16 %v633, %v630
      %v661 = vpack.c.b16 %v634, %v631
      %v662 = vpack.c.b16 %v635, %v632
      %v663 = vpack.c.b16 %v639, %v636
      %v664 = vpack.c.b16 %v640, %v637
      %v665 = vpack.c.b16 %v641, %v638
      %690 = vmatprep.subr.bf16.mxu0 %v643
      %691 = vmatpush1.bf16.msra.mxu0 %v642
      %692 = vmatprep.subr.bf16.mxu0 %v646
      %693 = vmatpush1.bf16.msra.mxu0 %v645
      %694 = vmatprep.subr.bf16.mxu0 %v649
      %695 = vmatpush1.bf16.msra.mxu0 %v648
      %696 = vmatprep.subr.bf16.mxu0 %v652
      %697 = vmatpush1.bf16.msra.mxu0 %v651
      %698 = vmatprep.subr.bf16.mxu0 %v655
      %699 = vmatpush1.bf16.msra.mxu0 %v654
      %700 = vmatprep.subr.bf16.mxu0 %v658
      %701 = vmatpush1.bf16.msra.mxu0 %v657
      %702 = vmatprep.subr.bf16.mxu0 %v661
      %703 = vmatpush1.bf16.msra.mxu0 %v660
      %704 = vmatprep.subr.bf16.mxu0 %v664
      %705 = vmatpush1.bf16.msra.mxu0 %v663
      %706 = vmatprep.subr.bf16.mxu0 0
      %707 = vmatpush1.bf16.msra.mxu0 0
      %708 = vmatprep.subr.bf16.mxu0 0
      %709 = vmatpush1.bf16.msra.mxu0 0
      %710 = vmatprep.subr.bf16.mxu0 0
      %711 = vmatpush1.bf16.msra.mxu0 0
      %712 = vmatprep.subr.bf16.mxu0 0
      %713 = vmatpush1.bf16.msra.mxu0 0
      %714 = vmatprep.subr.bf16.mxu0 0
      %715 = vmatpush1.bf16.msra.mxu0 0
      %716 = vmatprep.subr.bf16.mxu0 0
      %717 = vmatpush1.bf16.msra.mxu0 0
      %718 = vmatprep.subr.bf16.mxu0 0
      %719 = vmatpush1.bf16.msra.mxu0 0
      %720 = vmatprep.subr.bf16.mxu0 0
      %721 = vmatpush1.bf16.msra.mxu0 0
      %722 = vmatprep.mubr.bf16.mxu0 0
      %723 = vmatmul.mubr.bf16.gmra.mrb[0].mxu0 %v512
      %v724 = vpop.f32.mrb[0].mxu0
      %v725 = vadd.f32 %v550, %v724
      %v726 = vpop.f32.mrb[0].mxu0
      %v727 = vadd.f32 %v554, %v726
      %v728 = vpop.f32.mrb[0].mxu0
      %v729 = vadd.f32 %v550, %v728
      %v730 = vpop.f32.mrb[0].mxu0
      %v731 = vadd.f32 %v554, %v730
      %732 = vdwg.mxu0
      %733 = vmatprep.subr.bf16.mxu0 0
      %734 = vmatpush1.bf16.msra.mxu0 %v644
      %735 = vmatprep.subr.bf16.mxu0 0
      %736 = vmatpush1.bf16.msra.mxu0 %v647
      %737 = vmatprep.subr.bf16.mxu0 0
      %738 = vmatpush1.bf16.msra.mxu0 %v650
      %739 = vmatprep.subr.bf16.mxu0 0
      %740 = vmatpush1.bf16.msra.mxu0 %v653
      %741 = vmatprep.subr.bf16.mxu0 0
      %742 = vmatpush1.bf16.msra.mxu0 %v656
      %743 = vmatprep.subr.bf16.mxu0 0
      %744 = vmatpush1.bf16.msra.mxu0 %v659
      %745 = vmatprep.subr.bf16.mxu0 0
      %746 = vmatpush1.bf16.msra.mxu0 %v662
      %747 = vmatprep.subr.bf16.mxu0 0
      %748 = vmatpush1.bf16.msra.mxu0 %v665
      %749 = vmatprep.subr.bf16.mxu0 0
      %750 = vmatpush1.bf16.msra.mxu0 0
      %751 = vmatprep.subr.bf16.mxu0 0
      %752 = vmatpush1.bf16.msra.mxu0 0
      %753 = vmatprep.subr.bf16.mxu0 0
      %754 = vmatpush1.bf16.msra.mxu0 0
      %755 = vmatprep.subr.bf16.mxu0 0
      %756 = vmatpush1.bf16.msra.mxu0 0
      %757 = vmatprep.subr.bf16.mxu0 0
      %758 = vmatpush1.bf16.msra.mxu0 0
      %759 = vmatprep.subr.bf16.mxu0 0
      %760 = vmatpush1.bf16.msra.mxu0 0
      %761 = vmatprep.subr.bf16.mxu0 0
      %762 = vmatpush1.bf16.msra.mxu0 0
      %763 = vmatprep.subr.bf16.mxu0 0
      %764 = vmatpush1.bf16.msra.mxu0 0
      %765 = vmatprep.mubr.bf16.mxu0 0
      %766 = vmatmul.mubr.bf16.gmra.mrb[0].mxu0 %v512
      %v767 = vpop.f32.mrb[0].mxu0
      %v768 = vadd.f32 %v558, %v767
      %v769 = vpop.f32.mrb[0].mxu0
      %v770 = vpop.f32.mrb[0].mxu0
      %v771 = vadd.f32 %v558, %v770
      %v772 = vpop.f32.mrb[0].mxu0
      %773 = vdwg.mxu0
      %v774 = vld [vmem:[%s1] sm:$0x1]
      %v775 = vld [vmem:[%s7] sm:$0x1]
      %v777 = vlaneseq
      %v778 = vshrl.u32 %v777, 7
      %v779 = vsub.s32 0, %v778
      %v780 = vrot.slane %v775, %v779
      %v782 = vadd.f32 %v469, %v780
      %v783 = vadd.f32 %v470, %v780
      %v784 = vmul.f32 %v725, 0.17677669
      %v785 = vmul.f32 %v729, 0.17677669
      %v786 = vpack.c.bf16 %v785, %v784
      %v787 = vpack.c.bf16 %v731, %v727
      %v788 = vpack.c.bf16 %v771, %v768
      %v790 = vlaneseq
      %v791 = vshrl.u32 %v790, 7
      %v792 = vsub.s32 0, %v791
      %v793 = vrot.slane %v774, %v792
      %vm795 = vcmask 261120
      %v797 = vsel %vm795, %v786, 0
      %v800 = vsel %vm795, %v787, 0
      %802 = vmatprep.subr.bf16.mxu0 0
      %803 = vmatpush1.bf16.xpose.msra.mxu0 %v800
      %804 = vmatprep.subr.bf16.mxu0 0
      %805 = vmatpush1.bf16.xpose.msra.mxu0 0
      %806 = vmatprep.subr.bf16.mxu0 0
      %807 = vmatpush1.bf16.xpose.msra.mxu0 0
      %808 = vmatprep.subr.bf16.mxu0 0
      %809 = vmatpush1.bf16.xpose.msra.mxu0 0
      %810 = vmatprep.subr.bf16.mxu0 0
      %811 = vmatpush1.bf16.xpose.msra.mxu0 0
      %812 = vmatprep.subr.bf16.mxu0 0
      %813 = vmatpush1.bf16.xpose.msra.mxu0 0
      %814 = vmatprep.subr.bf16.mxu0 0
      %815 = vmatpush1.bf16.xpose.msra.mxu0 0
      %816 = vmatprep.subr.bf16.mxu0 0
      %817 = vmatpush1.bf16.xpose.msra.mxu0 0
      %818 = vmatprep.subr.bf16.mxu0 0
      %819 = vmatpush1.bf16.xpose.msra.mxu0 0
      %820 = vmatprep.subr.bf16.mxu0 0
      %821 = vmatpush1.bf16.xpose.msra.mxu0 0
      %822 = vmatprep.subr.bf16.mxu0 0
      %823 = vmatpush1.bf16.xpose.msra.mxu0 0
      %824 = vmatprep.subr.bf16.mxu0 0
      %825 = vmatpush1.bf16.xpose.msra.mxu0 0
      %826 = vmatprep.subr.bf16.mxu0 0
      %827 = vmatpush1.bf16.xpose.msra.mxu0 0
      %828 = vmatprep.subr.bf16.mxu0 0
      %829 = vmatpush1.bf16.xpose.msra.mxu0 0
      %830 = vmatprep.subr.bf16.mxu0 0
      %831 = vmatpush1.bf16.xpose.msra.mxu0 0
      %832 = vmatprep.subr.bf16.mxu0 0
      %833 = vmatpush1.bf16.xpose.msra.mxu0 0
      %834 = vmatprep.mubr.bf16.mxu0 0
      %835 = vmatmul.mubr.bf16.gmra.mrb[0].mxu0 %v797
      %v836 = vpop.f32.mrb[0].mxu0
      %v837 = vadd.f32 %v793, %v836
      %v838 = vpop.f32.mrb[0].mxu0
      %v839 = vpop.f32.mrb[0].mxu0
      %v840 = vadd.f32 %v793, %v839
      %v841 = vpop.f32.mrb[0].mxu0
      %842 = vdwg.mxu0
      %vm843 = vcmask 130048
      %v844 = vsel %vm843, %v837, -inf
      %845 = vmax.xlane.f32.xlu0 %v844
      %v846 = vpop.xlane.xlu0 %845
      %v847 = vsel %vm843, %v840, -inf
      %848 = vmax.xlane.f32.xlu0 %v847
      %v849 = vpop.xlane.xlu0 %848
      %v850 = vsub.f32 %v837, %v846
      %v851 = vsub.f32 %v840, %v849
      %v852 = vmul.f32 %v850, 1.442695
      %v853 = vpow.pop %v852
      %v854 = vmul.f32 %v851, 1.442695
      %v855 = vpow.pop %v854
      %v856 = vsel %vm843, %v853, 0.0
      %857 = vadd.xlane.f32.xlu0 %v856
      %v858 = vpop.xlane.xlu0 %857
      %v859 = vsel %vm843, %v855, 0.0
      %860 = vadd.xlane.f32.xlu0 %v859
      %v861 = vpop.xlane.xlu0 %860
      %v862 = vrcp.pop %v858
      %v863 = vrcp.pop %v861
      %v864 = vmul.f32 %v853, %v862
      %v865 = vmul.f32 %v855, %v863
      %v866 = vpack.c.bf16 %v865, %v864
      %v868 = vsel %vm843, %v866, 0
      %870 = vmatprep.subr.bf16.mxu0 0
      %871 = vmatpush1.bf16.msra.mxu0 %v788
      %872 = vmatprep.subr.bf16.mxu0 0
      %873 = vmatpush1.bf16.msra.mxu0 0
      %874 = vmatprep.subr.bf16.mxu0 0
      %875 = vmatpush1.bf16.msra.mxu0 0
      %876 = vmatprep.subr.bf16.mxu0 0
      %877 = vmatpush1.bf16.msra.mxu0 0
      %878 = vmatprep.subr.bf16.mxu0 0
      %879 = vmatpush1.bf16.msra.mxu0 0
      %880 = vmatprep.subr.bf16.mxu0 0
      %881 = vmatpush1.bf16.msra.mxu0 0
      %882 = vmatprep.subr.bf16.mxu0 0
      %883 = vmatpush1.bf16.msra.mxu0 0
      %884 = vmatprep.subr.bf16.mxu0 0
      %885 = vmatpush1.bf16.msra.mxu0 0
      %886 = vmatprep.subr.bf16.mxu0 0
      %887 = vmatpush1.bf16.msra.mxu0 0
      %888 = vmatprep.subr.bf16.mxu0 0
      %889 = vmatpush1.bf16.msra.mxu0 0
      %890 = vmatprep.subr.bf16.mxu0 0
      %891 = vmatpush1.bf16.msra.mxu0 0
      %892 = vmatprep.subr.bf16.mxu0 0
      %893 = vmatpush1.bf16.msra.mxu0 0
      %894 = vmatprep.subr.bf16.mxu0 0
      %895 = vmatpush1.bf16.msra.mxu0 0
      %896 = vmatprep.subr.bf16.mxu0 0
      %897 = vmatpush1.bf16.msra.mxu0 0
      %898 = vmatprep.subr.bf16.mxu0 0
      %899 = vmatpush1.bf16.msra.mxu0 0
      %900 = vmatprep.subr.bf16.mxu0 0
      %901 = vmatpush1.bf16.msra.mxu0 0
      %902 = vmatprep.mubr.bf16.mxu0 0
      %903 = vmatmul.mubr.bf16.gmra.mrb[0].mxu0 %v868
      %v904 = vpop.f32.mrb[0].mxu0
      %v905 = vadd.f32 0.0, %v904
      %v906 = vpop.f32.mrb[0].mxu0
      %v907 = vpop.f32.mrb[0].mxu0
      %v908 = vadd.f32 0.0, %v907
      %v909 = vpop.f32.mrb[0].mxu0
      %910 = vdwg.mxu0
      %v911 = vpack.c.bf16 %v908, %v905
      %v912 = vld [vmem:[%s6] sm:$0xf]
      %v913 = vld [vmem:[%s6 + $0x4] sm:$0xf]
      %v914 = vld [vmem:[%s6 + $0x8] sm:$0xf]
      %v915 = vld [vmem:[%s6 + $0xc] sm:$0xf]
      %v920 = vunpack.c.l.b16 %v912
      %v921 = vunpack.c.l.b16 %v913
      %v922 = vunpack.c.l.b16 %v914
      %v923 = vunpack.c.l.b16 %v915
      %v924 = vpack.c.b16 %v921, %v920
      %v925 = vpack.c.b16 %v923, %v922
      %v929 = vsel %vm795, %v911, 0
      %931 = vmatprep.subr.bf16.mxu0 0
      %932 = vmatpush1.bf16.msra.mxu0 %v924
      %933 = vmatprep.subr.bf16.mxu0 0
      %934 = vmatpush1.bf16.msra.mxu0 %v925
      %935 = vmatprep.subr.bf16.mxu0 0
      %936 = vmatpush1.bf16.msra.mxu0 0
      %937 = vmatprep.subr.bf16.mxu0 0
      %938 = vmatpush1.bf16.msra.mxu0 0
      %939 = vmatprep.subr.bf16.mxu0 0
      %940 = vmatpush1.bf16.msra.mxu0 0
      %941 = vmatprep.subr.bf16.mxu0 0
      %942 = vmatpush1.bf16.msra.mxu0 0
      %943 = vmatprep.subr.bf16.mxu0 0
      %944 = vmatpush1.bf16.msra.mxu0 0
      %945 = vmatprep.subr.bf16.mxu0 0
      %946 = vmatpush1.bf16.msra.mxu0 0
      %947 = vmatprep.subr.bf16.mxu0 0
      %948 = vmatpush1.bf16.msra.mxu0 0
      %949 = vmatprep.subr.bf16.mxu0 0
      %950 = vmatpush1.bf16.msra.mxu0 0
      %951 = vmatprep.subr.bf16.mxu0 0
      %952 = vmatpush1.bf16.msra.mxu0 0
      %953 = vmatprep.subr.bf16.mxu0 0
      %954 = vmatpush1.bf16.msra.mxu0 0
      %955 = vmatprep.subr.bf16.mxu0 0
      %956 = vmatpush1.bf16.msra.mxu0 0
      %957 = vmatprep.subr.bf16.mxu0 0
      %958 = vmatpush1.bf16.msra.mxu0 0
      %959 = vmatprep.subr.bf16.mxu0 0
      %960 = vmatpush1.bf16.msra.mxu0 0
      %961 = vmatprep.subr.bf16.mxu0 0
      %962 = vmatpush1.bf16.msra.mxu0 0
      %963 = vmatprep.mubr.bf16.mxu0 0
      %964 = vmatmul.mubr.bf16.gmra.mrb[0].mxu0 %v929
      %v965 = vpop.f32.mrb[0].mxu0
      %v966 = vadd.f32 0.0, %v965
      %v967 = vpop.f32.mrb[0].mxu0
      %v968 = vpop.f32.mrb[0].mxu0
      %v969 = vadd.f32 0.0, %v968
      %v970 = vpop.f32.mrb[0].mxu0
      %971 = vdwg.mxu0
      %v972 = vadd.f32 %v782, %v966
      %v973 = vadd.f32 %v783, %v969
      %975 = vrot.lane.b32.xlu0 %v786, 96
      %v976 = vpop.permute.xlu0 %975
      %978 = vrot.lane.b32.xlu0 %v787, 96
      %v979 = vpop.permute.xlu0 %978
      %v981 = vsel %vm795, %v976, 0
      %v984 = vsel %vm795, %v979, 0
      %986 = vmatprep.subr.bf16.mxu0 0
      %987 = vmatpush1.bf16.xpose.msra.mxu0 %v984
      %988 = vmatprep.subr.bf16.mxu0 0
      %989 = vmatpush1.bf16.xpose.msra.mxu0 0
      %990 = vmatprep.subr.bf16.mxu0 0
      %991 = vmatpush1.bf16.xpose.msra.mxu0 0
      %992 = vmatprep.subr.bf16.mxu0 0
      %993 = vmatpush1.bf16.xpose.msra.mxu0 0
      %994 = vmatprep.subr.bf16.mxu0 0
      %995 = vmatpush1.bf16.xpose.msra.mxu0 0
      %996 = vmatprep.subr.bf16.mxu0 0
      %997 = vmatpush1.bf16.xpose.msra.mxu0 0
      %998 = vmatprep.subr.bf16.mxu0 0
      %999 = vmatpush1.bf16.xpose.msra.mxu0 0
      %1000 = vmatprep.subr.bf16.mxu0 0
      %1001 = vmatpush1.bf16.xpose.msra.mxu0 0
      %1002 = vmatprep.subr.bf16.mxu0 0
      %1003 = vmatpush1.bf16.xpose.msra.mxu0 0
      %1004 = vmatprep.subr.bf16.mxu0 0
      %1005 = vmatpush1.bf16.xpose.msra.mxu0 0
      %1006 = vmatprep.subr.bf16.mxu0 0
      %1007 = vmatpush1.bf16.xpose.msra.mxu0 0
      %1008 = vmatprep.subr.bf16.mxu0 0
      %1009 = vmatpush1.bf16.xpose.msra.mxu0 0
      %1010 = vmatprep.subr.bf16.mxu0 0
      %1011 = vmatpush1.bf16.xpose.msra.mxu0 0
      %1012 = vmatprep.subr.bf16.mxu0 0
      %1013 = vmatpush1.bf16.xpose.msra.mxu0 0
      %1014 = vmatprep.subr.bf16.mxu0 0
      %1015 = vmatpush1.bf16.xpose.msra.mxu0 0
      %1016 = vmatprep.subr.bf16.mxu0 0
      %1017 = vmatpush1.bf16.xpose.msra.mxu0 0
      %1018 = vmatprep.mubr.bf16.mxu0 0
      %1019 = vmatmul.mubr.bf16.gmra.mrb[0].mxu0 %v981
      %v1020 = vpop.f32.mrb[0].mxu0
      %v1021 = vadd.f32 %v793, %v1020
      %v1022 = vpop.f32.mrb[0].mxu0
      %v1023 = vpop.f32.mrb[0].mxu0
      %v1024 = vadd.f32 %v793, %v1023
      %v1025 = vpop.f32.mrb[0].mxu0
      %1026 = vdwg.mxu0
      %v1027 = vsel %vm843, %v1021, -inf
      %1028 = vmax.xlane.f32.xlu0 %v1027
      %v1029 = vpop.xlane.xlu0 %1028
      %v1030 = vsel %vm843, %v1024, -inf
      %1031 = vmax.xlane.f32.xlu0 %v1030
      %v1032 = vpop.xlane.xlu0 %1031
      %v1033 = vsub.f32 %v1021, %v1029
      %v1034 = vsub.f32 %v1024, %v1032
      %v1035 = vmul.f32 %v1033, 1.442695
      %v1036 = vpow.pop %v1035
      %v1037 = vmul.f32 %v1034, 1.442695
      %v1038 = vpow.pop %v1037
      %v1039 = vsel %vm843, %v1036, 0.0
      %1040 = vadd.xlane.f32.xlu0 %v1039
      %v1041 = vpop.xlane.xlu0 %1040
      %v1042 = vsel %vm843, %v1038, 0.0
      %1043 = vadd.xlane.f32.xlu0 %v1042
      %v1044 = vpop.xlane.xlu0 %1043
      %v1045 = vrcp.pop %v1041
      %v1046 = vrcp.pop %v1044
      %v1047 = vmul.f32 %v1036, %v1045
      %v1048 = vmul.f32 %v1038, %v1046
      %v1049 = vpack.c.bf16 %v1048, %v1047
      %1051 = vrot.lane.b32.xlu0 %v788, 96
      %v1052 = vpop.permute.xlu0 %1051
      %v1055 = vsel %vm843, %v1049, 0
      %1057 = vmatprep.subr.bf16.mxu0 0
      %1058 = vmatpush1.bf16.msra.mxu0 %v1052
      %1059 = vmatprep.subr.bf16.mxu0 0
      %1060 = vmatpush1.bf16.msra.mxu0 0
      %1061 = vmatprep.subr.bf16.mxu0 0
      %1062 = vmatpush1.bf16.msra.mxu0 0
      %1063 = vmatprep.subr.bf16.mxu0 0
      %1064 = vmatpush1.bf16.msra.mxu0 0
      %1065 = vmatprep.subr.bf16.mxu0 0
      %1066 = vmatpush1.bf16.msra.mxu0 0
      %1067 = vmatprep.subr.bf16.mxu0 0
      %1068 = vmatpush1.bf16.msra.mxu0 0
      %1069 = vmatprep.subr.bf16.mxu0 0
      %1070 = vmatpush1.bf16.msra.mxu0 0
      %1071 = vmatprep.subr.bf16.mxu0 0
      %1072 = vmatpush1.bf16.msra.mxu0 0
      %1073 = vmatprep.subr.bf16.mxu0 0
      %1074 = vmatpush1.bf16.msra.mxu0 0
      %1075 = vmatprep.subr.bf16.mxu0 0
      %1076 = vmatpush1.bf16.msra.mxu0 0
      %1077 = vmatprep.subr.bf16.mxu0 0
      %1078 = vmatpush1.bf16.msra.mxu0 0
      %1079 = vmatprep.subr.bf16.mxu0 0
      %1080 = vmatpush1.bf16.msra.mxu0 0
      %1081 = vmatprep.subr.bf16.mxu0 0
      %1082 = vmatpush1.bf16.msra.mxu0 0
      %1083 = vmatprep.subr.bf16.mxu0 0
      %1084 = vmatpush1.bf16.msra.mxu0 0
      %1085 = vmatprep.subr.bf16.mxu0 0
      %1086 = vmatpush1.bf16.msra.mxu0 0
      %1087 = vmatprep.subr.bf16.mxu0 0
      %1088 = vmatpush1.bf16.msra.mxu0 0
      %1089 = vmatprep.mubr.bf16.mxu0 0
      %1090 = vmatmul.mubr.bf16.gmra.mrb[0].mxu0 %v1055
      %v1091 = vpop.f32.mrb[0].mxu0
      %v1092 = vadd.f32 0.0, %v1091
      %v1093 = vpop.f32.mrb[0].mxu0
      %v1094 = vpop.f32.mrb[0].mxu0
      %v1095 = vadd.f32 0.0, %v1094
      %v1096 = vpop.f32.mrb[0].mxu0
      %1097 = vdwg.mxu0
      %v1098 = vpack.c.bf16 %v1095, %v1092
      %v1099 = vld [vmem:[%s6 + $0x10] sm:$0xf]
      %v1100 = vld [vmem:[%s6 + $0x14] sm:$0xf]
      %v1101 = vld [vmem:[%s6 + $0x18] sm:$0xf]
      %v1102 = vld [vmem:[%s6 + $0x1c] sm:$0xf]
      %v1107 = vunpack.c.l.b16 %v1099
      %v1108 = vunpack.c.l.b16 %v1100
      %v1109 = vunpack.c.l.b16 %v1101
      %v1110 = vunpack.c.l.b16 %v1102
      %v1111 = vpack.c.b16 %v1108, %v1107
      %v1112 = vpack.c.b16 %v1110, %v1109
      %v1116 = vsel %vm795, %v1098, 0
      %1118 = vmatprep.subr.bf16.mxu0 0
      %1119 = vmatpush1.bf16.msra.mxu0 %v1111
      %1120 = vmatprep.subr.bf16.mxu0 0
      %1121 = vmatpush1.bf16.msra.mxu0 %v1112
      %1122 = vmatprep.subr.bf16.mxu0 0
      %1123 = vmatpush1.bf16.msra.mxu0 0
      %1124 = vmatprep.subr.bf16.mxu0 0
      %1125 = vmatpush1.bf16.msra.mxu0 0
      %1126 = vmatprep.subr.bf16.mxu0 0
      %1127 = vmatpush1.bf16.msra.mxu0 0
      %1128 = vmatprep.subr.bf16.mxu0 0
      %1129 = vmatpush1.bf16.msra.mxu0 0
      %1130 = vmatprep.subr.bf16.mxu0 0
      %1131 = vmatpush1.bf16.msra.mxu0 0
      %1132 = vmatprep.subr.bf16.mxu0 0
      %1133 = vmatpush1.bf16.msra.mxu0 0
      %1134 = vmatprep.subr.bf16.mxu0 0
      %1135 = vmatpush1.bf16.msra.mxu0 0
      %1136 = vmatprep.subr.bf16.mxu0 0
      %1137 = vmatpush1.bf16.msra.mxu0 0
      %1138 = vmatprep.subr.bf16.mxu0 0
      %1139 = vmatpush1.bf16.msra.mxu0 0
      %1140 = vmatprep.subr.bf16.mxu0 0
      %1141 = vmatpush1.bf16.msra.mxu0 0
      %1142 = vmatprep.subr.bf16.mxu0 0
      %1143 = vmatpush1.bf16.msra.mxu0 0
      %1144 = vmatprep.subr.bf16.mxu0 0
      %1145 = vmatpush1.bf16.msra.mxu0 0
      %1146 = vmatprep.subr.bf16.mxu0 0
      %1147 = vmatpush1.bf16.msra.mxu0 0
      %1148 = vmatprep.subr.bf16.mxu0 0
      %1149 = vmatpush1.bf16.msra.mxu0 0
      %1150 = vmatprep.mubr.bf16.mxu0 0
      %1151 = vmatmul.mubr.bf16.gmra.mrb[0].mxu0 %v1116
      %v1152 = vpop.f32.mrb[0].mxu0
      %v1153 = vadd.f32 0.0, %v1152
      %v1154 = vpop.f32.mrb[0].mxu0
      %v1155 = vpop.f32.mrb[0].mxu0
      %v1156 = vadd.f32 0.0, %v1155
      %v1157 = vpop.f32.mrb[0].mxu0
      %1158 = vdwg.mxu0
      %v1159 = vadd.f32 %v972, %v1153
      %v1160 = vadd.f32 %v973, %v1156
      %1161 = vrot.lane.b32.xlu0 %v786, 64
      %v1162 = vpop.permute.xlu0 %1161
      %1163 = vrot.lane.b32.xlu0 %v787, 64
      %v1164 = vpop.permute.xlu0 %1163
      %v1166 = vsel %vm795, %v1162, 0
      %v1169 = vsel %vm795, %v1164, 0
      %1171 = vmatprep.subr.bf16.mxu0 0
      %1172 = vmatpush1.bf16.xpose.msra.mxu0 %v1169
      %1173 = vmatprep.subr.bf16.mxu0 0
      %1174 = vmatpush1.bf16.xpose.msra.mxu0 0
      %1175 = vmatprep.subr.bf16.mxu0 0
      %1176 = vmatpush1.bf16.xpose.msra.mxu0 0
      %1177 = vmatprep.subr.bf16.mxu0 0
      %1178 = vmatpush1.bf16.xpose.msra.mxu0 0
      %1179 = vmatprep.subr.bf16.mxu0 0
      %1180 = vmatpush1.bf16.xpose.msra.mxu0 0
      %1181 = vmatprep.subr.bf16.mxu0 0
      %1182 = vmatpush1.bf16.xpose.msra.mxu0 0
      %1183 = vmatprep.subr.bf16.mxu0 0
      %1184 = vmatpush1.bf16.xpose.msra.mxu0 0
      %1185 = vmatprep.subr.bf16.mxu0 0
      %1186 = vmatpush1.bf16.xpose.msra.mxu0 0
      %1187 = vmatprep.subr.bf16.mxu0 0
      %1188 = vmatpush1.bf16.xpose.msra.mxu0 0
      %1189 = vmatprep.subr.bf16.mxu0 0
      %1190 = vmatpush1.bf16.xpose.msra.mxu0 0
      %1191 = vmatprep.subr.bf16.mxu0 0
      %1192 = vmatpush1.bf16.xpose.msra.mxu0 0
      %1193 = vmatprep.subr.bf16.mxu0 0
      %1194 = vmatpush1.bf16.xpose.msra.mxu0 0
      %1195 = vmatprep.subr.bf16.mxu0 0
      %1196 = vmatpush1.bf16.xpose.msra.mxu0 0
      %1197 = vmatprep.subr.bf16.mxu0 0
      %1198 = vmatpush1.bf16.xpose.msra.mxu0 0
      %1199 = vmatprep.subr.bf16.mxu0 0
      %1200 = vmatpush1.bf16.xpose.msra.mxu0 0
      %1201 = vmatprep.subr.bf16.mxu0 0
      %1202 = vmatpush1.bf16.xpose.msra.mxu0 0
      %1203 = vmatprep.mubr.bf16.mxu0 0
      %1204 = vmatmul.mubr.bf16.gmra.mrb[0].mxu0 %v1166
      %v1205 = vpop.f32.mrb[0].mxu0
      %v1206 = vadd.f32 %v793, %v1205
      %v1207 = vpop.f32.mrb[0].mxu0
      %v1208 = vpop.f32.mrb[0].mxu0
      %v1209 = vadd.f32 %v793, %v1208
      %v1210 = vpop.f32.mrb[0].mxu0
      %1211 = vdwg.mxu0
      %v1212 = vsel %vm843, %v1206, -inf
      %1213 = vmax.xlane.f32.xlu0 %v1212
      %v1214 = vpop.xlane.xlu0 %1213
      %v1215 = vsel %vm843, %v1209, -inf
      %1216 = vmax.xlane.f32.xlu0 %v1215
      %v1217 = vpop.xlane.xlu0 %1216
      %v1218 = vsub.f32 %v1206, %v1214
      %v1219 = vsub.f32 %v1209, %v1217
      %v1220 = vmul.f32 %v1218, 1.442695
      %v1221 = vpow.pop %v1220
      %v1222 = vmul.f32 %v1219, 1.442695
      %v1223 = vpow.pop %v1222
      %v1224 = vsel %vm843, %v1221, 0.0
      %1225 = vadd.xlane.f32.xlu0 %v1224
      %v1226 = vpop.xlane.xlu0 %1225
      %v1227 = vsel %vm843, %v1223, 0.0
      %1228 = vadd.xlane.f32.xlu0 %v1227
      %v1229 = vpop.xlane.xlu0 %1228
      %v1230 = vrcp.pop %v1226
      %v1231 = vrcp.pop %v1229
      %v1232 = vmul.f32 %v1221, %v1230
      %v1233 = vmul.f32 %v1223, %v1231
      %v1234 = vpack.c.bf16 %v1233, %v1232
      %1235 = vrot.lane.b32.xlu0 %v788, 64
      %v1236 = vpop.permute.xlu0 %1235
      %v1239 = vsel %vm843, %v1234, 0
      %1241 = vmatprep.subr.bf16.mxu0 0
      %1242 = vmatpush1.bf16.msra.mxu0 %v1236
      %1243 = vmatprep.subr.bf16.mxu0 0
      %1244 = vmatpush1.bf16.msra.mxu0 0
      %1245 = vmatprep.subr.bf16.mxu0 0
      %1246 = vmatpush1.bf16.msra.mxu0 0
      %1247 = vmatprep.subr.bf16.mxu0 0
      %1248 = vmatpush1.bf16.msra.mxu0 0
      %1249 = vmatprep.subr.bf16.mxu0 0
      %1250 = vmatpush1.bf16.msra.mxu0 0
      %1251 = vmatprep.subr.bf16.mxu0 0
      %1252 = vmatpush1.bf16.msra.mxu0 0
      %1253 = vmatprep.subr.bf16.mxu0 0
      %1254 = vmatpush1.bf16.msra.mxu0 0
      %1255 = vmatprep.subr.bf16.mxu0 0
      %1256 = vmatpush1.bf16.msra.mxu0 0
      %1257 = vmatprep.subr.bf16.mxu0 0
      %1258 = vmatpush1.bf16.msra.mxu0 0
      %1259 = vmatprep.subr.bf16.mxu0 0
      %1260 = vmatpush1.bf16.msra.mxu0 0
      %1261 = vmatprep.subr.bf16.mxu0 0
      %1262 = vmatpush1.bf16.msra.mxu0 0
      %1263 = vmatprep.subr.bf16.mxu0 0
      %1264 = vmatpush1.bf16.msra.mxu0 0
      %1265 = vmatprep.subr.bf16.mxu0 0
      %1266 = vmatpush1.bf16.msra.mxu0 0
      %1267 = vmatprep.subr.bf16.mxu0 0
      %1268 = vmatpush1.bf16.msra.mxu0 0
      %1269 = vmatprep.subr.bf16.mxu0 0
      %1270 = vmatpush1.bf16.msra.mxu0 0
      %1271 = vmatprep.subr.bf16.mxu0 0
      %1272 = vmatpush1.bf16.msra.mxu0 0
      %1273 = vmatprep.mubr.bf16.mxu0 0
      %1274 = vmatmul.mubr.bf16.gmra.mrb[0].mxu0 %v1239
      %v1275 = vpop.f32.mrb[0].mxu0
      %v1276 = vadd.f32 0.0, %v1275
      %v1277 = vpop.f32.mrb[0].mxu0
      %v1278 = vpop.f32.mrb[0].mxu0
      %v1279 = vadd.f32 0.0, %v1278
      %v1280 = vpop.f32.mrb[0].mxu0
      %1281 = vdwg.mxu0
      %v1282 = vpack.c.bf16 %v1279, %v1276
      %v1283 = vld [vmem:[%s6 + $0x20] sm:$0xf]
      %v1284 = vld [vmem:[%s6 + $0x24] sm:$0xf]
      %v1285 = vld [vmem:[%s6 + $0x28] sm:$0xf]
      %v1286 = vld [vmem:[%s6 + $0x2c] sm:$0xf]
      %v1291 = vunpack.c.l.b16 %v1283
      %v1292 = vunpack.c.l.b16 %v1284
      %v1293 = vunpack.c.l.b16 %v1285
      %v1294 = vunpack.c.l.b16 %v1286
      %v1295 = vpack.c.b16 %v1292, %v1291
      %v1296 = vpack.c.b16 %v1294, %v1293
      %v1300 = vsel %vm795, %v1282, 0
      %1302 = vmatprep.subr.bf16.mxu0 0
      %1303 = vmatpush1.bf16.msra.mxu0 %v1295
      %1304 = vmatprep.subr.bf16.mxu0 0
      %1305 = vmatpush1.bf16.msra.mxu0 %v1296
      %1306 = vmatprep.subr.bf16.mxu0 0
      %1307 = vmatpush1.bf16.msra.mxu0 0
      %1308 = vmatprep.subr.bf16.mxu0 0
      %1309 = vmatpush1.bf16.msra.mxu0 0
      %1310 = vmatprep.subr.bf16.mxu0 0
      %1311 = vmatpush1.bf16.msra.mxu0 0
      %1312 = vmatprep.subr.bf16.mxu0 0
      %1313 = vmatpush1.bf16.msra.mxu0 0
      %1314 = vmatprep.subr.bf16.mxu0 0
      %1315 = vmatpush1.bf16.msra.mxu0 0
      %1316 = vmatprep.subr.bf16.mxu0 0
      %1317 = vmatpush1.bf16.msra.mxu0 0
      %1318 = vmatprep.subr.bf16.mxu0 0
      %1319 = vmatpush1.bf16.msra.mxu0 0
      %1320 = vmatprep.subr.bf16.mxu0 0
      %1321 = vmatpush1.bf16.msra.mxu0 0
      %1322 = vmatprep.subr.bf16.mxu0 0
      %1323 = vmatpush1.bf16.msra.mxu0 0
      %1324 = vmatprep.subr.bf16.mxu0 0
      %1325 = vmatpush1.bf16.msra.mxu0 0
      %1326 = vmatprep.subr.bf16.mxu0 0
      %1327 = vmatpush1.bf16.msra.mxu0 0
      %1328 = vmatprep.subr.bf16.mxu0 0
      %1329 = vmatpush1.bf16.msra.mxu0 0
      %1330 = vmatprep.subr.bf16.mxu0 0
      %1331 = vmatpush1.bf16.msra.mxu0 0
      %1332 = vmatprep.subr.bf16.mxu0 0
      %1333 = vmatpush1.bf16.msra.mxu0 0
      %1334 = vmatprep.mubr.bf16.mxu0 0
      %1335 = vmatmul.mubr.bf16.gmra.mrb[0].mxu0 %v1300
      %v1336 = vpop.f32.mrb[0].mxu0
      %v1337 = vadd.f32 0.0, %v1336
      %v1338 = vpop.f32.mrb[0].mxu0
      %v1339 = vpop.f32.mrb[0].mxu0
      %v1340 = vadd.f32 0.0, %v1339
      %v1341 = vpop.f32.mrb[0].mxu0
      %1342 = vdwg.mxu0
      %v1343 = vadd.f32 %v1159, %v1337
      %v1344 = vadd.f32 %v1160, %v1340
      %1345 = vrot.lane.b32.xlu0 %v786, 32
      %v1346 = vpop.permute.xlu0 %1345
      %1347 = vrot.lane.b32.xlu0 %v787, 32
      %v1348 = vpop.permute.xlu0 %1347
      %v1350 = vsel %vm795, %v1346, 0
      %v1353 = vsel %vm795, %v1348, 0
      %1355 = vmatprep.subr.bf16.mxu0 0
      %1356 = vmatpush1.bf16.xpose.msra.mxu0 %v1353
      %1357 = vmatprep.subr.bf16.mxu0 0
      %1358 = vmatpush1.bf16.xpose.msra.mxu0 0
      %1359 = vmatprep.subr.bf16.mxu0 0
      %1360 = vmatpush1.bf16.xpose.msra.mxu0 0
      %1361 = vmatprep.subr.bf16.mxu0 0
      %1362 = vmatpush1.bf16.xpose.msra.mxu0 0
      %1363 = vmatprep.subr.bf16.mxu0 0
      %1364 = vmatpush1.bf16.xpose.msra.mxu0 0
      %1365 = vmatprep.subr.bf16.mxu0 0
      %1366 = vmatpush1.bf16.xpose.msra.mxu0 0
      %1367 = vmatprep.subr.bf16.mxu0 0
      %1368 = vmatpush1.bf16.xpose.msra.mxu0 0
      %1369 = vmatprep.subr.bf16.mxu0 0
      %1370 = vmatpush1.bf16.xpose.msra.mxu0 0
      %1371 = vmatprep.subr.bf16.mxu0 0
      %1372 = vmatpush1.bf16.xpose.msra.mxu0 0
      %1373 = vmatprep.subr.bf16.mxu0 0
      %1374 = vmatpush1.bf16.xpose.msra.mxu0 0
      %1375 = vmatprep.subr.bf16.mxu0 0
      %1376 = vmatpush1.bf16.xpose.msra.mxu0 0
      %1377 = vmatprep.subr.bf16.mxu0 0
      %1378 = vmatpush1.bf16.xpose.msra.mxu0 0
      %1379 = vmatprep.subr.bf16.mxu0 0
      %1380 = vmatpush1.bf16.xpose.msra.mxu0 0
      %1381 = vmatprep.subr.bf16.mxu0 0
      %1382 = vmatpush1.bf16.xpose.msra.mxu0 0
      %1383 = vmatprep.subr.bf16.mxu0 0
      %1384 = vmatpush1.bf16.xpose.msra.mxu0 0
      %1385 = vmatprep.subr.bf16.mxu0 0
      %1386 = vmatpush1.bf16.xpose.msra.mxu0 0
      %1387 = vmatprep.mubr.bf16.mxu0 0
      %1388 = vmatmul.mubr.bf16.gmra.mrb[0].mxu0 %v1350
      %v1389 = vpop.f32.mrb[0].mxu0
      %v1390 = vadd.f32 %v793, %v1389
      %v1391 = vpop.f32.mrb[0].mxu0
      %v1392 = vpop.f32.mrb[0].mxu0
      %v1393 = vadd.f32 %v793, %v1392
      %v1394 = vpop.f32.mrb[0].mxu0
      %1395 = vdwg.mxu0
      %v1396 = vsel %vm843, %v1390, -inf
      %1397 = vmax.xlane.f32.xlu0 %v1396
      %v1398 = vpop.xlane.xlu0 %1397
      %v1399 = vsel %vm843, %v1393, -inf
      %1400 = vmax.xlane.f32.xlu0 %v1399
      %v1401 = vpop.xlane.xlu0 %1400
      %v1402 = vsub.f32 %v1390, %v1398
      %v1403 = vsub.f32 %v1393, %v1401
      %v1404 = vmul.f32 %v1402, 1.442695
      %v1405 = vpow.pop %v1404
      %v1406 = vmul.f32 %v1403, 1.442695
      %v1407 = vpow.pop %v1406
      %v1408 = vsel %vm843, %v1405, 0.0
      %1409 = vadd.xlane.f32.xlu0 %v1408
      %v1410 = vpop.xlane.xlu0 %1409
      %v1411 = vsel %vm843, %v1407, 0.0
      %1412 = vadd.xlane.f32.xlu0 %v1411
      %v1413 = vpop.xlane.xlu0 %1412
      %v1414 = vrcp.pop %v1410
      %v1415 = vrcp.pop %v1413
      %v1416 = vmul.f32 %v1405, %v1414
      %v1417 = vmul.f32 %v1407, %v1415
      %v1418 = vpack.c.bf16 %v1417, %v1416
      %1419 = vrot.lane.b32.xlu0 %v788, 32
      %v1420 = vpop.permute.xlu0 %1419
      %v1423 = vsel %vm843, %v1418, 0
      %1425 = vmatprep.subr.bf16.mxu0 0
      %1426 = vmatpush1.bf16.msra.mxu0 %v1420
      %1427 = vmatprep.subr.bf16.mxu0 0
      %1428 = vmatpush1.bf16.msra.mxu0 0
      %1429 = vmatprep.subr.bf16.mxu0 0
      %1430 = vmatpush1.bf16.msra.mxu0 0
      %1431 = vmatprep.subr.bf16.mxu0 0
      %1432 = vmatpush1.bf16.msra.mxu0 0
      %1433 = vmatprep.subr.bf16.mxu0 0
      %1434 = vmatpush1.bf16.msra.mxu0 0
      %1435 = vmatprep.subr.bf16.mxu0 0
      %1436 = vmatpush1.bf16.msra.mxu0 0
      %1437 = vmatprep.subr.bf16.mxu0 0
      %1438 = vmatpush1.bf16.msra.mxu0 0
      %1439 = vmatprep.subr.bf16.mxu0 0
      %1440 = vmatpush1.bf16.msra.mxu0 0
      %1441 = vmatprep.subr.bf16.mxu0 0
      %1442 = vmatpush1.bf16.msra.mxu0 0
      %1443 = vmatprep.subr.bf16.mxu0 0
      %1444 = vmatpush1.bf16.msra.mxu0 0
      %1445 = vmatprep.subr.bf16.mxu0 0
      %1446 = vmatpush1.bf16.msra.mxu0 0
      %1447 = vmatprep.subr.bf16.mxu0 0
      %1448 = vmatpush1.bf16.msra.mxu0 0
      %1449 = vmatprep.subr.bf16.mxu0 0
      %1450 = vmatpush1.bf16.msra.mxu0 0
      %1451 = vmatprep.subr.bf16.mxu0 0
      %1452 = vmatpush1.bf16.msra.mxu0 0
      %1453 = vmatprep.subr.bf16.mxu0 0
      %1454 = vmatpush1.bf16.msra.mxu0 0
      %1455 = vmatprep.subr.bf16.mxu0 0
      %1456 = vmatpush1.bf16.msra.mxu0 0
      %1457 = vmatprep.mubr.bf16.mxu0 0
      %1458 = vmatmul.mubr.bf16.gmra.mrb[0].mxu0 %v1423
      %v1459 = vpop.f32.mrb[0].mxu0
      %v1460 = vadd.f32 0.0, %v1459
      %v1461 = vpop.f32.mrb[0].mxu0
      %v1462 = vpop.f32.mrb[0].mxu0
      %v1463 = vadd.f32 0.0, %v1462
      %v1464 = vpop.f32.mrb[0].mxu0
      %1465 = vdwg.mxu0
      %v1466 = vpack.c.bf16 %v1463, %v1460
      %v1467 = vld [vmem:[%s6 + $0x30] sm:$0xf]
      %v1468 = vld [vmem:[%s6 + $0x34] sm:$0xf]
      %v1469 = vld [vmem:[%s6 + $0x38] sm:$0xf]
      %v1470 = vld [vmem:[%s6 + $0x3c] sm:$0xf]
      %v1475 = vunpack.c.l.b16 %v1467
      %v1476 = vunpack.c.l.b16 %v1468
      %v1477 = vunpack.c.l.b16 %v1469
      %v1478 = vunpack.c.l.b16 %v1470
      %v1479 = vpack.c.b16 %v1476, %v1475
      %v1480 = vpack.c.b16 %v1478, %v1477
      %v1484 = vsel %vm795, %v1466, 0
      %1486 = vmatprep.subr.bf16.mxu0 0
      %1487 = vmatpush1.bf16.msra.mxu0 %v1479
      %1488 = vmatprep.subr.bf16.mxu0 0
      %1489 = vmatpush1.bf16.msra.mxu0 %v1480
      %1490 = vmatprep.subr.bf16.mxu0 0
      %1491 = vmatpush1.bf16.msra.mxu0 0
      %1492 = vmatprep.subr.bf16.mxu0 0
      %1493 = vmatpush1.bf16.msra.mxu0 0
      %1494 = vmatprep.subr.bf16.mxu0 0
      %1495 = vmatpush1.bf16.msra.mxu0 0
      %1496 = vmatprep.subr.bf16.mxu0 0
      %1497 = vmatpush1.bf16.msra.mxu0 0
      %1498 = vmatprep.subr.bf16.mxu0 0
      %1499 = vmatpush1.bf16.msra.mxu0 0
      %1500 = vmatprep.subr.bf16.mxu0 0
      %1501 = vmatpush1.bf16.msra.mxu0 0
      %1502 = vmatprep.subr.bf16.mxu0 0
      %1503 = vmatpush1.bf16.msra.mxu0 0
      %1504 = vmatprep.subr.bf16.mxu0 0
      %1505 = vmatpush1.bf16.msra.mxu0 0
      %1506 = vmatprep.subr.bf16.mxu0 0
      %1507 = vmatpush1.bf16.msra.mxu0 0
      %1508 = vmatprep.subr.bf16.mxu0 0
      %1509 = vmatpush1.bf16.msra.mxu0 0
      %1510 = vmatprep.subr.bf16.mxu0 0
      %1511 = vmatpush1.bf16.msra.mxu0 0
      %1512 = vmatprep.subr.bf16.mxu0 0
      %1513 = vmatpush1.bf16.msra.mxu0 0
      %1514 = vmatprep.subr.bf16.mxu0 0
      %1515 = vmatpush1.bf16.msra.mxu0 0
      %1516 = vmatprep.subr.bf16.mxu0 0
      %1517 = vmatpush1.bf16.msra.mxu0 0
      %1518 = vmatprep.mubr.bf16.mxu0 0
      %1519 = vmatmul.mubr.bf16.gmra.mrb[0].mxu0 %v1484
      %v1520 = vpop.f32.mrb[0].mxu0
      %v1521 = vadd.f32 0.0, %v1520
      %v1522 = vpop.f32.mrb[0].mxu0
      %v1523 = vpop.f32.mrb[0].mxu0
      %v1524 = vadd.f32 0.0, %v1523
      %v1525 = vpop.f32.mrb[0].mxu0
      %1526 = vdwg.mxu0
      %v1527 = vadd.f32 %v1343, %v1521
      %v1528 = vadd.f32 %v1344, %v1524
      %1529 = vadd.xlane.f32.xlu0 %v1527
      %v1530 = vpop.xlane.xlu0 %1529
      %1531 = vadd.xlane.f32.xlu0 %v1528
      %v1532 = vpop.xlane.xlu0 %1531
      %v1533 = vmul.f32 %v1530, %v475
      %v1534 = vmul.f32 %v1532, %v475
      %v1535 = vsub.f32 %v1527, %v1533
      %v1536 = vsub.f32 %v1528, %v1534
      %v1537 = vmul.f32 %v1535, %v1535
      %v1538 = vmul.f32 %v1536, %v1536
      %1539 = vadd.xlane.f32.xlu0 %v1537
      %v1540 = vpop.xlane.xlu0 %1539
      %1541 = vadd.xlane.f32.xlu0 %v1538
      %v1542 = vpop.xlane.xlu0 %1541
      %v1543 = vmul.f32 %v1540, %v475
      %v1544 = vmul.f32 %v1542, %v475
      %v1545 = vadd.f32 %v1543, 1e-06
      %v1546 = vadd.f32 %v1544, 1e-06
      %v1547 = vrsqrt.pop %v1545
      %v1548 = vrsqrt.pop %v1546
      %v1549 = vmul.f32 %v1535, %v1547
      %v1550 = vmul.f32 %v1536, %v1548
      %v1551 = vld [vmem:[%s8] sm:$0x1]
      %v1553 = vlaneseq
      %v1554 = vshrl.u32 %v1553, 7
      %v1555 = vsub.s32 0, %v1554
      %v1556 = vrot.slane %v1551, %v1555
      %v1558 = vmul.f32 %v1549, %v1556
      %v1559 = vmul.f32 %v1550, %v1556
      %v1560 = vld [vmem:[%s9] sm:$0x1]
      %v1562 = vlaneseq
      %v1563 = vshrl.u32 %v1562, 7
      %v1564 = vsub.s32 0, %v1563
      %v1565 = vrot.slane %v1560, %v1564
      %v1567 = vadd.f32 %v1558, %v1565
      %v1568 = vadd.f32 %v1559, %v1565
      %v1569 = vpack.c.bf16 %v1568, %v1567
      %v1570 = vld [vmem:[%s10] sm:$0xff]
      %v1571 = vld [vmem:[%s10 + $0x8] sm:$0xff]
      %v1572 = vld [vmem:[%s10 + $0x10] sm:$0xff]
      %v1573 = vld [vmem:[%s10 + $0x18] sm:$0xff]
      %v1574 = vld [vmem:[%s10 + $0x20] sm:$0xff]
      %v1575 = vld [vmem:[%s10 + $0x28] sm:$0xff]
      %v1576 = vld [vmem:[%s10 + $0x30] sm:$0xff]
      %v1577 = vld [vmem:[%s10 + $0x38] sm:$0xff]
      %v1578 = vld [vmem:[%s10 + $0x40] sm:$0xff]
      %v1579 = vld [vmem:[%s10 + $0x48] sm:$0xff]
      %v1580 = vld [vmem:[%s10 + $0x50] sm:$0xff]
      %v1581 = vld [vmem:[%s10 + $0x58] sm:$0xff]
      %v1582 = vld [vmem:[%s10 + $0x60] sm:$0xff]
      %v1583 = vld [vmem:[%s10 + $0x68] sm:$0xff]
      %v1584 = vld [vmem:[%s10 + $0x70] sm:$0xff]
      %v1585 = vld [vmem:[%s10 + $0x78] sm:$0xff]
      %v1586 = vld [vmem:[%s10 + $0x80] sm:$0xff]
      %v1587 = vld [vmem:[%s10 + $0x88] sm:$0xff]
      %v1588 = vld [vmem:[%s10 + $0x90] sm:$0xff]
      %v1589 = vld [vmem:[%s10 + $0x98] sm:$0xff]
      %v1590 = vld [vmem:[%s10 + $0xa0] sm:$0xff]
      %v1591 = vld [vmem:[%s10 + $0xa8] sm:$0xff]
      %v1592 = vld [vmem:[%s10 + $0xb0] sm:$0xff]
      %v1593 = vld [vmem:[%s10 + $0xb8] sm:$0xff]
      %v1594 = vld [vmem:[%s10 + $0xc0] sm:$0xff]
      %v1595 = vld [vmem:[%s10 + $0xc8] sm:$0xff]
      %v1596 = vld [vmem:[%s10 + $0xd0] sm:$0xff]
      %v1597 = vld [vmem:[%s10 + $0xd8] sm:$0xff]
      %v1598 = vld [vmem:[%s10 + $0xe0] sm:$0xff]
      %v1599 = vld [vmem:[%s10 + $0xe8] sm:$0xff]
      %v1600 = vld [vmem:[%s10 + $0xf0] sm:$0xff]
      %v1601 = vld [vmem:[%s10 + $0xf8] sm:$0xff]
      %v1602 = vld [vmem:[%s11] sm:$0xf]
      %v1604 = vlaneseq
      %v1605 = vshrl.u32 %v1604, 7
      %v1606 = vsub.s32 0, %v1605
      %v1607 = vrot.slane %v1602, %v1606
      %v1608 = vlaneseq
      %v1609 = vshrl.u32 %v1608, 7
      %v1610 = vsub.s32 1, %v1609
      %v1611 = vrot.slane %v1602, %v1610
      %v1612 = vlaneseq
      %v1613 = vshrl.u32 %v1612, 7
      %v1614 = vsub.s32 2, %v1613
      %v1615 = vrot.slane %v1602, %v1614
      %v1616 = vlaneseq
      %v1617 = vshrl.u32 %v1616, 7
      %v1618 = vsub.s32 3, %v1617
      %v1619 = vrot.slane %v1602, %v1618
      %v1656 = vunpack.c.l.b16 %v1570
      %v1657 = vunpack.c.h.b16 %v1570
      %v1658 = vunpack.c.l.b16 %v1571
      %v1659 = vunpack.c.h.b16 %v1571
      %v1660 = vunpack.c.l.b16 %v1572
      %v1661 = vunpack.c.h.b16 %v1572
      %v1662 = vunpack.c.l.b16 %v1573
      %v1663 = vunpack.c.h.b16 %v1573
      %v1664 = vunpack.c.l.b16 %v1574
      %v1665 = vunpack.c.h.b16 %v1574
      %v1666 = vunpack.c.l.b16 %v1575
      %v1667 = vunpack.c.h.b16 %v1575
      %v1668 = vunpack.c.l.b16 %v1576
      %v1669 = vunpack.c.h.b16 %v1576
      %v1670 = vunpack.c.l.b16 %v1577
      %v1671 = vunpack.c.h.b16 %v1577
      %v1672 = vunpack.c.l.b16 %v1578
      %v1673 = vunpack.c.h.b16 %v1578
      %v1674 = vunpack.c.l.b16 %v1579
      %v1675 = vunpack.c.h.b16 %v1579
      %v1676 = vunpack.c.l.b16 %v1580
      %v1677 = vunpack.c.h.b16 %v1580
      %v1678 = vunpack.c.l.b16 %v1581
      %v1679 = vunpack.c.h.b16 %v1581
      %v1680 = vunpack.c.l.b16 %v1582
      %v1681 = vunpack.c.h.b16 %v1582
      %v1682 = vunpack.c.l.b16 %v1583
      %v1683 = vunpack.c.h.b16 %v1583
      %v1684 = vunpack.c.l.b16 %v1584
      %v1685 = vunpack.c.h.b16 %v1584
      %v1686 = vunpack.c.l.b16 %v1585
      %v1687 = vunpack.c.h.b16 %v1585
      %v1688 = vunpack.c.l.b16 %v1586
      %v1689 = vunpack.c.h.b16 %v1586
      %v1690 = vunpack.c.l.b16 %v1587
      %v1691 = vunpack.c.h.b16 %v1587
      %v1692 = vunpack.c.l.b16 %v1588
      %v1693 = vunpack.c.h.b16 %v1588
      %v1694 = vunpack.c.l.b16 %v1589
      %v1695 = vunpack.c.h.b16 %v1589
      %v1696 = vunpack.c.l.b16 %v1590
      %v1697 = vunpack.c.h.b16 %v1590
      %v1698 = vunpack.c.l.b16 %v1591
      %v1699 = vunpack.c.h.b16 %v1591
      %v1700 = vunpack.c.l.b16 %v1592
      %v1701 = vunpack.c.h.b16 %v1592
      %v1702 = vunpack.c.l.b16 %v1593
      %v1703 = vunpack.c.h.b16 %v1593
      %v1704 = vunpack.c.l.b16 %v1594
      %v1705 = vunpack.c.h.b16 %v1594
      %v1706 = vunpack.c.l.b16 %v1595
      %v1707 = vunpack.c.h.b16 %v1595
      %v1708 = vunpack.c.l.b16 %v1596
      %v1709 = vunpack.c.h.b16 %v1596
      %v1710 = vunpack.c.l.b16 %v1597
      %v1711 = vunpack.c.h.b16 %v1597
      %v1712 = vunpack.c.l.b16 %v1598
      %v1713 = vunpack.c.h.b16 %v1598
      %v1714 = vunpack.c.l.b16 %v1599
      %v1715 = vunpack.c.h.b16 %v1599
      %v1716 = vunpack.c.l.b16 %v1600
      %v1717 = vunpack.c.h.b16 %v1600
      %v1718 = vunpack.c.l.b16 %v1601
      %v1719 = vunpack.c.h.b16 %v1601
      %v1720 = vpack.c.b16 %v1660, %v1656
      %v1721 = vpack.c.b16 %v1661, %v1657
      %v1722 = vpack.c.b16 %v1662, %v1658
      %v1723 = vpack.c.b16 %v1663, %v1659
      %v1724 = vpack.c.b16 %v1668, %v1664
      %v1725 = vpack.c.b16 %v1669, %v1665
      %v1726 = vpack.c.b16 %v1670, %v1666
      %v1727 = vpack.c.b16 %v1671, %v1667
      %v1728 = vpack.c.b16 %v1676, %v1672
      %v1729 = vpack.c.b16 %v1677, %v1673
      %v1730 = vpack.c.b16 %v1678, %v1674
      %v1731 = vpack.c.b16 %v1679, %v1675
      %v1732 = vpack.c.b16 %v1684, %v1680
      %v1733 = vpack.c.b16 %v1685, %v1681
      %v1734 = vpack.c.b16 %v1686, %v1682
      %v1735 = vpack.c.b16 %v1687, %v1683
      %v1736 = vpack.c.b16 %v1692, %v1688
      %v1737 = vpack.c.b16 %v1693, %v1689
      %v1738 = vpack.c.b16 %v1694, %v1690
      %v1739 = vpack.c.b16 %v1695, %v1691
      %v1740 = vpack.c.b16 %v1700, %v1696
      %v1741 = vpack.c.b16 %v1701, %v1697
      %v1742 = vpack.c.b16 %v1702, %v1698
      %v1743 = vpack.c.b16 %v1703, %v1699
      %v1744 = vpack.c.b16 %v1708, %v1704
      %v1745 = vpack.c.b16 %v1709, %v1705
      %v1746 = vpack.c.b16 %v1710, %v1706
      %v1747 = vpack.c.b16 %v1711, %v1707
      %v1748 = vpack.c.b16 %v1716, %v1712
      %v1749 = vpack.c.b16 %v1717, %v1713
      %v1750 = vpack.c.b16 %v1718, %v1714
      %v1751 = vpack.c.b16 %v1719, %v1715
      %1784 = vmatprep.subr.bf16.mxu0 %v1721
      %1785 = vmatpush1.bf16.msra.mxu0 %v1720
      %1786 = vmatprep.subr.bf16.mxu0 %v1725
      %1787 = vmatpush1.bf16.msra.mxu0 %v1724
      %1788 = vmatprep.subr.bf16.mxu0 %v1729
      %1789 = vmatpush1.bf16.msra.mxu0 %v1728
      %1790 = vmatprep.subr.bf16.mxu0 %v1733
      %1791 = vmatpush1.bf16.msra.mxu0 %v1732
      %1792 = vmatprep.subr.bf16.mxu0 %v1737
      %1793 = vmatpush1.bf16.msra.mxu0 %v1736
      %1794 = vmatprep.subr.bf16.mxu0 %v1741
      %1795 = vmatpush1.bf16.msra.mxu0 %v1740
      %1796 = vmatprep.subr.bf16.mxu0 %v1745
      %1797 = vmatpush1.bf16.msra.mxu0 %v1744
      %1798 = vmatprep.subr.bf16.mxu0 %v1749
      %1799 = vmatpush1.bf16.msra.mxu0 %v1748
      %1800 = vmatprep.subr.bf16.mxu0 0
      %1801 = vmatpush1.bf16.msra.mxu0 0
      %1802 = vmatprep.subr.bf16.mxu0 0
      %1803 = vmatpush1.bf16.msra.mxu0 0
      %1804 = vmatprep.subr.bf16.mxu0 0
      %1805 = vmatpush1.bf16.msra.mxu0 0
      %1806 = vmatprep.subr.bf16.mxu0 0
      %1807 = vmatpush1.bf16.msra.mxu0 0
      %1808 = vmatprep.subr.bf16.mxu0 0
      %1809 = vmatpush1.bf16.msra.mxu0 0
      %1810 = vmatprep.subr.bf16.mxu0 0
      %1811 = vmatpush1.bf16.msra.mxu0 0
      %1812 = vmatprep.subr.bf16.mxu0 0
      %1813 = vmatpush1.bf16.msra.mxu0 0
      %1814 = vmatprep.subr.bf16.mxu0 0
      %1815 = vmatpush1.bf16.msra.mxu0 0
      %1816 = vmatprep.mubr.bf16.mxu0 0
      %1817 = vmatmul.mubr.bf16.gmra.mrb[0].mxu0 %v1569
      %v1818 = vpop.f32.mrb[0].mxu0
      %v1819 = vadd.f32 %v1607, %v1818
      %v1820 = vpop.f32.mrb[0].mxu0
      %v1821 = vadd.f32 %v1611, %v1820
      %v1822 = vpop.f32.mrb[0].mxu0
      %v1823 = vadd.f32 %v1607, %v1822
      %v1824 = vpop.f32.mrb[0].mxu0
      %v1825 = vadd.f32 %v1611, %v1824
      %1826 = vdwg.mxu0
      %1827 = vmatprep.subr.bf16.mxu0 %v1723
      %1828 = vmatpush1.bf16.msra.mxu0 %v1722
      %1829 = vmatprep.subr.bf16.mxu0 %v1727
      %1830 = vmatpush1.bf16.msra.mxu0 %v1726
      %1831 = vmatprep.subr.bf16.mxu0 %v1731
      %1832 = vmatpush1.bf16.msra.mxu0 %v1730
      %1833 = vmatprep.subr.bf16.mxu0 %v1735
      %1834 = vmatpush1.bf16.msra.mxu0 %v1734
      %1835 = vmatprep.subr.bf16.mxu0 %v1739
      %1836 = vmatpush1.bf16.msra.mxu0 %v1738
      %1837 = vmatprep.subr.bf16.mxu0 %v1743
      %1838 = vmatpush1.bf16.msra.mxu0 %v1742
      %1839 = vmatprep.subr.bf16.mxu0 %v1747
      %1840 = vmatpush1.bf16.msra.mxu0 %v1746
      %1841 = vmatprep.subr.bf16.mxu0 %v1751
      %1842 = vmatpush1.bf16.msra.mxu0 %v1750
      %1843 = vmatprep.subr.bf16.mxu0 0
      %1844 = vmatpush1.bf16.msra.mxu0 0
      %1845 = vmatprep.subr.bf16.mxu0 0
      %1846 = vmatpush1.bf16.msra.mxu0 0
      %1847 = vmatprep.subr.bf16.mxu0 0
      %1848 = vmatpush1.bf16.msra.mxu0 0
      %1849 = vmatprep.subr.bf16.mxu0 0
      %1850 = vmatpush1.bf16.msra.mxu0 0
      %1851 = vmatprep.subr.bf16.mxu0 0
      %1852 = vmatpush1.bf16.msra.mxu0 0
      %1853 = vmatprep.subr.bf16.mxu0 0
      %1854 = vmatpush1.bf16.msra.mxu0 0
      %1855 = vmatprep.subr.bf16.mxu0 0
      %1856 = vmatpush1.bf16.msra.mxu0 0
      %1857 = vmatprep.subr.bf16.mxu0 0
      %1858 = vmatpush1.bf16.msra.mxu0 0
      %1859 = vmatprep.mubr.bf16.mxu0 0
      %1860 = vmatmul.mubr.bf16.gmra.mrb[0].mxu0 %v1569
      %v1861 = vpop.f32.mrb[0].mxu0
      %v1862 = vadd.f32 %v1615, %v1861
      %v1863 = vpop.f32.mrb[0].mxu0
      %v1864 = vadd.f32 %v1619, %v1863
      %v1865 = vpop.f32.mrb[0].mxu0
      %v1866 = vadd.f32 %v1615, %v1865
      %v1867 = vpop.f32.mrb[0].mxu0
      %v1868 = vadd.f32 %v1619, %v1867
      %1869 = vdwg.mxu0
      %v1870 = vmul.f32 %v1819, %v1819
      %v1871 = vmul.f32 %v1821, %v1821
      %v1872 = vmul.f32 %v1862, %v1862
      %v1873 = vmul.f32 %v1864, %v1864
      %v1874 = vmul.f32 %v1823, %v1823
      %v1875 = vmul.f32 %v1825, %v1825
      %v1876 = vmul.f32 %v1866, %v1866
      %v1877 = vmul.f32 %v1868, %v1868
      %v1878 = vmul.f32 %v1819, %v1870
      %v1879 = vmul.f32 %v1821, %v1871
      %v1880 = vmul.f32 %v1862, %v1872
      %v1881 = vmul.f32 %v1864, %v1873
      %v1882 = vmul.f32 %v1823, %v1874
      %v1883 = vmul.f32 %v1825, %v1875
      %v1884 = vmul.f32 %v1866, %v1876
      %v1885 = vmul.f32 %v1868, %v1877
      %v1886 = vmul.f32 %v1878, 0.044715
      %v1887 = vmul.f32 %v1879, 0.044715
      %v1888 = vmul.f32 %v1880, 0.044715
      %v1889 = vmul.f32 %v1881, 0.044715
      %v1890 = vmul.f32 %v1882, 0.044715
      %v1891 = vmul.f32 %v1883, 0.044715
      %v1892 = vmul.f32 %v1884, 0.044715
      %v1893 = vmul.f32 %v1885, 0.044715
      %v1894 = vadd.f32 %v1819, %v1886
      %v1895 = vadd.f32 %v1821, %v1887
      %v1896 = vadd.f32 %v1862, %v1888
      %v1897 = vadd.f32 %v1864, %v1889
      %v1898 = vadd.f32 %v1823, %v1890
      %v1899 = vadd.f32 %v1825, %v1891
      %v1900 = vadd.f32 %v1866, %v1892
      %v1901 = vadd.f32 %v1868, %v1893
      %v1902 = vmul.f32 %v1894, 0.7978846
      %v1903 = vmul.f32 %v1895, 0.7978846
      %v1904 = vmul.f32 %v1896, 0.7978846
      %v1905 = vmul.f32 %v1897, 0.7978846
      %v1906 = vmul.f32 %v1898, 0.7978846
      %v1907 = vmul.f32 %v1899, 0.7978846
      %v1908 = vmul.f32 %v1900, 0.7978846
      %v1909 = vmul.f32 %v1901, 0.7978846
      %v1910 = vtanh.pop %v1902
      %v1911 = vtanh.pop %v1903
      %v1912 = vtanh.pop %v1904
      %v1913 = vtanh.pop %v1905
      %v1914 = vtanh.pop %v1906
      %v1915 = vtanh.pop %v1907
      %v1916 = vtanh.pop %v1908
      %v1917 = vtanh.pop %v1909
      %v1918 = vadd.f32 %v1910, 1.0
      %v1919 = vadd.f32 %v1911, 1.0
      %v1920 = vadd.f32 %v1912, 1.0
      %v1921 = vadd.f32 %v1913, 1.0
      %v1922 = vadd.f32 %v1914, 1.0
      %v1923 = vadd.f32 %v1915, 1.0
      %v1924 = vadd.f32 %v1916, 1.0
      %v1925 = vadd.f32 %v1917, 1.0
      %v1926 = vmul.f32 %v1918, 0.5
      %v1927 = vmul.f32 %v1919, 0.5
      %v1928 = vmul.f32 %v1920, 0.5
      %v1929 = vmul.f32 %v1921, 0.5
      %v1930 = vmul.f32 %v1922, 0.5
      %v1931 = vmul.f32 %v1923, 0.5
      %v1932 = vmul.f32 %v1924, 0.5
      %v1933 = vmul.f32 %v1925, 0.5
      %v1934 = vmul.f32 %v1819, %v1926
      %v1935 = vmul.f32 %v1821, %v1927
      %v1936 = vmul.f32 %v1862, %v1928
      %v1937 = vmul.f32 %v1864, %v1929
      %v1938 = vmul.f32 %v1823, %v1930
      %v1939 = vmul.f32 %v1825, %v1931
      %v1940 = vmul.f32 %v1866, %v1932
      %v1941 = vmul.f32 %v1868, %v1933
      %v1942 = vpack.c.bf16 %v1938, %v1934
      %v1943 = vpack.c.bf16 %v1939, %v1935
      %v1944 = vpack.c.bf16 %v1940, %v1936
      %v1945 = vpack.c.bf16 %v1941, %v1937
      %v1946 = vld [vmem:[%s12] sm:$0xf]
      %v1947 = vld [vmem:[%s12 + $0x4] sm:$0xf]
      %v1948 = vld [vmem:[%s12 + $0x8] sm:$0xf]
      %v1949 = vld [vmem:[%s12 + $0xc] sm:$0xf]
      %v1950 = vld [vmem:[%s12 + $0x10] sm:$0xf]
      %v1951 = vld [vmem:[%s12 + $0x14] sm:$0xf]
      %v1952 = vld [vmem:[%s12 + $0x18] sm:$0xf]
      %v1953 = vld [vmem:[%s12 + $0x1c] sm:$0xf]
      %v1954 = vld [vmem:[%s12 + $0x20] sm:$0xf]
      %v1955 = vld [vmem:[%s12 + $0x24] sm:$0xf]
      %v1956 = vld [vmem:[%s12 + $0x28] sm:$0xf]
      %v1957 = vld [vmem:[%s12 + $0x2c] sm:$0xf]
      %v1958 = vld [vmem:[%s12 + $0x30] sm:$0xf]
      %v1959 = vld [vmem:[%s12 + $0x34] sm:$0xf]
      %v1960 = vld [vmem:[%s12 + $0x38] sm:$0xf]
      %v1961 = vld [vmem:[%s12 + $0x3c] sm:$0xf]
      %v1962 = vld [vmem:[%s12 + $0x40] sm:$0xf]
      %v1963 = vld [vmem:[%s12 + $0x44] sm:$0xf]
      %v1964 = vld [vmem:[%s12 + $0x48] sm:$0xf]
      %v1965 = vld [vmem:[%s12 + $0x4c] sm:$0xf]
      %v1966 = vld [vmem:[%s12 + $0x50] sm:$0xf]
      %v1967 = vld [vmem:[%s12 + $0x54] sm:$0xf]
      %v1968 = vld [vmem:[%s12 + $0x58] sm:$0xf]
      %v1969 = vld [vmem:[%s12 + $0x5c] sm:$0xf]
      %v1970 = vld [vmem:[%s12 + $0x60] sm:$0xf]
      %v1971 = vld [vmem:[%s12 + $0x64] sm:$0xf]
      %v1972 = vld [vmem:[%s12 + $0x68] sm:$0xf]
      %v1973 = vld [vmem:[%s12 + $0x6c] sm:$0xf]
      %v1974 = vld [vmem:[%s12 + $0x70] sm:$0xf]
      %v1975 = vld [vmem:[%s12 + $0x74] sm:$0xf]
      %v1976 = vld [vmem:[%s12 + $0x78] sm:$0xf]
      %v1977 = vld [vmem:[%s12 + $0x7c] sm:$0xf]
      %v1978 = vld [vmem:[%s12 + $0x80] sm:$0xf]
      %v1979 = vld [vmem:[%s12 + $0x84] sm:$0xf]
      %v1980 = vld [vmem:[%s12 + $0x88] sm:$0xf]
      %v1981 = vld [vmem:[%s12 + $0x8c] sm:$0xf]
      %v1982 = vld [vmem:[%s12 + $0x90] sm:$0xf]
      %v1983 = vld [vmem:[%s12 + $0x94] sm:$0xf]
      %v1984 = vld [vmem:[%s12 + $0x98] sm:$0xf]
      %v1985 = vld [vmem:[%s12 + $0x9c] sm:$0xf]
      %v1986 = vld [vmem:[%s12 + $0xa0] sm:$0xf]
      %v1987 = vld [vmem:[%s12 + $0xa4] sm:$0xf]
      %v1988 = vld [vmem:[%s12 + $0xa8] sm:$0xf]
      %v1989 = vld [vmem:[%s12 + $0xac] sm:$0xf]
      %v1990 = vld [vmem:[%s12 + $0xb0] sm:$0xf]
      %v1991 = vld [vmem:[%s12 + $0xb4] sm:$0xf]
      %v1992 = vld [vmem:[%s12 + $0xb8] sm:$0xf]
      %v1993 = vld [vmem:[%s12 + $0xbc] sm:$0xf]
      %v1994 = vld [vmem:[%s12 + $0xc0] sm:$0xf]
      %v1995 = vld [vmem:[%s12 + $0xc4] sm:$0xf]
      %v1996 = vld [vmem:[%s12 + $0xc8] sm:$0xf]
      %v1997 = vld [vmem:[%s12 + $0xcc] sm:$0xf]
      %v1998 = vld [vmem:[%s12 + $0xd0] sm:$0xf]
      %v1999 = vld [vmem:[%s12 + $0xd4] sm:$0xf]
      %v2000 = vld [vmem:[%s12 + $0xd8] sm:$0xf]
      %v2001 = vld [vmem:[%s12 + $0xdc] sm:$0xf]
      %v2002 = vld [vmem:[%s12 + $0xe0] sm:$0xf]
      %v2003 = vld [vmem:[%s12 + $0xe4] sm:$0xf]
      %v2004 = vld [vmem:[%s12 + $0xe8] sm:$0xf]
      %v2005 = vld [vmem:[%s12 + $0xec] sm:$0xf]
      %v2006 = vld [vmem:[%s12 + $0xf0] sm:$0xf]
      %v2007 = vld [vmem:[%s12 + $0xf4] sm:$0xf]
      %v2008 = vld [vmem:[%s12 + $0xf8] sm:$0xf]
      %v2009 = vld [vmem:[%s12 + $0xfc] sm:$0xf]
      %v2074 = vunpack.c.l.b16 %v1946
      %v2075 = vunpack.c.l.b16 %v1947
      %v2076 = vunpack.c.l.b16 %v1948
      %v2077 = vunpack.c.l.b16 %v1949
      %v2078 = vunpack.c.l.b16 %v1950
      %v2079 = vunpack.c.l.b16 %v1951
      %v2080 = vunpack.c.l.b16 %v1952
      %v2081 = vunpack.c.l.b16 %v1953
      %v2082 = vunpack.c.l.b16 %v1954
      %v2083 = vunpack.c.l.b16 %v1955
      %v2084 = vunpack.c.l.b16 %v1956
      %v2085 = vunpack.c.l.b16 %v1957
      %v2086 = vunpack.c.l.b16 %v1958
      %v2087 = vunpack.c.l.b16 %v1959
      %v2088 = vunpack.c.l.b16 %v1960
      %v2089 = vunpack.c.l.b16 %v1961
      %v2090 = vunpack.c.l.b16 %v1962
      %v2091 = vunpack.c.l.b16 %v1963
      %v2092 = vunpack.c.l.b16 %v1964
      %v2093 = vunpack.c.l.b16 %v1965
      %v2094 = vunpack.c.l.b16 %v1966
      %v2095 = vunpack.c.l.b16 %v1967
      %v2096 = vunpack.c.l.b16 %v1968
      %v2097 = vunpack.c.l.b16 %v1969
      %v2098 = vunpack.c.l.b16 %v1970
      %v2099 = vunpack.c.l.b16 %v1971
      %v2100 = vunpack.c.l.b16 %v1972
      %v2101 = vunpack.c.l.b16 %v1973
      %v2102 = vunpack.c.l.b16 %v1974
      %v2103 = vunpack.c.l.b16 %v1975
      %v2104 = vunpack.c.l.b16 %v1976
      %v2105 = vunpack.c.l.b16 %v1977
      %v2106 = vunpack.c.l.b16 %v1978
      %v2107 = vunpack.c.l.b16 %v1979
      %v2108 = vunpack.c.l.b16 %v1980
      %v2109 = vunpack.c.l.b16 %v1981
      %v2110 = vunpack.c.l.b16 %v1982
      %v2111 = vunpack.c.l.b16 %v1983
      %v2112 = vunpack.c.l.b16 %v1984
      %v2113 = vunpack.c.l.b16 %v1985
      %v2114 = vunpack.c.l.b16 %v1986
      %v2115 = vunpack.c.l.b16 %v1987
      %v2116 = vunpack.c.l.b16 %v1988
      %v2117 = vunpack.c.l.b16 %v1989
      %v2118 = vunpack.c.l.b16 %v1990
      %v2119 = vunpack.c.l.b16 %v1991
      %v2120 = vunpack.c.l.b16 %v1992
      %v2121 = vunpack.c.l.b16 %v1993
      %v2122 = vunpack.c.l.b16 %v1994
      %v2123 = vunpack.c.l.b16 %v1995
      %v2124 = vunpack.c.l.b16 %v1996
      %v2125 = vunpack.c.l.b16 %v1997
      %v2126 = vunpack.c.l.b16 %v1998
      %v2127 = vunpack.c.l.b16 %v1999
      %v2128 = vunpack.c.l.b16 %v2000
      %v2129 = vunpack.c.l.b16 %v2001
      %v2130 = vunpack.c.l.b16 %v2002
      %v2131 = vunpack.c.l.b16 %v2003
      %v2132 = vunpack.c.l.b16 %v2004
      %v2133 = vunpack.c.l.b16 %v2005
      %v2134 = vunpack.c.l.b16 %v2006
      %v2135 = vunpack.c.l.b16 %v2007
      %v2136 = vunpack.c.l.b16 %v2008
      %v2137 = vunpack.c.l.b16 %v2009
      %v2138 = vpack.c.b16 %v2075, %v2074
      %v2139 = vpack.c.b16 %v2077, %v2076
      %v2140 = vpack.c.b16 %v2079, %v2078
      %v2141 = vpack.c.b16 %v2081, %v2080
      %v2142 = vpack.c.b16 %v2083, %v2082
      %v2143 = vpack.c.b16 %v2085, %v2084
      %v2144 = vpack.c.b16 %v2087, %v2086
      %v2145 = vpack.c.b16 %v2089, %v2088
      %v2146 = vpack.c.b16 %v2091, %v2090
      %v2147 = vpack.c.b16 %v2093, %v2092
      %v2148 = vpack.c.b16 %v2095, %v2094
      %v2149 = vpack.c.b16 %v2097, %v2096
      %v2150 = vpack.c.b16 %v2099, %v2098
      %v2151 = vpack.c.b16 %v2101, %v2100
      %v2152 = vpack.c.b16 %v2103, %v2102
      %v2153 = vpack.c.b16 %v2105, %v2104
      %v2154 = vpack.c.b16 %v2107, %v2106
      %v2155 = vpack.c.b16 %v2109, %v2108
      %v2156 = vpack.c.b16 %v2111, %v2110
      %v2157 = vpack.c.b16 %v2113, %v2112
      %v2158 = vpack.c.b16 %v2115, %v2114
      %v2159 = vpack.c.b16 %v2117, %v2116
      %v2160 = vpack.c.b16 %v2119, %v2118
      %v2161 = vpack.c.b16 %v2121, %v2120
      %v2162 = vpack.c.b16 %v2123, %v2122
      %v2163 = vpack.c.b16 %v2125, %v2124
      %v2164 = vpack.c.b16 %v2127, %v2126
      %v2165 = vpack.c.b16 %v2129, %v2128
      %v2166 = vpack.c.b16 %v2131, %v2130
      %v2167 = vpack.c.b16 %v2133, %v2132
      %v2168 = vpack.c.b16 %v2135, %v2134
      %v2169 = vpack.c.b16 %v2137, %v2136
      %2202 = vmatprep.subr.bf16.mxu0 0
      %2203 = vmatpush1.bf16.msra.mxu0 %v2138
      %2204 = vmatprep.subr.bf16.mxu0 0
      %2205 = vmatpush1.bf16.msra.mxu0 %v2139
      %2206 = vmatprep.subr.bf16.mxu0 0
      %2207 = vmatpush1.bf16.msra.mxu0 %v2140
      %2208 = vmatprep.subr.bf16.mxu0 0
      %2209 = vmatpush1.bf16.msra.mxu0 %v2141
      %2210 = vmatprep.subr.bf16.mxu0 0
      %2211 = vmatpush1.bf16.msra.mxu0 %v2142
      %2212 = vmatprep.subr.bf16.mxu0 0
      %2213 = vmatpush1.bf16.msra.mxu0 %v2143
      %2214 = vmatprep.subr.bf16.mxu0 0
      %2215 = vmatpush1.bf16.msra.mxu0 %v2144
      %2216 = vmatprep.subr.bf16.mxu0 0
      %2217 = vmatpush1.bf16.msra.mxu0 %v2145
      %2218 = vmatprep.subr.bf16.mxu0 0
      %2219 = vmatpush1.bf16.msra.mxu0 %v2146
      %2220 = vmatprep.subr.bf16.mxu0 0
      %2221 = vmatpush1.bf16.msra.mxu0 %v2147
      %2222 = vmatprep.subr.bf16.mxu0 0
      %2223 = vmatpush1.bf16.msra.mxu0 %v2148
      %2224 = vmatprep.subr.bf16.mxu0 0
      %2225 = vmatpush1.bf16.msra.mxu0 %v2149
      %2226 = vmatprep.subr.bf16.mxu0 0
      %2227 = vmatpush1.bf16.msra.mxu0 %v2150
      %2228 = vmatprep.subr.bf16.mxu0 0
      %2229 = vmatpush1.bf16.msra.mxu0 %v2151
      %2230 = vmatprep.subr.bf16.mxu0 0
      %2231 = vmatpush1.bf16.msra.mxu0 %v2152
      %2232 = vmatprep.subr.bf16.mxu0 0
      %2233 = vmatpush1.bf16.msra.mxu0 %v2153
      %2234 = vmatprep.mubr.bf16.mxu0 %v1943
      %2235 = vmatmul.mubr.bf16.gmra.mrb[0].mxu0 %v1942
      %v2236 = vpop.f32.mrb[0].mxu0
      %v2237 = vadd.f32 0.0, %v2236
      %v2238 = vpop.f32.mrb[0].mxu0
      %v2239 = vpop.f32.mrb[0].mxu0
      %v2240 = vadd.f32 0.0, %v2239
      %v2241 = vpop.f32.mrb[0].mxu0
      %2242 = vdwg.mxu0
      %2243 = vmatprep.subr.bf16.mxu0 0
      %2244 = vmatpush1.bf16.msra.mxu0 %v2154
      %2245 = vmatprep.subr.bf16.mxu0 0
      %2246 = vmatpush1.bf16.msra.mxu0 %v2155
      %2247 = vmatprep.subr.bf16.mxu0 0
      %2248 = vmatpush1.bf16.msra.mxu0 %v2156
      %2249 = vmatprep.subr.bf16.mxu0 0
      %2250 = vmatpush1.bf16.msra.mxu0 %v2157
      %2251 = vmatprep.subr.bf16.mxu0 0
      %2252 = vmatpush1.bf16.msra.mxu0 %v2158
      %2253 = vmatprep.subr.bf16.mxu0 0
      %2254 = vmatpush1.bf16.msra.mxu0 %v2159
      %2255 = vmatprep.subr.bf16.mxu0 0
      %2256 = vmatpush1.bf16.msra.mxu0 %v2160
      %2257 = vmatprep.subr.bf16.mxu0 0
      %2258 = vmatpush1.bf16.msra.mxu0 %v2161
      %2259 = vmatprep.subr.bf16.mxu0 0
      %2260 = vmatpush1.bf16.msra.mxu0 %v2162
      %2261 = vmatprep.subr.bf16.mxu0 0
      %2262 = vmatpush1.bf16.msra.mxu0 %v2163
      %2263 = vmatprep.subr.bf16.mxu0 0
      %2264 = vmatpush1.bf16.msra.mxu0 %v2164
      %2265 = vmatprep.subr.bf16.mxu0 0
      %2266 = vmatpush1.bf16.msra.mxu0 %v2165
      %2267 = vmatprep.subr.bf16.mxu0 0
      %2268 = vmatpush1.bf16.msra.mxu0 %v2166
      %2269 = vmatprep.subr.bf16.mxu0 0
      %2270 = vmatpush1.bf16.msra.mxu0 %v2167
      %2271 = vmatprep.subr.bf16.mxu0 0
      %2272 = vmatpush1.bf16.msra.mxu0 %v2168
      %2273 = vmatprep.subr.bf16.mxu0 0
      %2274 = vmatpush1.bf16.msra.mxu0 %v2169
      %2275 = vmatprep.mubr.bf16.mxu0 %v1945
      %2276 = vmatmul.mubr.bf16.gmra.mrb[0].mxu0 %v1944
      %v2277 = vpop.f32.mrb[0].mxu0
      %v2278 = vadd.f32 %v2237, %v2277
      %v2279 = vpop.f32.mrb[0].mxu0
      %v2280 = vpop.f32.mrb[0].mxu0
      %v2281 = vadd.f32 %v2240, %v2280
      %v2282 = vpop.f32.mrb[0].mxu0
      %2283 = vdwg.mxu0
      %v2284 = vadd.f32 %v1527, %v2278
      %v2285 = vadd.f32 %v1528, %v2281
      %v2286 = vld [vmem:[%s13] sm:$0x1]
      %v2288 = vlaneseq
      %v2289 = vshrl.u32 %v2288, 7
      %v2290 = vsub.s32 0, %v2289
      %v2291 = vrot.slane %v2286, %v2290
      %v2293 = vadd.f32 %v2284, %v2291
      %v2294 = vadd.f32 %v2285, %v2291
      %2295 = vst [vmem:[%s467] sm:$0xff] %v2293
      %2296 = vst [vmem:[%s467 + $0x8] sm:$0xff] %v2294
      %p2297 = scmp.lt.s32.totalorder %s25, 1
      %s2298 = scalar_select %p2297, %s25, 1
      %s2299 = smul.addr %s2298, 2
      %s2300 = smul.addr %s2299, 8
      %s2301 = scalar_lea.vmem %s14, %s2300
      // Predicated region
      $region77: #{dino_forward.4} parent=75 // pred_check
        %p2302 = pneg %p342
      $region78: #{dino_forward.4} parent=75 // pred_check_branch
        %2304 = sbr.rel (%p2302) target = $region80
      $region79: #{dino_forward.4} parent=75 // pred_region
        _
      $region80: #{dino_forward.4} parent=75 // pred_fallthru
        _
    $region76: #{dino_forward.4} parent=5 // pred_fallthru
      _
    %p2305 = scmp.le.s32.totalorder 2, %s20
    // Predicated region
    $region81: #{dino_forward.4} parent=5 // pred_check
      %p2306 = pneg %p2305
    $region82: #{dino_forward.4} parent=5 // pred_check_branch
      %2308 = sbr.rel (%p2306) target = $region84
    $region83: #{dino_forward.4} parent=5 // pred_region
      %s2309 = ssub.s32 %s20, 2
      // Predicated region
      $region85: #{dino_forward.4} parent=83 // pred_check
        %p2310 = pneg %p348
      $region86: #{dino_forward.4} parent=83 // pred_check_branch
        %2312 = sbr.rel (%p2310) target = $region88
      $region87: #{dino_forward.4} parent=83 // pred_region
        %p2313 = scmp.lt.s32.totalorder %s26, 1
        %s2314 = scalar_select %p2313, %s26, 1
        %s2315 = smul.addr %s2314, 2
        %s2316 = smul.addr %s2315, 8
        %s2317 = scalar_lea.vmem %s14, %s2316
      $region88: #{dino_forward.4} parent=83 // pred_fallthru
        _
    $region84: #{dino_forward.4} parent=5 // pred_fallthru
      _
  $region6: #{dino_forward.4} parent=0 // loop_footer
    %s24 = sadd.s32 1, %s20
  $region7: #{dino_forward.4} parent=0 // loop_footer_branch
    %19 = sbr.rel target = $region3
  $region8: #{dino_forward.4} parent=0 // loop_exit
    _

</llo_original>
